<compile_context>
chip_gen: v6e
topology: v6e:2x2x1
jax: 0.10.0
libtpu: 0.0.40
codegen_flags: <defaults>
</compile_context>

<pallas_src>
import jax
import jax.numpy as jnp
from jax.experimental import pallas as pl
from jax.experimental.pallas import tpu as pltpu

# ---------------- small BERT-ish config ----------------
VOCAB = 128
HIDDEN = 32
N_HEADS = 2
HEAD_DIM = HIDDEN // N_HEADS
FFN = 64
N_LAYERS = 2
SEQ = 8
BATCH = 2
N_CLASSES = 3
LN_EPS = 1e-12     # BERT layernorm eps
LANES = 128        # lane width of the packed parameter slab
OUT_PAD = 128      # lane-dense padded width for the logits store


def _round_up(x, m):
    return -(-x // m) * m


# ---------------- static layout of the single packed parameter slab ----------------
def _build_slab_layout():
    """name -> (row_offset, rows, cols). Rows 8-aligned, lanes padded to 128."""
    layout = {}
    off = 0

    def add(name, r, c):
        nonlocal off
        layout[name] = (off, r, c)
        off += _round_up(r, 8)

    add("word_emb", VOCAB, HIDDEN)
    add("pos_emb", SEQ, HIDDEN)
    add("type_row", 1, HIDDEN)
    add("emb_ln_g", 1, HIDDEN)
    add("emb_ln_b", 1, HIDDEN)
    for l in range(N_LAYERS):
        p = f"L{l}."
        add(p + "wqkv", HIDDEN, 3 * HIDDEN)   # per-head interleaved columns
        add(p + "bqkv", 1, 3 * HIDDEN)
        add(p + "wo", HIDDEN, HIDDEN)
        add(p + "bo", 1, HIDDEN)
        add(p + "ln1_g", 1, HIDDEN)
        add(p + "ln1_b", 1, HIDDEN)
        add(p + "w1", HIDDEN, FFN)
        add(p + "b1", 1, FFN)
        add(p + "w2", FFN, HIDDEN)
        add(p + "b2", 1, HIDDEN)
        add(p + "ln2_g", 1, HIDDEN)
        add(p + "ln2_b", 1, HIDDEN)
    add("pool_w", HIDDEN, HIDDEN)
    add("pool_b", 1, HIDDEN)
    add("out_w", HIDDEN, OUT_PAD)
    add("out_b", 1, OUT_PAD)
    return layout, off


_SLAB_LAYOUT, _SLAB_ROWS = _build_slab_layout()


def _layernorm(h, g, b):
    mu = jnp.mean(h, axis=-1, keepdims=True)
    var = jnp.mean(jnp.square(h - mu), axis=-1, keepdims=True)
    return (h - mu) * jax.lax.rsqrt(var + LN_EPS) * g + b


# ---------------- the fused forward kernel ----------------
def _fused_forward_kernel(ids_ref, mask_ref, slab_ref, o_ref, x_ref):
    """Whole SentimentClassifier forward in one kernel invocation.

    ids_ref : (B*S,) int32  token ids (SMEM)
    mask_ref: (B, S) f32    attention mask (1 = keep, 0 = pad) (VMEM)
    slab_ref: (_SLAB_ROWS, 128) f32   all parameters packed lane-dense (VMEM)
    o_ref   : (B, OUT_PAD) f32  logits padded to 128 lanes (first N_CLASSES are real)
    x_ref   : (B*S, H) f32 VMEM scratch (embedding gather target / [CLS] strided read)
    """
    B, S, H, nH, Dh = BATCH, SEQ, HIDDEN, N_HEADS, HEAD_DIM
    f32, bf16 = jnp.float32, jnp.bfloat16
    scale = 1.0 / float(Dh) ** 0.5

    def w(name):
        # lazy, static-offset load of one parameter from the packed slab
        off, r, c = _SLAB_LAYOUT[name]
        return slab_ref[off:off + r, 0:c]

    def wb(name):
        return w(name).astype(bf16)

    # ---- embedding gather (dynamic row loads from the slab, driven by SMEM scalar ids) ----
    word_off = _SLAB_LAYOUT["word_emb"][0]
    for i in range(B * S):
        tok = ids_ref[i]
        x_ref[pl.ds(i, 1), :] = slab_ref[pl.ds(word_off + tok, 1), 0:H]
    pos_type = w("pos_emb") + w("type_row")                       # (S, H), token_type_id = 0
    emb = x_ref[...] + jnp.tile(pos_type, (B, 1))                 # (B*S, H)
    x = _layernorm(emb, w("emb_ln_g"), w("emb_ln_b"))

    # ---- HF-style extended additive attention mask, broadcast hoisted out of the layer loop ----
    add_mask = (1.0 - mask_ref[...]) * -10000.0                   # (B, S)
    mask_bcast = [jnp.broadcast_to(add_mask[b:b + 1, :], (S, S)) for b in range(B)]

    # ---- encoder layers ----
    for l in range(N_LAYERS):
        p = f"L{l}."

        # Fused QKV projection (bf16 operands, f32 accumulate); columns are per-head blocks.
        qkv = jnp.dot(x.astype(bf16), wb(p + "wqkv"),
                      preferred_element_type=f32) + w(p + "bqkv")  # (B*S, 3H)
        wo_b = wb(p + "wo")                                        # (H, H)

        attn_blocks = []
        for b in range(B):
            r0 = b * S
            acc = None
            for h in range(nH):
                c0 = h * 3 * Dh                                    # contiguous [Q_h|K_h|V_h]
                q = qkv[r0:r0 + S, c0:c0 + Dh].astype(bf16)
                k = qkv[r0:r0 + S, c0 + Dh:c0 + 2 * Dh].astype(bf16)
                v = qkv[r0:r0 + S, c0 + 2 * Dh:c0 + 3 * Dh].astype(bf16)
                # scores = q @ k^T without materializing the transpose
                s = jax.lax.dot_general(q, k, (((1,), (1,)), ((), ())),
                                        preferred_element_type=f32) * scale
                s = s + mask_bcast[b]
                s = s - jnp.max(s, axis=-1, keepdims=True)
                pr = jnp.exp(s)
                pr = pr * pl.reciprocal(jnp.sum(pr, axis=-1, keepdims=True), approx=True)
                ctx_h = jnp.dot(pr.astype(bf16), v, preferred_element_type=f32)   # (S, Dh)
                # fold output projection per head -> no lane-axis concat of heads
                part = jnp.dot(ctx_h.astype(bf16), wo_b[h * Dh:(h + 1) * Dh, :],
                               preferred_element_type=f32)                          # (S, H)
                acc = part if acc is None else acc + part
            attn_blocks.append(acc)
        attn_out = jnp.concatenate(attn_blocks, axis=0) + w(p + "bo")   # (B*S, H)
        x = _layernorm(attn_out + x, w(p + "ln1_g"), w(p + "ln1_b"))

        ff = jnp.dot(x.astype(bf16), wb(p + "w1"), preferred_element_type=f32) + w(p + "b1")
        ff = jax.nn.gelu(ff, approximate=True)
        ff = jnp.dot(ff.astype(bf16), wb(p + "w2"), preferred_element_type=f32) + w(p + "b2")
        x = _layernorm(ff + x, w(p + "ln2_g"), w(p + "ln2_b"))

    # ---- pooler + classifier head on the [CLS] rows (strided read, no concat) ----
    x_ref[...] = x
    cls = x_ref[pl.ds(0, B, stride=S), :]                          # rows 0, S, 2S, ... -> (B, H)
    pooled = jnp.tanh(jnp.dot(cls.astype(bf16), wb("pool_w"),
                              preferred_element_type=f32) + w("pool_b"))
    # nn.Dropout(p=0.3): identity at inference.
    # TODO(synk): training-mode dropout would use pltpu.prng_seed / prng_random_bits.
    o_ref[...] = jnp.dot(pooled.astype(bf16), wb("out_w"),
                         preferred_element_type=f32) + w("out_b")


# ---------------- parameters ----------------
def init_params(key):
    def nrm(key, shape):
        return (0.02 * jax.random.normal(key, shape)).astype(jnp.float32)

    keys = iter(jax.random.split(key, 64))
    p = {
        "word_emb": nrm(next(keys), (VOCAB, HIDDEN)),
        "pos_emb": nrm(next(keys), (SEQ, HIDDEN)),
        "type_emb": nrm(next(keys), (2, HIDDEN)),
        "emb_ln_g": jnp.ones((1, HIDDEN), jnp.float32),
        "emb_ln_b": jnp.zeros((1, HIDDEN), jnp.float32),
        "layers": [],
        "pool_w": nrm(next(keys), (HIDDEN, HIDDEN)),
        "pool_b": jnp.zeros((1, HIDDEN), jnp.float32),
        "out_w": nrm(next(keys), (HIDDEN, N_CLASSES)),
        "out_b": jnp.zeros((1, N_CLASSES), jnp.float32),
    }
    for _ in range(N_LAYERS):
        p["layers"].append({
            # fused QKV weight, standard layout: columns [0:H)=Q, [H:2H)=K, [2H:3H)=V
            "wqkv": nrm(next(keys), (HIDDEN, 3 * HIDDEN)),
            "bqkv": jnp.zeros((1, 3 * HIDDEN), jnp.float32),
            "wo": nrm(next(keys), (HIDDEN, HIDDEN)), "bo": jnp.zeros((1, HIDDEN), jnp.float32),
            "ln1_g": jnp.ones((1, HIDDEN), jnp.float32), "ln1_b": jnp.zeros((1, HIDDEN), jnp.float32),
            "w1": nrm(next(keys), (HIDDEN, FFN)), "b1": jnp.zeros((1, FFN), jnp.float32),
            "w2": nrm(next(keys), (FFN, HIDDEN)), "b2": jnp.zeros((1, HIDDEN), jnp.float32),
            "ln2_g": jnp.ones((1, HIDDEN), jnp.float32), "ln2_b": jnp.zeros((1, HIDDEN), jnp.float32),
        })
    return p


def pack_params(params):
    """Pack every parameter into one lane-dense (rows, 128) f32 slab (done once, offline)."""
    H, Dh = HIDDEN, HEAD_DIM
    # per-head interleaved column order for the fused QKV weight: [Q_h | K_h | V_h] per head
    perm = []
    for h in range(N_HEADS):
        for blk in range(3):
            perm += list(range(blk * H + h * Dh, blk * H + (h + 1) * Dh))
    perm = jnp.asarray(perm, dtype=jnp.int32)

    t = {
        "word_emb": params["word_emb"],
        "pos_emb": params["pos_emb"],
        "type_row": params["type_emb"][0:1, :],
        "emb_ln_g": params["emb_ln_g"],
        "emb_ln_b": params["emb_ln_b"],
        "pool_w": params["pool_w"],
        "pool_b": params["pool_b"],
        "out_w": jnp.pad(params["out_w"], ((0, 0), (0, OUT_PAD - N_CLASSES))),
        "out_b": jnp.pad(params["out_b"], ((0, 0), (0, OUT_PAD - N_CLASSES))),
    }
    for l, lp in enumerate(params["layers"]):
        pre = f"L{l}."
        t[pre + "wqkv"] = lp["wqkv"][:, perm]
        t[pre + "bqkv"] = lp["bqkv"][:, perm]
        t[pre + "wo"] = lp["wo"]
        t[pre + "bo"] = lp["bo"]
        t[pre + "ln1_g"] = lp["ln1_g"]
        t[pre + "ln1_b"] = lp["ln1_b"]
        t[pre + "w1"] = lp["w1"]
        t[pre + "b1"] = lp["b1"]
        t[pre + "w2"] = lp["w2"]
        t[pre + "b2"] = lp["b2"]
        t[pre + "ln2_g"] = lp["ln2_g"]
        t[pre + "ln2_b"] = lp["ln2_b"]

    blocks = []
    for name, (off, r, c) in _SLAB_LAYOUT.items():
        a = jnp.asarray(t[name], jnp.float32).reshape(r, c)
        rp = _round_up(r, 8)
        blocks.append(jnp.pad(a, ((0, rp - r), (0, LANES - c))))
    slab = jnp.concatenate(blocks, axis=0)
    assert slab.shape == (_SLAB_ROWS, LANES)
    return slab


# ---------------- forward pass: everything (incl. embedding gather) in one pallas_call ----------------
def sentiment_classifier_forward(packed_slab, input_ids, attention_mask):
    B, S = input_ids.shape
    ids_flat = input_ids.reshape(-1).astype(jnp.int32)       # (B*S,) -> SMEM
    mask_f = attention_mask.astype(jnp.float32)               # (B, S)

    smem = pl.BlockSpec(memory_space=pltpu.MemorySpace.SMEM)
    vmem = pl.BlockSpec(memory_space=pltpu.MemorySpace.VMEM)
    logits_pad = pl.pallas_call(
        _fused_forward_kernel,
        out_shape=jax.ShapeDtypeStruct((B, OUT_PAD), jnp.float32),
        in_specs=[smem, vmem, vmem],
        out_specs=vmem,
        scratch_shapes=[pltpu.VMEM((B * S, HIDDEN), jnp.float32)],
    )(ids_flat, mask_f, packed_slab)
    return logits_pad[:, :N_CLASSES]


# ---------------- pure-JAX reference for a sanity check ----------------
def reference_forward(params, input_ids, attention_mask):
    B, S = input_ids.shape
    H, nH, Dh = HIDDEN, N_HEADS, HEAD_DIM

    def ln(h, g, b):
        mu = jnp.mean(h, axis=-1, keepdims=True)
        var = jnp.mean(jnp.square(h - mu), axis=-1, keepdims=True)
        return (h - mu) * jax.lax.rsqrt(var + LN_EPS) * g + b

    emb = (params["word_emb"][input_ids]
           + params["pos_emb"][jnp.arange(S)][None, :, :]
           + params["type_emb"][0][None, None, :])
    x = ln(emb.reshape(B * S, H), params["emb_ln_g"], params["emb_ln_b"])
    add_mask = (1.0 - attention_mask.astype(jnp.float32)) * -10000.0

    for lp in params["layers"]:
        qkv = x @ lp["wqkv"] + lp["bqkv"]
        q = qkv[:, :H].reshape(B, S, nH, Dh).transpose(0, 2, 1, 3)
        k = qkv[:, H:2 * H].reshape(B, S, nH, Dh).transpose(0, 2, 1, 3)
        v = qkv[:, 2 * H:].reshape(B, S, nH, Dh).transpose(0, 2, 1, 3)
        s = jnp.einsum("bhqd,bhkd->bhqk", q, k) / (Dh ** 0.5) + add_mask[:, None, None, :]
        p = jax.nn.softmax(s, axis=-1)
        ctx = jnp.einsum("bhqk,bhkd->bhqd", p, v).transpose(0, 2, 1, 3).reshape(B * S, H)
        x = ln(ctx @ lp["wo"] + lp["bo"] + x, lp["ln1_g"], lp["ln1_b"])
        ff = jax.nn.gelu(x @ lp["w1"] + lp["b1"], approximate=True)
        x = ln(ff @ lp["w2"] + lp["b2"] + x, lp["ln2_g"], lp["ln2_b"])

    cls = x.reshape(B, S, H)[:, 0, :]
    pooled = jnp.tanh(cls @ params["pool_w"] + params["pool_b"])
    return pooled @ params["out_w"] + params["out_b"]


if __name__ == "__main__":
    key = jax.random.PRNGKey(0)
    kp, kid = jax.random.split(key)
    params = init_params(kp)
    slab = pack_params(params)        # one-time packing into the single VMEM slab

    input_ids = jax.random.randint(kid, (BATCH, SEQ), 0, VOCAB, dtype=jnp.int32)
    # mask out the last two tokens of the second sequence
    attention_mask = jnp.array([[1, 1, 1, 1, 1, 1, 1, 1],
                                [1, 1, 1, 1, 1, 1, 0, 0]], dtype=jnp.int32)

    logits = sentiment_classifier_forward(slab, input_ids, attention_mask)
    logits = jax.block_until_ready(logits)
    assert logits.shape == (BATCH, N_CLASSES)

    ref = reference_forward(params, input_ids, attention_mask)
    # bf16 MXU operands + approx softmax reciprocal -> small (<<1e-2) absolute differences
    assert jnp.allclose(logits, ref, atol=5e-3, rtol=5e-2), (logits, ref)

    print("KERNEL_OK")
</pallas_src>

<mosaic_0001>
module attributes {stable_mosaic.version = 11 : i64} {
  func.func @_fused_forward_kernel(%arg0: memref<16xi32, #tpu.memory_space<smem>>, %arg1: memref<2x8xf32, #tpu.memory_space<vmem>>, %arg2: memref<688x128xf32, #tpu.memory_space<vmem>>, %arg3: memref<2x128xf32, #tpu.memory_space<vmem>>, %arg4: memref<16x32xf32, #tpu.memory_space<vmem>>) attributes {dimension_semantics = [], scalar_prefetch = 0 : i64, scratch_operands = 1 : i64, tpu.core_type = #tpu.core_type<tc>} {
    %c0 = arith.constant 0 : index
    %0 = memref.load %arg0[%c0] : memref<16xi32, #tpu.memory_space<smem>>
    %c0_i32 = arith.constant 0 : i32
    %1 = arith.addi %c0_i32, %0 : i32
    %2 = arith.index_cast %1 : i32 to index
    %c0_0 = arith.constant 0 : index
    %3 = vector.load %arg2[%2, %c0_0] : memref<688x128xf32, #tpu.memory_space<vmem>>, vector<1x32xf32>
    %c0_1 = arith.constant 0 : index
    %c0_2 = arith.constant 0 : index
    %4 = vector.load %arg4[%c0_1, %c0_2] : memref<16x32xf32, #tpu.memory_space<vmem>>, vector<1x32xf32>
    tpu.vector_store %arg4[%c0_1, %c0_2], %3 {strides = array<i32>} : memref<16x32xf32, #tpu.memory_space<vmem>>, vector<1x32xf32>,
    %c1 = arith.constant 1 : index
    %5 = memref.load %arg0[%c1] : memref<16xi32, #tpu.memory_space<smem>>
    %c0_i32_3 = arith.constant 0 : i32
    %6 = arith.addi %c0_i32_3, %5 : i32
    %7 = arith.index_cast %6 : i32 to index
    %c0_4 = arith.constant 0 : index
    %8 = vector.load %arg2[%7, %c0_4] : memref<688x128xf32, #tpu.memory_space<vmem>>, vector<1x32xf32>
    %c1_5 = arith.constant 1 : index
    %c0_6 = arith.constant 0 : index
    %9 = vector.load %arg4[%c1_5, %c0_6] : memref<16x32xf32, #tpu.memory_space<vmem>>, vector<1x32xf32>
    tpu.vector_store %arg4[%c1_5, %c0_6], %8 {strides = array<i32>} : memref<16x32xf32, #tpu.memory_space<vmem>>, vector<1x32xf32>,
    %c2 = arith.constant 2 : index
    %10 = memref.load %arg0[%c2] : memref<16xi32, #tpu.memory_space<smem>>
    %c0_i32_7 = arith.constant 0 : i32
    %11 = arith.addi %c0_i32_7, %10 : i32
    %12 = arith.index_cast %11 : i32 to index
    %c0_8 = arith.constant 0 : index
    %13 = vector.load %arg2[%12, %c0_8] : memref<688x128xf32, #tpu.memory_space<vmem>>, vector<1x32xf32>
    %c2_9 = arith.constant 2 : index
    %c0_10 = arith.constant 0 : index
    %14 = vector.load %arg4[%c2_9, %c0_10] : memref<16x32xf32, #tpu.memory_space<vmem>>, vector<1x32xf32>
    tpu.vector_store %arg4[%c2_9, %c0_10], %13 {strides = array<i32>} : memref<16x32xf32, #tpu.memory_space<vmem>>, vector<1x32xf32>,
    %c3 = arith.constant 3 : index
    %15 = memref.load %arg0[%c3] : memref<16xi32, #tpu.memory_space<smem>>
    %c0_i32_11 = arith.constant 0 : i32
    %16 = arith.addi %c0_i32_11, %15 : i32
    %17 = arith.index_cast %16 : i32 to index
    %c0_12 = arith.constant 0 : index
    %18 = vector.load %arg2[%17, %c0_12] : memref<688x128xf32, #tpu.memory_space<vmem>>, vector<1x32xf32>
    %c3_13 = arith.constant 3 : index
    %c0_14 = arith.constant 0 : index
    %19 = vector.load %arg4[%c3_13, %c0_14] : memref<16x32xf32, #tpu.memory_space<vmem>>, vector<1x32xf32>
    tpu.vector_store %arg4[%c3_13, %c0_14], %18 {strides = array<i32>} : memref<16x32xf32, #tpu.memory_space<vmem>>, vector<1x32xf32>,
    %c4 = arith.constant 4 : index
    %20 = memref.load %arg0[%c4] : memref<16xi32, #tpu.memory_space<smem>>
    %c0_i32_15 = arith.constant 0 : i32
    %21 = arith.addi %c0_i32_15, %20 : i32
    %22 = arith.index_cast %21 : i32 to index
    %c0_16 = arith.constant 0 : index
    %23 = vector.load %arg2[%22, %c0_16] : memref<688x128xf32, #tpu.memory_space<vmem>>, vector<1x32xf32>
    %c4_17 = arith.constant 4 : index
    %c0_18 = arith.constant 0 : index
    %24 = vector.load %arg4[%c4_17, %c0_18] : memref<16x32xf32, #tpu.memory_space<vmem>>, vector<1x32xf32>
    tpu.vector_store %arg4[%c4_17, %c0_18], %23 {strides = array<i32>} : memref<16x32xf32, #tpu.memory_space<vmem>>, vector<1x32xf32>,
    %c5 = arith.constant 5 : index
    %25 = memref.load %arg0[%c5] : memref<16xi32, #tpu.memory_space<smem>>
    %c0_i32_19 = arith.constant 0 : i32
    %26 = arith.addi %c0_i32_19, %25 : i32
    %27 = arith.index_cast %26 : i32 to index
    %c0_20 = arith.constant 0 : index
    %28 = vector.load %arg2[%27, %c0_20] : memref<688x128xf32, #tpu.memory_space<vmem>>, vector<1x32xf32>
    %c5_21 = arith.constant 5 : index
    %c0_22 = arith.constant 0 : index
    %29 = vector.load %arg4[%c5_21, %c0_22] : memref<16x32xf32, #tpu.memory_space<vmem>>, vector<1x32xf32>
    tpu.vector_store %arg4[%c5_21, %c0_22], %28 {strides = array<i32>} : memref<16x32xf32, #tpu.memory_space<vmem>>, vector<1x32xf32>,
    %c6 = arith.constant 6 : index
    %30 = memref.load %arg0[%c6] : memref<16xi32, #tpu.memory_space<smem>>
    %c0_i32_23 = arith.constant 0 : i32
    %31 = arith.addi %c0_i32_23, %30 : i32
    %32 = arith.index_cast %31 : i32 to index
    %c0_24 = arith.constant 0 : index
    %33 = vector.load %arg2[%32, %c0_24] : memref<688x128xf32, #tpu.memory_space<vmem>>, vector<1x32xf32>
    %c6_25 = arith.constant 6 : index
    %c0_26 = arith.constant 0 : index
    %34 = vector.load %arg4[%c6_25, %c0_26] : memref<16x32xf32, #tpu.memory_space<vmem>>, vector<1x32xf32>
    tpu.vector_store %arg4[%c6_25, %c0_26], %33 {strides = array<i32>} : memref<16x32xf32, #tpu.memory_space<vmem>>, vector<1x32xf32>,
    %c7 = arith.constant 7 : index
    %35 = memref.load %arg0[%c7] : memref<16xi32, #tpu.memory_space<smem>>
    %c0_i32_27 = arith.constant 0 : i32
    %36 = arith.addi %c0_i32_27, %35 : i32
    %37 = arith.index_cast %36 : i32 to index
    %c0_28 = arith.constant 0 : index
    %38 = vector.load %arg2[%37, %c0_28] : memref<688x128xf32, #tpu.memory_space<vmem>>, vector<1x32xf32>
    %c7_29 = arith.constant 7 : index
    %c0_30 = arith.constant 0 : index
    %39 = vector.load %arg4[%c7_29, %c0_30] : memref<16x32xf32, #tpu.memory_space<vmem>>, vector<1x32xf32>
    tpu.vector_store %arg4[%c7_29, %c0_30], %38 {strides = array<i32>} : memref<16x32xf32, #tpu.memory_space<vmem>>, vector<1x32xf32>,
    %c8 = arith.constant 8 : index
    %40 = memref.load %arg0[%c8] : memref<16xi32, #tpu.memory_space<smem>>
    %c0_i32_31 = arith.constant 0 : i32
    %41 = arith.addi %c0_i32_31, %40 : i32
    %42 = arith.index_cast %41 : i32 to index
    %c0_32 = arith.constant 0 : index
    %43 = vector.load %arg2[%42, %c0_32] : memref<688x128xf32, #tpu.memory_space<vmem>>, vector<1x32xf32>
    %c8_33 = arith.constant 8 : index
    %c0_34 = arith.constant 0 : index
    %44 = vector.load %arg4[%c8_33, %c0_34] : memref<16x32xf32, #tpu.memory_space<vmem>>, vector<1x32xf32>
    tpu.vector_store %arg4[%c8_33, %c0_34], %43 {strides = array<i32>} : memref<16x32xf32, #tpu.memory_space<vmem>>, vector<1x32xf32>,
    %c9 = arith.constant 9 : index
    %45 = memref.load %arg0[%c9] : memref<16xi32, #tpu.memory_space<smem>>
    %c0_i32_35 = arith.constant 0 : i32
    %46 = arith.addi %c0_i32_35, %45 : i32
    %47 = arith.index_cast %46 : i32 to index
    %c0_36 = arith.constant 0 : index
    %48 = vector.load %arg2[%47, %c0_36] : memref<688x128xf32, #tpu.memory_space<vmem>>, vector<1x32xf32>
    %c9_37 = arith.constant 9 : index
    %c0_38 = arith.constant 0 : index
    %49 = vector.load %arg4[%c9_37, %c0_38] : memref<16x32xf32, #tpu.memory_space<vmem>>, vector<1x32xf32>
    tpu.vector_store %arg4[%c9_37, %c0_38], %48 {strides = array<i32>} : memref<16x32xf32, #tpu.memory_space<vmem>>, vector<1x32xf32>,
    %c10 = arith.constant 10 : index
    %50 = memref.load %arg0[%c10] : memref<16xi32, #tpu.memory_space<smem>>
    %c0_i32_39 = arith.constant 0 : i32
    %51 = arith.addi %c0_i32_39, %50 : i32
    %52 = arith.index_cast %51 : i32 to index
    %c0_40 = arith.constant 0 : index
    %53 = vector.load %arg2[%52, %c0_40] : memref<688x128xf32, #tpu.memory_space<vmem>>, vector<1x32xf32>
    %c10_41 = arith.constant 10 : index
    %c0_42 = arith.constant 0 : index
    %54 = vector.load %arg4[%c10_41, %c0_42] : memref<16x32xf32, #tpu.memory_space<vmem>>, vector<1x32xf32>
    tpu.vector_store %arg4[%c10_41, %c0_42], %53 {strides = array<i32>} : memref<16x32xf32, #tpu.memory_space<vmem>>, vector<1x32xf32>,
    %c11 = arith.constant 11 : index
    %55 = memref.load %arg0[%c11] : memref<16xi32, #tpu.memory_space<smem>>
    %c0_i32_43 = arith.constant 0 : i32
    %56 = arith.addi %c0_i32_43, %55 : i32
    %57 = arith.index_cast %56 : i32 to index
    %c0_44 = arith.constant 0 : index
    %58 = vector.load %arg2[%57, %c0_44] : memref<688x128xf32, #tpu.memory_space<vmem>>, vector<1x32xf32>
    %c11_45 = arith.constant 11 : index
    %c0_46 = arith.constant 0 : index
    %59 = vector.load %arg4[%c11_45, %c0_46] : memref<16x32xf32, #tpu.memory_space<vmem>>, vector<1x32xf32>
    tpu.vector_store %arg4[%c11_45, %c0_46], %58 {strides = array<i32>} : memref<16x32xf32, #tpu.memory_space<vmem>>, vector<1x32xf32>,
    %c12 = arith.constant 12 : index
    %60 = memref.load %arg0[%c12] : memref<16xi32, #tpu.memory_space<smem>>
    %c0_i32_47 = arith.constant 0 : i32
    %61 = arith.addi %c0_i32_47, %60 : i32
    %62 = arith.index_cast %61 : i32 to index
    %c0_48 = arith.constant 0 : index
    %63 = vector.load %arg2[%62, %c0_48] : memref<688x128xf32, #tpu.memory_space<vmem>>, vector<1x32xf32>
    %c12_49 = arith.constant 12 : index
    %c0_50 = arith.constant 0 : index
    %64 = vector.load %arg4[%c12_49, %c0_50] : memref<16x32xf32, #tpu.memory_space<vmem>>, vector<1x32xf32>
    tpu.vector_store %arg4[%c12_49, %c0_50], %63 {strides = array<i32>} : memref<16x32xf32, #tpu.memory_space<vmem>>, vector<1x32xf32>,
    %c13 = arith.constant 13 : index
    %65 = memref.load %arg0[%c13] : memref<16xi32, #tpu.memory_space<smem>>
    %c0_i32_51 = arith.constant 0 : i32
    %66 = arith.addi %c0_i32_51, %65 : i32
    %67 = arith.index_cast %66 : i32 to index
    %c0_52 = arith.constant 0 : index
    %68 = vector.load %arg2[%67, %c0_52] : memref<688x128xf32, #tpu.memory_space<vmem>>, vector<1x32xf32>
    %c13_53 = arith.constant 13 : index
    %c0_54 = arith.constant 0 : index
    %69 = vector.load %arg4[%c13_53, %c0_54] : memref<16x32xf32, #tpu.memory_space<vmem>>, vector<1x32xf32>
    tpu.vector_store %arg4[%c13_53, %c0_54], %68 {strides = array<i32>} : memref<16x32xf32, #tpu.memory_space<vmem>>, vector<1x32xf32>,
    %c14 = arith.constant 14 : index
    %70 = memref.load %arg0[%c14] : memref<16xi32, #tpu.memory_space<smem>>
    %c0_i32_55 = arith.constant 0 : i32
    %71 = arith.addi %c0_i32_55, %70 : i32
    %72 = arith.index_cast %71 : i32 to index
    %c0_56 = arith.constant 0 : index
    %73 = vector.load %arg2[%72, %c0_56] : memref<688x128xf32, #tpu.memory_space<vmem>>, vector<1x32xf32>
    %c14_57 = arith.constant 14 : index
    %c0_58 = arith.constant 0 : index
    %74 = vector.load %arg4[%c14_57, %c0_58] : memref<16x32xf32, #tpu.memory_space<vmem>>, vector<1x32xf32>
    tpu.vector_store %arg4[%c14_57, %c0_58], %73 {strides = array<i32>} : memref<16x32xf32, #tpu.memory_space<vmem>>, vector<1x32xf32>,
    %c15 = arith.constant 15 : index
    %75 = memref.load %arg0[%c15] : memref<16xi32, #tpu.memory_space<smem>>
    %c0_i32_59 = arith.constant 0 : i32
    %76 = arith.addi %c0_i32_59, %75 : i32
    %77 = arith.index_cast %76 : i32 to index
    %c0_60 = arith.constant 0 : index
    %78 = vector.load %arg2[%77, %c0_60] : memref<688x128xf32, #tpu.memory_space<vmem>>, vector<1x32xf32>
    %c15_61 = arith.constant 15 : index
    %c0_62 = arith.constant 0 : index
    %79 = vector.load %arg4[%c15_61, %c0_62] : memref<16x32xf32, #tpu.memory_space<vmem>>, vector<1x32xf32>
    tpu.vector_store %arg4[%c15_61, %c0_62], %78 {strides = array<i32>} : memref<16x32xf32, #tpu.memory_space<vmem>>, vector<1x32xf32>,
    %c128 = arith.constant 128 : index
    %c0_63 = arith.constant 0 : index
    %80 = vector.load %arg2[%c128, %c0_63] : memref<688x128xf32, #tpu.memory_space<vmem>>, vector<8x32xf32>
    %c136 = arith.constant 136 : index
    %c0_64 = arith.constant 0 : index
    %81 = vector.load %arg2[%c136, %c0_64] : memref<688x128xf32, #tpu.memory_space<vmem>>, vector<1x32xf32>
    %82 = vector.broadcast %81 : vector<1x32xf32> to vector<8x32xf32>
    %83 = arith.addf %80, %82 : vector<8x32xf32>
    %c0_65 = arith.constant 0 : index
    %c0_66 = arith.constant 0 : index
    %84 = vector.load %arg4[%c0_65, %c0_66] : memref<16x32xf32, #tpu.memory_space<vmem>>, vector<16x32xf32>
    %85 = tpu.concatenate %83, %83 in 0 : vector<8x32xf32>, vector<8x32xf32> -> vector<16x32xf32>
    %86 = arith.addf %84, %85 : vector<16x32xf32>
    %c144 = arith.constant 144 : index
    %c0_67 = arith.constant 0 : index
    %87 = vector.load %arg2[%c144, %c0_67] : memref<688x128xf32, #tpu.memory_space<vmem>>, vector<1x32xf32>
    %c152 = arith.constant 152 : index
    %c0_68 = arith.constant 0 : index
    %88 = vector.load %arg2[%c152, %c0_68] : memref<688x128xf32, #tpu.memory_space<vmem>>, vector<1x32xf32>
    %cst = arith.constant dense<0.000000e+00> : vector<16xf32>
    %89 = vector.multi_reduction <add>, %86, %cst [1] : vector<16x32xf32> to vector<16xf32>
    %90 = vector.shape_cast %89 : vector<16xf32> to vector<16x1xf32>
    %cst_69 = arith.constant 3.200000e+01 : f32
    %91 = vector.broadcast %cst_69 : f32 to vector<16x1xf32>
    %92 = arith.divf %90, %91 : vector<16x1xf32>
    %93 = vector.broadcast %92 : vector<16x1xf32> to vector<16x32xf32>
    %94 = arith.subf %86, %93 : vector<16x32xf32>
    %95 = arith.mulf %94, %94 : vector<16x32xf32>
    %cst_70 = arith.constant dense<0.000000e+00> : vector<16xf32>
    %96 = vector.multi_reduction <add>, %95, %cst_70 [1] : vector<16x32xf32> to vector<16xf32>
    %97 = vector.shape_cast %96 : vector<16xf32> to vector<16x1xf32>
    %cst_71 = arith.constant 3.200000e+01 : f32
    %98 = vector.broadcast %cst_71 : f32 to vector<16x1xf32>
    %99 = arith.divf %97, %98 : vector<16x1xf32>
    %100 = vector.broadcast %92 : vector<16x1xf32> to vector<16x32xf32>
    %101 = arith.subf %86, %100 : vector<16x32xf32>
    %cst_72 = arith.constant 9.99999996E-13 : f32
    %102 = vector.broadcast %cst_72 : f32 to vector<16x1xf32>
    %103 = arith.addf %99, %102 : vector<16x1xf32>
    %104 = math.rsqrt %103 : vector<16x1xf32>
    %105 = vector.broadcast %104 : vector<16x1xf32> to vector<16x32xf32>
    %106 = arith.mulf %101, %105 : vector<16x32xf32>
    %107 = vector.broadcast %87 : vector<1x32xf32> to vector<16x32xf32>
    %108 = arith.mulf %106, %107 : vector<16x32xf32>
    %109 = vector.broadcast %88 : vector<1x32xf32> to vector<16x32xf32>
    %110 = arith.addf %108, %109 : vector<16x32xf32>
    %c0_73 = arith.constant 0 : index
    %c0_74 = arith.constant 0 : index
    %111 = vector.load %arg1[%c0_73, %c0_74] : memref<2x8xf32, #tpu.memory_space<vmem>>, vector<2x8xf32>
    %cst_75 = arith.constant 1.000000e+00 : f32
    %112 = vector.broadcast %cst_75 : f32 to vector<2x8xf32>
    %113 = arith.subf %112, %111 : vector<2x8xf32>
    %cst_76 = arith.constant -1.000000e+04 : f32
    %114 = vector.broadcast %cst_76 : f32 to vector<2x8xf32>
    %115 = arith.mulf %113, %114 : vector<2x8xf32>
    %116 = vector.extract_strided_slice %115 {offsets = [0, 0], sizes = [1, 8], strides = [1, 1]} : vector<2x8xf32> to vector<1x8xf32>
    %117 = vector.shape_cast %116 : vector<1x8xf32> to vector<1x8xf32>
    %118 = vector.broadcast %117 : vector<1x8xf32> to vector<8x8xf32>
    %119 = vector.extract_strided_slice %115 {offsets = [1, 0], sizes = [1, 8], strides = [1, 1]} : vector<2x8xf32> to vector<1x8xf32>
    %120 = vector.shape_cast %119 : vector<1x8xf32> to vector<1x8xf32>
    %121 = vector.broadcast %120 : vector<1x8xf32> to vector<8x8xf32>
    %122 = arith.truncf %110 : vector<16x32xf32> to vector<16x32xbf16>
    %c160 = arith.constant 160 : index
    %c0_77 = arith.constant 0 : index
    %123 = vector.load %arg2[%c160, %c0_77] : memref<688x128xf32, #tpu.memory_space<vmem>>, vector<32x96xf32>
    %124 = arith.truncf %123 : vector<32x96xf32> to vector<32x96xbf16>
    %cst_78 = arith.constant dense<0.000000e+00> : vector<16x96xf32>
    %125 = tpu.matmul %122, %124, %cst_78 {dimension_numbers = #tpu.dot_dimension_numbers<[1], [0], [0], [1], [0, 0, 1, 1], [], []>} : vector<16x32xbf16>, vector<32x96xbf16>, vector<16x96xf32> -> vector<16x96xf32>
    %c192 = arith.constant 192 : index
    %c0_79 = arith.constant 0 : index
    %126 = vector.load %arg2[%c192, %c0_79] : memref<688x128xf32, #tpu.memory_space<vmem>>, vector<1x96xf32>
    %127 = vector.broadcast %126 : vector<1x96xf32> to vector<16x96xf32>
    %128 = arith.addf %125, %127 : vector<16x96xf32>
    %c200 = arith.constant 200 : index
    %c0_80 = arith.constant 0 : index
    %129 = vector.load %arg2[%c200, %c0_80] : memref<688x128xf32, #tpu.memory_space<vmem>>, vector<32x32xf32>
    %130 = arith.truncf %129 : vector<32x32xf32> to vector<32x32xbf16>
    %131 = vector.extract_strided_slice %128 {offsets = [0, 0], sizes = [8, 16], strides = [1, 1]} : vector<16x96xf32> to vector<8x16xf32>
    %132 = arith.truncf %131 : vector<8x16xf32> to vector<8x16xbf16>
    %133 = vector.extract_strided_slice %128 {offsets = [0, 16], sizes = [8, 16], strides = [1, 1]} : vector<16x96xf32> to vector<8x16xf32>
    %134 = arith.truncf %133 : vector<8x16xf32> to vector<8x16xbf16>
    %135 = vector.extract_strided_slice %128 {offsets = [0, 32], sizes = [8, 16], strides = [1, 1]} : vector<16x96xf32> to vector<8x16xf32>
    %136 = arith.truncf %135 : vector<8x16xf32> to vector<8x16xbf16>
    %cst_81 = arith.constant dense<0.000000e+00> : vector<8x8xf32>
    %137 = tpu.matmul %132, %134, %cst_81 {dimension_numbers = #tpu.dot_dimension_numbers<[1], [1], [0], [0], [0, 0, 1, 0], [], []>} : vector<8x16xbf16>, vector<8x16xbf16>, vector<8x8xf32> -> vector<8x8xf32>
    %cst_82 = arith.constant 2.500000e-01 : f32
    %138 = vector.broadcast %cst_82 : f32 to vector<8x8xf32>
    %139 = arith.mulf %137, %138 : vector<8x8xf32>
    %140 = arith.addf %139, %118 : vector<8x8xf32>
    %cst_83 = arith.constant dense<0xFF800000> : vector<8xf32>
    %141 = vector.multi_reduction <maximumf>, %140, %cst_83 [1] : vector<8x8xf32> to vector<8xf32>
    %142 = vector.shape_cast %141 : vector<8xf32> to vector<8x1xf32>
    %143 = vector.broadcast %142 : vector<8x1xf32> to vector<8x8xf32>
    %144 = arith.subf %140, %143 : vector<8x8xf32>
    %145 = math.exp %144 : vector<8x8xf32>
    %cst_84 = arith.constant dense<0.000000e+00> : vector<8xf32>
    %146 = vector.multi_reduction <add>, %145, %cst_84 [1] : vector<8x8xf32> to vector<8xf32>
    %147 = vector.shape_cast %146 : vector<8xf32> to vector<8x1xf32>
    %148 = tpu.reciprocal %147 {approx = true} : vector<8x1xf32> -> vector<8x1xf32>
    %149 = vector.broadcast %148 : vector<8x1xf32> to vector<8x8xf32>
    %150 = arith.mulf %145, %149 : vector<8x8xf32>
    %151 = arith.truncf %150 : vector<8x8xf32> to vector<8x8xbf16>
    %cst_85 = arith.constant dense<0.000000e+00> : vector<8x16xf32>
    %152 = tpu.matmul %151, %136, %cst_85 {dimension_numbers = #tpu.dot_dimension_numbers<[1], [0], [0], [1], [0, 0, 1, 1], [], []>} : vector<8x8xbf16>, vector<8x16xbf16>, vector<8x16xf32> -> vector<8x16xf32>
    %153 = arith.truncf %152 : vector<8x16xf32> to vector<8x16xbf16>
    %154 = vector.extract_strided_slice %130 {offsets = [0, 0], sizes = [16, 32], strides = [1, 1]} : vector<32x32xbf16> to vector<16x32xbf16>
    %cst_86 = arith.constant dense<0.000000e+00> : vector<8x32xf32>
    %155 = tpu.matmul %153, %154, %cst_86 {dimension_numbers = #tpu.dot_dimension_numbers<[1], [0], [0], [1], [0, 0, 1, 1], [], []>} : vector<8x16xbf16>, vector<16x32xbf16>, vector<8x32xf32> -> vector<8x32xf32>
    %156 = vector.extract_strided_slice %128 {offsets = [0, 48], sizes = [8, 16], strides = [1, 1]} : vector<16x96xf32> to vector<8x16xf32>
    %157 = arith.truncf %156 : vector<8x16xf32> to vector<8x16xbf16>
    %158 = vector.extract_strided_slice %128 {offsets = [0, 64], sizes = [8, 16], strides = [1, 1]} : vector<16x96xf32> to vector<8x16xf32>
    %159 = arith.truncf %158 : vector<8x16xf32> to vector<8x16xbf16>
    %160 = vector.extract_strided_slice %128 {offsets = [0, 80], sizes = [8, 16], strides = [1, 1]} : vector<16x96xf32> to vector<8x16xf32>
    %161 = arith.truncf %160 : vector<8x16xf32> to vector<8x16xbf16>
    %cst_87 = arith.constant dense<0.000000e+00> : vector<8x8xf32>
    %162 = tpu.matmul %157, %159, %cst_87 {dimension_numbers = #tpu.dot_dimension_numbers<[1], [1], [0], [0], [0, 0, 1, 0], [], []>} : vector<8x16xbf16>, vector<8x16xbf16>, vector<8x8xf32> -> vector<8x8xf32>
    %cst_88 = arith.constant 2.500000e-01 : f32
    %163 = vector.broadcast %cst_88 : f32 to vector<8x8xf32>
    %164 = arith.mulf %162, %163 : vector<8x8xf32>
    %165 = arith.addf %164, %118 : vector<8x8xf32>
    %cst_89 = arith.constant dense<0xFF800000> : vector<8xf32>
    %166 = vector.multi_reduction <maximumf>, %165, %cst_89 [1] : vector<8x8xf32> to vector<8xf32>
    %167 = vector.shape_cast %166 : vector<8xf32> to vector<8x1xf32>
    %168 = vector.broadcast %167 : vector<8x1xf32> to vector<8x8xf32>
    %169 = arith.subf %165, %168 : vector<8x8xf32>
    %170 = math.exp %169 : vector<8x8xf32>
    %cst_90 = arith.constant dense<0.000000e+00> : vector<8xf32>
    %171 = vector.multi_reduction <add>, %170, %cst_90 [1] : vector<8x8xf32> to vector<8xf32>
    %172 = vector.shape_cast %171 : vector<8xf32> to vector<8x1xf32>
    %173 = tpu.reciprocal %172 {approx = true} : vector<8x1xf32> -> vector<8x1xf32>
    %174 = vector.broadcast %173 : vector<8x1xf32> to vector<8x8xf32>
    %175 = arith.mulf %170, %174 : vector<8x8xf32>
    %176 = arith.truncf %175 : vector<8x8xf32> to vector<8x8xbf16>
    %cst_91 = arith.constant dense<0.000000e+00> : vector<8x16xf32>
    %177 = tpu.matmul %176, %161, %cst_91 {dimension_numbers = #tpu.dot_dimension_numbers<[1], [0], [0], [1], [0, 0, 1, 1], [], []>} : vector<8x8xbf16>, vector<8x16xbf16>, vector<8x16xf32> -> vector<8x16xf32>
    %178 = arith.truncf %177 : vector<8x16xf32> to vector<8x16xbf16>
    %179 = vector.extract_strided_slice %130 {offsets = [16, 0], sizes = [16, 32], strides = [1, 1]} : vector<32x32xbf16> to vector<16x32xbf16>
    %cst_92 = arith.constant dense<0.000000e+00> : vector<8x32xf32>
    %180 = tpu.matmul %178, %179, %cst_92 {dimension_numbers = #tpu.dot_dimension_numbers<[1], [0], [0], [1], [0, 0, 1, 1], [], []>} : vector<8x16xbf16>, vector<16x32xbf16>, vector<8x32xf32> -> vector<8x32xf32>
    %181 = arith.addf %155, %180 : vector<8x32xf32>
    %182 = vector.extract_strided_slice %128 {offsets = [8, 0], sizes = [8, 16], strides = [1, 1]} : vector<16x96xf32> to vector<8x16xf32>
    %183 = arith.truncf %182 : vector<8x16xf32> to vector<8x16xbf16>
    %184 = vector.extract_strided_slice %128 {offsets = [8, 16], sizes = [8, 16], strides = [1, 1]} : vector<16x96xf32> to vector<8x16xf32>
    %185 = arith.truncf %184 : vector<8x16xf32> to vector<8x16xbf16>
    %186 = vector.extract_strided_slice %128 {offsets = [8, 32], sizes = [8, 16], strides = [1, 1]} : vector<16x96xf32> to vector<8x16xf32>
    %187 = arith.truncf %186 : vector<8x16xf32> to vector<8x16xbf16>
    %cst_93 = arith.constant dense<0.000000e+00> : vector<8x8xf32>
    %188 = tpu.matmul %183, %185, %cst_93 {dimension_numbers = #tpu.dot_dimension_numbers<[1], [1], [0], [0], [0, 0, 1, 0], [], []>} : vector<8x16xbf16>, vector<8x16xbf16>, vector<8x8xf32> -> vector<8x8xf32>
    %cst_94 = arith.constant 2.500000e-01 : f32
    %189 = vector.broadcast %cst_94 : f32 to vector<8x8xf32>
    %190 = arith.mulf %188, %189 : vector<8x8xf32>
    %191 = arith.addf %190, %121 : vector<8x8xf32>
    %cst_95 = arith.constant dense<0xFF800000> : vector<8xf32>
    %192 = vector.multi_reduction <maximumf>, %191, %cst_95 [1] : vector<8x8xf32> to vector<8xf32>
    %193 = vector.shape_cast %192 : vector<8xf32> to vector<8x1xf32>
    %194 = vector.broadcast %193 : vector<8x1xf32> to vector<8x8xf32>
    %195 = arith.subf %191, %194 : vector<8x8xf32>
    %196 = math.exp %195 : vector<8x8xf32>
    %cst_96 = arith.constant dense<0.000000e+00> : vector<8xf32>
    %197 = vector.multi_reduction <add>, %196, %cst_96 [1] : vector<8x8xf32> to vector<8xf32>
    %198 = vector.shape_cast %197 : vector<8xf32> to vector<8x1xf32>
    %199 = tpu.reciprocal %198 {approx = true} : vector<8x1xf32> -> vector<8x1xf32>
    %200 = vector.broadcast %199 : vector<8x1xf32> to vector<8x8xf32>
    %201 = arith.mulf %196, %200 : vector<8x8xf32>
    %202 = arith.truncf %201 : vector<8x8xf32> to vector<8x8xbf16>
    %cst_97 = arith.constant dense<0.000000e+00> : vector<8x16xf32>
    %203 = tpu.matmul %202, %187, %cst_97 {dimension_numbers = #tpu.dot_dimension_numbers<[1], [0], [0], [1], [0, 0, 1, 1], [], []>} : vector<8x8xbf16>, vector<8x16xbf16>, vector<8x16xf32> -> vector<8x16xf32>
    %204 = arith.truncf %203 : vector<8x16xf32> to vector<8x16xbf16>
    %205 = vector.extract_strided_slice %130 {offsets = [0, 0], sizes = [16, 32], strides = [1, 1]} : vector<32x32xbf16> to vector<16x32xbf16>
    %cst_98 = arith.constant dense<0.000000e+00> : vector<8x32xf32>
    %206 = tpu.matmul %204, %205, %cst_98 {dimension_numbers = #tpu.dot_dimension_numbers<[1], [0], [0], [1], [0, 0, 1, 1], [], []>} : vector<8x16xbf16>, vector<16x32xbf16>, vector<8x32xf32> -> vector<8x32xf32>
    %207 = vector.extract_strided_slice %128 {offsets = [8, 48], sizes = [8, 16], strides = [1, 1]} : vector<16x96xf32> to vector<8x16xf32>
    %208 = arith.truncf %207 : vector<8x16xf32> to vector<8x16xbf16>
    %209 = vector.extract_strided_slice %128 {offsets = [8, 64], sizes = [8, 16], strides = [1, 1]} : vector<16x96xf32> to vector<8x16xf32>
    %210 = arith.truncf %209 : vector<8x16xf32> to vector<8x16xbf16>
    %211 = vector.extract_strided_slice %128 {offsets = [8, 80], sizes = [8, 16], strides = [1, 1]} : vector<16x96xf32> to vector<8x16xf32>
    %212 = arith.truncf %211 : vector<8x16xf32> to vector<8x16xbf16>
    %cst_99 = arith.constant dense<0.000000e+00> : vector<8x8xf32>
    %213 = tpu.matmul %208, %210, %cst_99 {dimension_numbers = #tpu.dot_dimension_numbers<[1], [1], [0], [0], [0, 0, 1, 0], [], []>} : vector<8x16xbf16>, vector<8x16xbf16>, vector<8x8xf32> -> vector<8x8xf32>
    %cst_100 = arith.constant 2.500000e-01 : f32
    %214 = vector.broadcast %cst_100 : f32 to vector<8x8xf32>
    %215 = arith.mulf %213, %214 : vector<8x8xf32>
    %216 = arith.addf %215, %121 : vector<8x8xf32>
    %cst_101 = arith.constant dense<0xFF800000> : vector<8xf32>
    %217 = vector.multi_reduction <maximumf>, %216, %cst_101 [1] : vector<8x8xf32> to vector<8xf32>
    %218 = vector.shape_cast %217 : vector<8xf32> to vector<8x1xf32>
    %219 = vector.broadcast %218 : vector<8x1xf32> to vector<8x8xf32>
    %220 = arith.subf %216, %219 : vector<8x8xf32>
    %221 = math.exp %220 : vector<8x8xf32>
    %cst_102 = arith.constant dense<0.000000e+00> : vector<8xf32>
    %222 = vector.multi_reduction <add>, %221, %cst_102 [1] : vector<8x8xf32> to vector<8xf32>
    %223 = vector.shape_cast %222 : vector<8xf32> to vector<8x1xf32>
    %224 = tpu.reciprocal %223 {approx = true} : vector<8x1xf32> -> vector<8x1xf32>
    %225 = vector.broadcast %224 : vector<8x1xf32> to vector<8x8xf32>
    %226 = arith.mulf %221, %225 : vector<8x8xf32>
    %227 = arith.truncf %226 : vector<8x8xf32> to vector<8x8xbf16>
    %cst_103 = arith.constant dense<0.000000e+00> : vector<8x16xf32>
    %228 = tpu.matmul %227, %212, %cst_103 {dimension_numbers = #tpu.dot_dimension_numbers<[1], [0], [0], [1], [0, 0, 1, 1], [], []>} : vector<8x8xbf16>, vector<8x16xbf16>, vector<8x16xf32> -> vector<8x16xf32>
    %229 = arith.truncf %228 : vector<8x16xf32> to vector<8x16xbf16>
    %230 = vector.extract_strided_slice %130 {offsets = [16, 0], sizes = [16, 32], strides = [1, 1]} : vector<32x32xbf16> to vector<16x32xbf16>
    %cst_104 = arith.constant dense<0.000000e+00> : vector<8x32xf32>
    %231 = tpu.matmul %229, %230, %cst_104 {dimension_numbers = #tpu.dot_dimension_numbers<[1], [0], [0], [1], [0, 0, 1, 1], [], []>} : vector<8x16xbf16>, vector<16x32xbf16>, vector<8x32xf32> -> vector<8x32xf32>
    %232 = arith.addf %206, %231 : vector<8x32xf32>
    %233 = tpu.concatenate %181, %232 in 0 : vector<8x32xf32>, vector<8x32xf32> -> vector<16x32xf32>
    %c232 = arith.constant 232 : index
    %c0_105 = arith.constant 0 : index
    %234 = vector.load %arg2[%c232, %c0_105] : memref<688x128xf32, #tpu.memory_space<vmem>>, vector<1x32xf32>
    %235 = vector.broadcast %234 : vector<1x32xf32> to vector<16x32xf32>
    %236 = arith.addf %233, %235 : vector<16x32xf32>
    %237 = arith.addf %236, %110 : vector<16x32xf32>
    %c240 = arith.constant 240 : index
    %c0_106 = arith.constant 0 : index
    %238 = vector.load %arg2[%c240, %c0_106] : memref<688x128xf32, #tpu.memory_space<vmem>>, vector<1x32xf32>
    %c248 = arith.constant 248 : index
    %c0_107 = arith.constant 0 : index
    %239 = vector.load %arg2[%c248, %c0_107] : memref<688x128xf32, #tpu.memory_space<vmem>>, vector<1x32xf32>
    %cst_108 = arith.constant dense<0.000000e+00> : vector<16xf32>
    %240 = vector.multi_reduction <add>, %237, %cst_108 [1] : vector<16x32xf32> to vector<16xf32>
    %241 = vector.shape_cast %240 : vector<16xf32> to vector<16x1xf32>
    %cst_109 = arith.constant 3.200000e+01 : f32
    %242 = vector.broadcast %cst_109 : f32 to vector<16x1xf32>
    %243 = arith.divf %241, %242 : vector<16x1xf32>
    %244 = vector.broadcast %243 : vector<16x1xf32> to vector<16x32xf32>
    %245 = arith.subf %237, %244 : vector<16x32xf32>
    %246 = arith.mulf %245, %245 : vector<16x32xf32>
    %cst_110 = arith.constant dense<0.000000e+00> : vector<16xf32>
    %247 = vector.multi_reduction <add>, %246, %cst_110 [1] : vector<16x32xf32> to vector<16xf32>
    %248 = vector.shape_cast %247 : vector<16xf32> to vector<16x1xf32>
    %cst_111 = arith.constant 3.200000e+01 : f32
    %249 = vector.broadcast %cst_111 : f32 to vector<16x1xf32>
    %250 = arith.divf %248, %249 : vector<16x1xf32>
    %251 = vector.broadcast %243 : vector<16x1xf32> to vector<16x32xf32>
    %252 = arith.subf %237, %251 : vector<16x32xf32>
    %cst_112 = arith.constant 9.99999996E-13 : f32
    %253 = vector.broadcast %cst_112 : f32 to vector<16x1xf32>
    %254 = arith.addf %250, %253 : vector<16x1xf32>
    %255 = math.rsqrt %254 : vector<16x1xf32>
    %256 = vector.broadcast %255 : vector<16x1xf32> to vector<16x32xf32>
    %257 = arith.mulf %252, %256 : vector<16x32xf32>
    %258 = vector.broadcast %238 : vector<1x32xf32> to vector<16x32xf32>
    %259 = arith.mulf %257, %258 : vector<16x32xf32>
    %260 = vector.broadcast %239 : vector<1x32xf32> to vector<16x32xf32>
    %261 = arith.addf %259, %260 : vector<16x32xf32>
    %262 = arith.truncf %261 : vector<16x32xf32> to vector<16x32xbf16>
    %c256 = arith.constant 256 : index
    %c0_113 = arith.constant 0 : index
    %263 = vector.load %arg2[%c256, %c0_113] : memref<688x128xf32, #tpu.memory_space<vmem>>, vector<32x64xf32>
    %264 = arith.truncf %263 : vector<32x64xf32> to vector<32x64xbf16>
    %cst_114 = arith.constant dense<0.000000e+00> : vector<16x64xf32>
    %265 = tpu.matmul %262, %264, %cst_114 {dimension_numbers = #tpu.dot_dimension_numbers<[1], [0], [0], [1], [0, 0, 1, 1], [], []>} : vector<16x32xbf16>, vector<32x64xbf16>, vector<16x64xf32> -> vector<16x64xf32>
    %c288 = arith.constant 288 : index
    %c0_115 = arith.constant 0 : index
    %266 = vector.load %arg2[%c288, %c0_115] : memref<688x128xf32, #tpu.memory_space<vmem>>, vector<1x64xf32>
    %267 = vector.broadcast %266 : vector<1x64xf32> to vector<16x64xf32>
    %268 = arith.addf %265, %267 : vector<16x64xf32>
    %269 = arith.mulf %268, %268 : vector<16x64xf32>
    %270 = arith.mulf %268, %269 : vector<16x64xf32>
    %cst_116 = arith.constant 4.471500e-02 : f32
    %271 = vector.broadcast %cst_116 : f32 to vector<16x64xf32>
    %272 = arith.mulf %271, %270 : vector<16x64xf32>
    %273 = arith.addf %268, %272 : vector<16x64xf32>
    %cst_117 = arith.constant 0.797884583 : f32
    %274 = vector.broadcast %cst_117 : f32 to vector<16x64xf32>
    %275 = arith.mulf %274, %273 : vector<16x64xf32>
    %276 = math.tanh %275 : vector<16x64xf32>
    %cst_118 = arith.constant 1.000000e+00 : f32
    %277 = vector.broadcast %cst_118 : f32 to vector<16x64xf32>
    %278 = arith.addf %277, %276 : vector<16x64xf32>
    %cst_119 = arith.constant 5.000000e-01 : f32
    %279 = vector.broadcast %cst_119 : f32 to vector<16x64xf32>
    %280 = arith.mulf %279, %278 : vector<16x64xf32>
    %281 = arith.mulf %268, %280 : vector<16x64xf32>
    %282 = arith.truncf %281 : vector<16x64xf32> to vector<16x64xbf16>
    %c296 = arith.constant 296 : index
    %c0_120 = arith.constant 0 : index
    %283 = vector.load %arg2[%c296, %c0_120] : memref<688x128xf32, #tpu.memory_space<vmem>>, vector<64x32xf32>
    %284 = arith.truncf %283 : vector<64x32xf32> to vector<64x32xbf16>
    %cst_121 = arith.constant dense<0.000000e+00> : vector<16x32xf32>
    %285 = tpu.matmul %282, %284, %cst_121 {dimension_numbers = #tpu.dot_dimension_numbers<[1], [0], [0], [1], [0, 0, 1, 1], [], []>} : vector<16x64xbf16>, vector<64x32xbf16>, vector<16x32xf32> -> vector<16x32xf32>
    %c360 = arith.constant 360 : index
    %c0_122 = arith.constant 0 : index
    %286 = vector.load %arg2[%c360, %c0_122] : memref<688x128xf32, #tpu.memory_space<vmem>>, vector<1x32xf32>
    %287 = vector.broadcast %286 : vector<1x32xf32> to vector<16x32xf32>
    %288 = arith.addf %285, %287 : vector<16x32xf32>
    %289 = arith.addf %288, %261 : vector<16x32xf32>
    %c368 = arith.constant 368 : index
    %c0_123 = arith.constant 0 : index
    %290 = vector.load %arg2[%c368, %c0_123] : memref<688x128xf32, #tpu.memory_space<vmem>>, vector<1x32xf32>
    %c376 = arith.constant 376 : index
    %c0_124 = arith.constant 0 : index
    %291 = vector.load %arg2[%c376, %c0_124] : memref<688x128xf32, #tpu.memory_space<vmem>>, vector<1x32xf32>
    %cst_125 = arith.constant dense<0.000000e+00> : vector<16xf32>
    %292 = vector.multi_reduction <add>, %289, %cst_125 [1] : vector<16x32xf32> to vector<16xf32>
    %293 = vector.shape_cast %292 : vector<16xf32> to vector<16x1xf32>
    %cst_126 = arith.constant 3.200000e+01 : f32
    %294 = vector.broadcast %cst_126 : f32 to vector<16x1xf32>
    %295 = arith.divf %293, %294 : vector<16x1xf32>
    %296 = vector.broadcast %295 : vector<16x1xf32> to vector<16x32xf32>
    %297 = arith.subf %289, %296 : vector<16x32xf32>
    %298 = arith.mulf %297, %297 : vector<16x32xf32>
    %cst_127 = arith.constant dense<0.000000e+00> : vector<16xf32>
    %299 = vector.multi_reduction <add>, %298, %cst_127 [1] : vector<16x32xf32> to vector<16xf32>
    %300 = vector.shape_cast %299 : vector<16xf32> to vector<16x1xf32>
    %cst_128 = arith.constant 3.200000e+01 : f32
    %301 = vector.broadcast %cst_128 : f32 to vector<16x1xf32>
    %302 = arith.divf %300, %301 : vector<16x1xf32>
    %303 = vector.broadcast %295 : vector<16x1xf32> to vector<16x32xf32>
    %304 = arith.subf %289, %303 : vector<16x32xf32>
    %cst_129 = arith.constant 9.99999996E-13 : f32
    %305 = vector.broadcast %cst_129 : f32 to vector<16x1xf32>
    %306 = arith.addf %302, %305 : vector<16x1xf32>
    %307 = math.rsqrt %306 : vector<16x1xf32>
    %308 = vector.broadcast %307 : vector<16x1xf32> to vector<16x32xf32>
    %309 = arith.mulf %304, %308 : vector<16x32xf32>
    %310 = vector.broadcast %290 : vector<1x32xf32> to vector<16x32xf32>
    %311 = arith.mulf %309, %310 : vector<16x32xf32>
    %312 = vector.broadcast %291 : vector<1x32xf32> to vector<16x32xf32>
    %313 = arith.addf %311, %312 : vector<16x32xf32>
    %314 = arith.truncf %313 : vector<16x32xf32> to vector<16x32xbf16>
    %c384 = arith.constant 384 : index
    %c0_130 = arith.constant 0 : index
    %315 = vector.load %arg2[%c384, %c0_130] : memref<688x128xf32, #tpu.memory_space<vmem>>, vector<32x96xf32>
    %316 = arith.truncf %315 : vector<32x96xf32> to vector<32x96xbf16>
    %cst_131 = arith.constant dense<0.000000e+00> : vector<16x96xf32>
    %317 = tpu.matmul %314, %316, %cst_131 {dimension_numbers = #tpu.dot_dimension_numbers<[1], [0], [0], [1], [0, 0, 1, 1], [], []>} : vector<16x32xbf16>, vector<32x96xbf16>, vector<16x96xf32> -> vector<16x96xf32>
    %c416 = arith.constant 416 : index
    %c0_132 = arith.constant 0 : index
    %318 = vector.load %arg2[%c416, %c0_132] : memref<688x128xf32, #tpu.memory_space<vmem>>, vector<1x96xf32>
    %319 = vector.broadcast %318 : vector<1x96xf32> to vector<16x96xf32>
    %320 = arith.addf %317, %319 : vector<16x96xf32>
    %c424 = arith.constant 424 : index
    %c0_133 = arith.constant 0 : index
    %321 = vector.load %arg2[%c424, %c0_133] : memref<688x128xf32, #tpu.memory_space<vmem>>, vector<32x32xf32>
    %322 = arith.truncf %321 : vector<32x32xf32> to vector<32x32xbf16>
    %323 = vector.extract_strided_slice %320 {offsets = [0, 0], sizes = [8, 16], strides = [1, 1]} : vector<16x96xf32> to vector<8x16xf32>
    %324 = arith.truncf %323 : vector<8x16xf32> to vector<8x16xbf16>
    %325 = vector.extract_strided_slice %320 {offsets = [0, 16], sizes = [8, 16], strides = [1, 1]} : vector<16x96xf32> to vector<8x16xf32>
    %326 = arith.truncf %325 : vector<8x16xf32> to vector<8x16xbf16>
    %327 = vector.extract_strided_slice %320 {offsets = [0, 32], sizes = [8, 16], strides = [1, 1]} : vector<16x96xf32> to vector<8x16xf32>
    %328 = arith.truncf %327 : vector<8x16xf32> to vector<8x16xbf16>
    %cst_134 = arith.constant dense<0.000000e+00> : vector<8x8xf32>
    %329 = tpu.matmul %324, %326, %cst_134 {dimension_numbers = #tpu.dot_dimension_numbers<[1], [1], [0], [0], [0, 0, 1, 0], [], []>} : vector<8x16xbf16>, vector<8x16xbf16>, vector<8x8xf32> -> vector<8x8xf32>
    %cst_135 = arith.constant 2.500000e-01 : f32
    %330 = vector.broadcast %cst_135 : f32 to vector<8x8xf32>
    %331 = arith.mulf %329, %330 : vector<8x8xf32>
    %332 = arith.addf %331, %118 : vector<8x8xf32>
    %cst_136 = arith.constant dense<0xFF800000> : vector<8xf32>
    %333 = vector.multi_reduction <maximumf>, %332, %cst_136 [1] : vector<8x8xf32> to vector<8xf32>
    %334 = vector.shape_cast %333 : vector<8xf32> to vector<8x1xf32>
    %335 = vector.broadcast %334 : vector<8x1xf32> to vector<8x8xf32>
    %336 = arith.subf %332, %335 : vector<8x8xf32>
    %337 = math.exp %336 : vector<8x8xf32>
    %cst_137 = arith.constant dense<0.000000e+00> : vector<8xf32>
    %338 = vector.multi_reduction <add>, %337, %cst_137 [1] : vector<8x8xf32> to vector<8xf32>
    %339 = vector.shape_cast %338 : vector<8xf32> to vector<8x1xf32>
    %340 = tpu.reciprocal %339 {approx = true} : vector<8x1xf32> -> vector<8x1xf32>
    %341 = vector.broadcast %340 : vector<8x1xf32> to vector<8x8xf32>
    %342 = arith.mulf %337, %341 : vector<8x8xf32>
    %343 = arith.truncf %342 : vector<8x8xf32> to vector<8x8xbf16>
    %cst_138 = arith.constant dense<0.000000e+00> : vector<8x16xf32>
    %344 = tpu.matmul %343, %328, %cst_138 {dimension_numbers = #tpu.dot_dimension_numbers<[1], [0], [0], [1], [0, 0, 1, 1], [], []>} : vector<8x8xbf16>, vector<8x16xbf16>, vector<8x16xf32> -> vector<8x16xf32>
    %345 = arith.truncf %344 : vector<8x16xf32> to vector<8x16xbf16>
    %346 = vector.extract_strided_slice %322 {offsets = [0, 0], sizes = [16, 32], strides = [1, 1]} : vector<32x32xbf16> to vector<16x32xbf16>
    %cst_139 = arith.constant dense<0.000000e+00> : vector<8x32xf32>
    %347 = tpu.matmul %345, %346, %cst_139 {dimension_numbers = #tpu.dot_dimension_numbers<[1], [0], [0], [1], [0, 0, 1, 1], [], []>} : vector<8x16xbf16>, vector<16x32xbf16>, vector<8x32xf32> -> vector<8x32xf32>
    %348 = vector.extract_strided_slice %320 {offsets = [0, 48], sizes = [8, 16], strides = [1, 1]} : vector<16x96xf32> to vector<8x16xf32>
    %349 = arith.truncf %348 : vector<8x16xf32> to vector<8x16xbf16>
    %350 = vector.extract_strided_slice %320 {offsets = [0, 64], sizes = [8, 16], strides = [1, 1]} : vector<16x96xf32> to vector<8x16xf32>
    %351 = arith.truncf %350 : vector<8x16xf32> to vector<8x16xbf16>
    %352 = vector.extract_strided_slice %320 {offsets = [0, 80], sizes = [8, 16], strides = [1, 1]} : vector<16x96xf32> to vector<8x16xf32>
    %353 = arith.truncf %352 : vector<8x16xf32> to vector<8x16xbf16>
    %cst_140 = arith.constant dense<0.000000e+00> : vector<8x8xf32>
    %354 = tpu.matmul %349, %351, %cst_140 {dimension_numbers = #tpu.dot_dimension_numbers<[1], [1], [0], [0], [0, 0, 1, 0], [], []>} : vector<8x16xbf16>, vector<8x16xbf16>, vector<8x8xf32> -> vector<8x8xf32>
    %cst_141 = arith.constant 2.500000e-01 : f32
    %355 = vector.broadcast %cst_141 : f32 to vector<8x8xf32>
    %356 = arith.mulf %354, %355 : vector<8x8xf32>
    %357 = arith.addf %356, %118 : vector<8x8xf32>
    %cst_142 = arith.constant dense<0xFF800000> : vector<8xf32>
    %358 = vector.multi_reduction <maximumf>, %357, %cst_142 [1] : vector<8x8xf32> to vector<8xf32>
    %359 = vector.shape_cast %358 : vector<8xf32> to vector<8x1xf32>
    %360 = vector.broadcast %359 : vector<8x1xf32> to vector<8x8xf32>
    %361 = arith.subf %357, %360 : vector<8x8xf32>
    %362 = math.exp %361 : vector<8x8xf32>
    %cst_143 = arith.constant dense<0.000000e+00> : vector<8xf32>
    %363 = vector.multi_reduction <add>, %362, %cst_143 [1] : vector<8x8xf32> to vector<8xf32>
    %364 = vector.shape_cast %363 : vector<8xf32> to vector<8x1xf32>
    %365 = tpu.reciprocal %364 {approx = true} : vector<8x1xf32> -> vector<8x1xf32>
    %366 = vector.broadcast %365 : vector<8x1xf32> to vector<8x8xf32>
    %367 = arith.mulf %362, %366 : vector<8x8xf32>
    %368 = arith.truncf %367 : vector<8x8xf32> to vector<8x8xbf16>
    %cst_144 = arith.constant dense<0.000000e+00> : vector<8x16xf32>
    %369 = tpu.matmul %368, %353, %cst_144 {dimension_numbers = #tpu.dot_dimension_numbers<[1], [0], [0], [1], [0, 0, 1, 1], [], []>} : vector<8x8xbf16>, vector<8x16xbf16>, vector<8x16xf32> -> vector<8x16xf32>
    %370 = arith.truncf %369 : vector<8x16xf32> to vector<8x16xbf16>
    %371 = vector.extract_strided_slice %322 {offsets = [16, 0], sizes = [16, 32], strides = [1, 1]} : vector<32x32xbf16> to vector<16x32xbf16>
    %cst_145 = arith.constant dense<0.000000e+00> : vector<8x32xf32>
    %372 = tpu.matmul %370, %371, %cst_145 {dimension_numbers = #tpu.dot_dimension_numbers<[1], [0], [0], [1], [0, 0, 1, 1], [], []>} : vector<8x16xbf16>, vector<16x32xbf16>, vector<8x32xf32> -> vector<8x32xf32>
    %373 = arith.addf %347, %372 : vector<8x32xf32>
    %374 = vector.extract_strided_slice %320 {offsets = [8, 0], sizes = [8, 16], strides = [1, 1]} : vector<16x96xf32> to vector<8x16xf32>
    %375 = arith.truncf %374 : vector<8x16xf32> to vector<8x16xbf16>
    %376 = vector.extract_strided_slice %320 {offsets = [8, 16], sizes = [8, 16], strides = [1, 1]} : vector<16x96xf32> to vector<8x16xf32>
    %377 = arith.truncf %376 : vector<8x16xf32> to vector<8x16xbf16>
    %378 = vector.extract_strided_slice %320 {offsets = [8, 32], sizes = [8, 16], strides = [1, 1]} : vector<16x96xf32> to vector<8x16xf32>
    %379 = arith.truncf %378 : vector<8x16xf32> to vector<8x16xbf16>
    %cst_146 = arith.constant dense<0.000000e+00> : vector<8x8xf32>
    %380 = tpu.matmul %375, %377, %cst_146 {dimension_numbers = #tpu.dot_dimension_numbers<[1], [1], [0], [0], [0, 0, 1, 0], [], []>} : vector<8x16xbf16>, vector<8x16xbf16>, vector<8x8xf32> -> vector<8x8xf32>
    %cst_147 = arith.constant 2.500000e-01 : f32
    %381 = vector.broadcast %cst_147 : f32 to vector<8x8xf32>
    %382 = arith.mulf %380, %381 : vector<8x8xf32>
    %383 = arith.addf %382, %121 : vector<8x8xf32>
    %cst_148 = arith.constant dense<0xFF800000> : vector<8xf32>
    %384 = vector.multi_reduction <maximumf>, %383, %cst_148 [1] : vector<8x8xf32> to vector<8xf32>
    %385 = vector.shape_cast %384 : vector<8xf32> to vector<8x1xf32>
    %386 = vector.broadcast %385 : vector<8x1xf32> to vector<8x8xf32>
    %387 = arith.subf %383, %386 : vector<8x8xf32>
    %388 = math.exp %387 : vector<8x8xf32>
    %cst_149 = arith.constant dense<0.000000e+00> : vector<8xf32>
    %389 = vector.multi_reduction <add>, %388, %cst_149 [1] : vector<8x8xf32> to vector<8xf32>
    %390 = vector.shape_cast %389 : vector<8xf32> to vector<8x1xf32>
    %391 = tpu.reciprocal %390 {approx = true} : vector<8x1xf32> -> vector<8x1xf32>
    %392 = vector.broadcast %391 : vector<8x1xf32> to vector<8x8xf32>
    %393 = arith.mulf %388, %392 : vector<8x8xf32>
    %394 = arith.truncf %393 : vector<8x8xf32> to vector<8x8xbf16>
    %cst_150 = arith.constant dense<0.000000e+00> : vector<8x16xf32>
    %395 = tpu.matmul %394, %379, %cst_150 {dimension_numbers = #tpu.dot_dimension_numbers<[1], [0], [0], [1], [0, 0, 1, 1], [], []>} : vector<8x8xbf16>, vector<8x16xbf16>, vector<8x16xf32> -> vector<8x16xf32>
    %396 = arith.truncf %395 : vector<8x16xf32> to vector<8x16xbf16>
    %397 = vector.extract_strided_slice %322 {offsets = [0, 0], sizes = [16, 32], strides = [1, 1]} : vector<32x32xbf16> to vector<16x32xbf16>
    %cst_151 = arith.constant dense<0.000000e+00> : vector<8x32xf32>
    %398 = tpu.matmul %396, %397, %cst_151 {dimension_numbers = #tpu.dot_dimension_numbers<[1], [0], [0], [1], [0, 0, 1, 1], [], []>} : vector<8x16xbf16>, vector<16x32xbf16>, vector<8x32xf32> -> vector<8x32xf32>
    %399 = vector.extract_strided_slice %320 {offsets = [8, 48], sizes = [8, 16], strides = [1, 1]} : vector<16x96xf32> to vector<8x16xf32>
    %400 = arith.truncf %399 : vector<8x16xf32> to vector<8x16xbf16>
    %401 = vector.extract_strided_slice %320 {offsets = [8, 64], sizes = [8, 16], strides = [1, 1]} : vector<16x96xf32> to vector<8x16xf32>
    %402 = arith.truncf %401 : vector<8x16xf32> to vector<8x16xbf16>
    %403 = vector.extract_strided_slice %320 {offsets = [8, 80], sizes = [8, 16], strides = [1, 1]} : vector<16x96xf32> to vector<8x16xf32>
    %404 = arith.truncf %403 : vector<8x16xf32> to vector<8x16xbf16>
    %cst_152 = arith.constant dense<0.000000e+00> : vector<8x8xf32>
    %405 = tpu.matmul %400, %402, %cst_152 {dimension_numbers = #tpu.dot_dimension_numbers<[1], [1], [0], [0], [0, 0, 1, 0], [], []>} : vector<8x16xbf16>, vector<8x16xbf16>, vector<8x8xf32> -> vector<8x8xf32>
    %cst_153 = arith.constant 2.500000e-01 : f32
    %406 = vector.broadcast %cst_153 : f32 to vector<8x8xf32>
    %407 = arith.mulf %405, %406 : vector<8x8xf32>
    %408 = arith.addf %407, %121 : vector<8x8xf32>
    %cst_154 = arith.constant dense<0xFF800000> : vector<8xf32>
    %409 = vector.multi_reduction <maximumf>, %408, %cst_154 [1] : vector<8x8xf32> to vector<8xf32>
    %410 = vector.shape_cast %409 : vector<8xf32> to vector<8x1xf32>
    %411 = vector.broadcast %410 : vector<8x1xf32> to vector<8x8xf32>
    %412 = arith.subf %408, %411 : vector<8x8xf32>
    %413 = math.exp %412 : vector<8x8xf32>
    %cst_155 = arith.constant dense<0.000000e+00> : vector<8xf32>
    %414 = vector.multi_reduction <add>, %413, %cst_155 [1] : vector<8x8xf32> to vector<8xf32>
    %415 = vector.shape_cast %414 : vector<8xf32> to vector<8x1xf32>
    %416 = tpu.reciprocal %415 {approx = true} : vector<8x1xf32> -> vector<8x1xf32>
    %417 = vector.broadcast %416 : vector<8x1xf32> to vector<8x8xf32>
    %418 = arith.mulf %413, %417 : vector<8x8xf32>
    %419 = arith.truncf %418 : vector<8x8xf32> to vector<8x8xbf16>
    %cst_156 = arith.constant dense<0.000000e+00> : vector<8x16xf32>
    %420 = tpu.matmul %419, %404, %cst_156 {dimension_numbers = #tpu.dot_dimension_numbers<[1], [0], [0], [1], [0, 0, 1, 1], [], []>} : vector<8x8xbf16>, vector<8x16xbf16>, vector<8x16xf32> -> vector<8x16xf32>
    %421 = arith.truncf %420 : vector<8x16xf32> to vector<8x16xbf16>
    %422 = vector.extract_strided_slice %322 {offsets = [16, 0], sizes = [16, 32], strides = [1, 1]} : vector<32x32xbf16> to vector<16x32xbf16>
    %cst_157 = arith.constant dense<0.000000e+00> : vector<8x32xf32>
    %423 = tpu.matmul %421, %422, %cst_157 {dimension_numbers = #tpu.dot_dimension_numbers<[1], [0], [0], [1], [0, 0, 1, 1], [], []>} : vector<8x16xbf16>, vector<16x32xbf16>, vector<8x32xf32> -> vector<8x32xf32>
    %424 = arith.addf %398, %423 : vector<8x32xf32>
    %425 = tpu.concatenate %373, %424 in 0 : vector<8x32xf32>, vector<8x32xf32> -> vector<16x32xf32>
    %c456 = arith.constant 456 : index
    %c0_158 = arith.constant 0 : index
    %426 = vector.load %arg2[%c456, %c0_158] : memref<688x128xf32, #tpu.memory_space<vmem>>, vector<1x32xf32>
    %427 = vector.broadcast %426 : vector<1x32xf32> to vector<16x32xf32>
    %428 = arith.addf %425, %427 : vector<16x32xf32>
    %429 = arith.addf %428, %313 : vector<16x32xf32>
    %c464 = arith.constant 464 : index
    %c0_159 = arith.constant 0 : index
    %430 = vector.load %arg2[%c464, %c0_159] : memref<688x128xf32, #tpu.memory_space<vmem>>, vector<1x32xf32>
    %c472 = arith.constant 472 : index
    %c0_160 = arith.constant 0 : index
    %431 = vector.load %arg2[%c472, %c0_160] : memref<688x128xf32, #tpu.memory_space<vmem>>, vector<1x32xf32>
    %cst_161 = arith.constant dense<0.000000e+00> : vector<16xf32>
    %432 = vector.multi_reduction <add>, %429, %cst_161 [1] : vector<16x32xf32> to vector<16xf32>
    %433 = vector.shape_cast %432 : vector<16xf32> to vector<16x1xf32>
    %cst_162 = arith.constant 3.200000e+01 : f32
    %434 = vector.broadcast %cst_162 : f32 to vector<16x1xf32>
    %435 = arith.divf %433, %434 : vector<16x1xf32>
    %436 = vector.broadcast %435 : vector<16x1xf32> to vector<16x32xf32>
    %437 = arith.subf %429, %436 : vector<16x32xf32>
    %438 = arith.mulf %437, %437 : vector<16x32xf32>
    %cst_163 = arith.constant dense<0.000000e+00> : vector<16xf32>
    %439 = vector.multi_reduction <add>, %438, %cst_163 [1] : vector<16x32xf32> to vector<16xf32>
    %440 = vector.shape_cast %439 : vector<16xf32> to vector<16x1xf32>
    %cst_164 = arith.constant 3.200000e+01 : f32
    %441 = vector.broadcast %cst_164 : f32 to vector<16x1xf32>
    %442 = arith.divf %440, %441 : vector<16x1xf32>
    %443 = vector.broadcast %435 : vector<16x1xf32> to vector<16x32xf32>
    %444 = arith.subf %429, %443 : vector<16x32xf32>
    %cst_165 = arith.constant 9.99999996E-13 : f32
    %445 = vector.broadcast %cst_165 : f32 to vector<16x1xf32>
    %446 = arith.addf %442, %445 : vector<16x1xf32>
    %447 = math.rsqrt %446 : vector<16x1xf32>
    %448 = vector.broadcast %447 : vector<16x1xf32> to vector<16x32xf32>
    %449 = arith.mulf %444, %448 : vector<16x32xf32>
    %450 = vector.broadcast %430 : vector<1x32xf32> to vector<16x32xf32>
    %451 = arith.mulf %449, %450 : vector<16x32xf32>
    %452 = vector.broadcast %431 : vector<1x32xf32> to vector<16x32xf32>
    %453 = arith.addf %451, %452 : vector<16x32xf32>
    %454 = arith.truncf %453 : vector<16x32xf32> to vector<16x32xbf16>
    %c480 = arith.constant 480 : index
    %c0_166 = arith.constant 0 : index
    %455 = vector.load %arg2[%c480, %c0_166] : memref<688x128xf32, #tpu.memory_space<vmem>>, vector<32x64xf32>
    %456 = arith.truncf %455 : vector<32x64xf32> to vector<32x64xbf16>
    %cst_167 = arith.constant dense<0.000000e+00> : vector<16x64xf32>
    %457 = tpu.matmul %454, %456, %cst_167 {dimension_numbers = #tpu.dot_dimension_numbers<[1], [0], [0], [1], [0, 0, 1, 1], [], []>} : vector<16x32xbf16>, vector<32x64xbf16>, vector<16x64xf32> -> vector<16x64xf32>
    %c512 = arith.constant 512 : index
    %c0_168 = arith.constant 0 : index
    %458 = vector.load %arg2[%c512, %c0_168] : memref<688x128xf32, #tpu.memory_space<vmem>>, vector<1x64xf32>
    %459 = vector.broadcast %458 : vector<1x64xf32> to vector<16x64xf32>
    %460 = arith.addf %457, %459 : vector<16x64xf32>
    %461 = arith.mulf %460, %460 : vector<16x64xf32>
    %462 = arith.mulf %460, %461 : vector<16x64xf32>
    %cst_169 = arith.constant 4.471500e-02 : f32
    %463 = vector.broadcast %cst_169 : f32 to vector<16x64xf32>
    %464 = arith.mulf %463, %462 : vector<16x64xf32>
    %465 = arith.addf %460, %464 : vector<16x64xf32>
    %cst_170 = arith.constant 0.797884583 : f32
    %466 = vector.broadcast %cst_170 : f32 to vector<16x64xf32>
    %467 = arith.mulf %466, %465 : vector<16x64xf32>
    %468 = math.tanh %467 : vector<16x64xf32>
    %cst_171 = arith.constant 1.000000e+00 : f32
    %469 = vector.broadcast %cst_171 : f32 to vector<16x64xf32>
    %470 = arith.addf %469, %468 : vector<16x64xf32>
    %cst_172 = arith.constant 5.000000e-01 : f32
    %471 = vector.broadcast %cst_172 : f32 to vector<16x64xf32>
    %472 = arith.mulf %471, %470 : vector<16x64xf32>
    %473 = arith.mulf %460, %472 : vector<16x64xf32>
    %474 = arith.truncf %473 : vector<16x64xf32> to vector<16x64xbf16>
    %c520 = arith.constant 520 : index
    %c0_173 = arith.constant 0 : index
    %475 = vector.load %arg2[%c520, %c0_173] : memref<688x128xf32, #tpu.memory_space<vmem>>, vector<64x32xf32>
    %476 = arith.truncf %475 : vector<64x32xf32> to vector<64x32xbf16>
    %cst_174 = arith.constant dense<0.000000e+00> : vector<16x32xf32>
    %477 = tpu.matmul %474, %476, %cst_174 {dimension_numbers = #tpu.dot_dimension_numbers<[1], [0], [0], [1], [0, 0, 1, 1], [], []>} : vector<16x64xbf16>, vector<64x32xbf16>, vector<16x32xf32> -> vector<16x32xf32>
    %c584 = arith.constant 584 : index
    %c0_175 = arith.constant 0 : index
    %478 = vector.load %arg2[%c584, %c0_175] : memref<688x128xf32, #tpu.memory_space<vmem>>, vector<1x32xf32>
    %479 = vector.broadcast %478 : vector<1x32xf32> to vector<16x32xf32>
    %480 = arith.addf %477, %479 : vector<16x32xf32>
    %481 = arith.addf %480, %453 : vector<16x32xf32>
    %c592 = arith.constant 592 : index
    %c0_176 = arith.constant 0 : index
    %482 = vector.load %arg2[%c592, %c0_176] : memref<688x128xf32, #tpu.memory_space<vmem>>, vector<1x32xf32>
    %c600 = arith.constant 600 : index
    %c0_177 = arith.constant 0 : index
    %483 = vector.load %arg2[%c600, %c0_177] : memref<688x128xf32, #tpu.memory_space<vmem>>, vector<1x32xf32>
    %cst_178 = arith.constant dense<0.000000e+00> : vector<16xf32>
    %484 = vector.multi_reduction <add>, %481, %cst_178 [1] : vector<16x32xf32> to vector<16xf32>
    %485 = vector.shape_cast %484 : vector<16xf32> to vector<16x1xf32>
    %cst_179 = arith.constant 3.200000e+01 : f32
    %486 = vector.broadcast %cst_179 : f32 to vector<16x1xf32>
    %487 = arith.divf %485, %486 : vector<16x1xf32>
    %488 = vector.broadcast %487 : vector<16x1xf32> to vector<16x32xf32>
    %489 = arith.subf %481, %488 : vector<16x32xf32>
    %490 = arith.mulf %489, %489 : vector<16x32xf32>
    %cst_180 = arith.constant dense<0.000000e+00> : vector<16xf32>
    %491 = vector.multi_reduction <add>, %490, %cst_180 [1] : vector<16x32xf32> to vector<16xf32>
    %492 = vector.shape_cast %491 : vector<16xf32> to vector<16x1xf32>
    %cst_181 = arith.constant 3.200000e+01 : f32
    %493 = vector.broadcast %cst_181 : f32 to vector<16x1xf32>
    %494 = arith.divf %492, %493 : vector<16x1xf32>
    %495 = vector.broadcast %487 : vector<16x1xf32> to vector<16x32xf32>
    %496 = arith.subf %481, %495 : vector<16x32xf32>
    %cst_182 = arith.constant 9.99999996E-13 : f32
    %497 = vector.broadcast %cst_182 : f32 to vector<16x1xf32>
    %498 = arith.addf %494, %497 : vector<16x1xf32>
    %499 = math.rsqrt %498 : vector<16x1xf32>
    %500 = vector.broadcast %499 : vector<16x1xf32> to vector<16x32xf32>
    %501 = arith.mulf %496, %500 : vector<16x32xf32>
    %502 = vector.broadcast %482 : vector<1x32xf32> to vector<16x32xf32>
    %503 = arith.mulf %501, %502 : vector<16x32xf32>
    %504 = vector.broadcast %483 : vector<1x32xf32> to vector<16x32xf32>
    %505 = arith.addf %503, %504 : vector<16x32xf32>
    %c0_183 = arith.constant 0 : index
    %c0_184 = arith.constant 0 : index
    %506 = vector.load %arg4[%c0_183, %c0_184] : memref<16x32xf32, #tpu.memory_space<vmem>>, vector<16x32xf32>
    tpu.vector_store %arg4[%c0_183, %c0_184], %505 {strides = array<i32>} : memref<16x32xf32, #tpu.memory_space<vmem>>, vector<16x32xf32>,
    %c0_185 = arith.constant 0 : index
    %c0_186 = arith.constant 0 : index
    %507 = tpu.strided_load %arg4[%c0_185, %c0_186] {strides = array<i32: 8, 1>} : memref<16x32xf32, #tpu.memory_space<vmem>>, vector<2x32xf32>
    %508 = arith.truncf %507 : vector<2x32xf32> to vector<2x32xbf16>
    %c608 = arith.constant 608 : index
    %c0_187 = arith.constant 0 : index
    %509 = vector.load %arg2[%c608, %c0_187] : memref<688x128xf32, #tpu.memory_space<vmem>>, vector<32x32xf32>
    %510 = arith.truncf %509 : vector<32x32xf32> to vector<32x32xbf16>
    %cst_188 = arith.constant dense<0.000000e+00> : vector<2x32xf32>
    %511 = tpu.matmul %508, %510, %cst_188 {dimension_numbers = #tpu.dot_dimension_numbers<[1], [0], [0], [1], [0, 0, 1, 1], [], []>} : vector<2x32xbf16>, vector<32x32xbf16>, vector<2x32xf32> -> vector<2x32xf32>
    %c640 = arith.constant 640 : index
    %c0_189 = arith.constant 0 : index
    %512 = vector.load %arg2[%c640, %c0_189] : memref<688x128xf32, #tpu.memory_space<vmem>>, vector<1x32xf32>
    %513 = vector.broadcast %512 : vector<1x32xf32> to vector<2x32xf32>
    %514 = arith.addf %511, %513 : vector<2x32xf32>
    %515 = math.tanh %514 : vector<2x32xf32>
    %516 = arith.truncf %515 : vector<2x32xf32> to vector<2x32xbf16>
    %c648 = arith.constant 648 : index
    %c0_190 = arith.constant 0 : index
    %517 = vector.load %arg2[%c648, %c0_190] : memref<688x128xf32, #tpu.memory_space<vmem>>, vector<32x128xf32>
    %518 = arith.truncf %517 : vector<32x128xf32> to vector<32x128xbf16>
    %cst_191 = arith.constant dense<0.000000e+00> : vector<2x128xf32>
    %519 = tpu.matmul %516, %518, %cst_191 {dimension_numbers = #tpu.dot_dimension_numbers<[1], [0], [0], [1], [0, 0, 1, 1], [], []>} : vector<2x32xbf16>, vector<32x128xbf16>, vector<2x128xf32> -> vector<2x128xf32>
    %c680 = arith.constant 680 : index
    %c0_192 = arith.constant 0 : index
    %520 = vector.load %arg2[%c680, %c0_192] : memref<688x128xf32, #tpu.memory_space<vmem>>, vector<1x128xf32>
    %521 = vector.broadcast %520 : vector<1x128xf32> to vector<2x128xf32>
    %522 = arith.addf %519, %521 : vector<2x128xf32>
    %c0_193 = arith.constant 0 : index
    %c0_194 = arith.constant 0 : index
    %523 = vector.load %arg3[%c0_193, %c0_194] : memref<2x128xf32, #tpu.memory_space<vmem>>, vector<2x128xf32>
    tpu.vector_store %arg3[%c0_193, %c0_194], %522 {strides = array<i32>} : memref<2x128xf32, #tpu.memory_space<vmem>>, vector<2x128xf32>,
    return
  }
}

</mosaic_0001>

<llo_original>
// kernel: tpu_custom_call.1
$region0: #{tpu_custom_call.1}
  #allocation0 [shape = 'u32[]', space=smem, size = 0x4, offset = 0x4, fixed_abs, tag = 'smem constant byte address 0x4 - core index']
  #allocation1 [shape = 'u32[144,128]{1,0:T(1,128)}', space=vmem, size = 0x12000, scoped, tag = 'internal scratch']
  #allocation2 [shape = 'f32[16,32]{1,0:T(8,128)}', space=vmem, size = 0x2000, scoped, tag = 'scratch operand']
  %s0 = inlined_call_operand.hbm [shape: s32[16], index: 0, kind: input, shape index: {}]
  %s1 = inlined_call_operand.hbm [shape: f32[2,8], index: 1, kind: input, shape index: {}]
  %s2 = inlined_call_operand.hbm [shape: f32[688,128], index: 2, kind: input, shape index: {}]
  %s3 = inlined_call_operand.hbm [shape: f32[2,128], index: 3, kind: output, shape index: {}]
  %s4 = sld [smem:[#allocation0]]
  $region34: #{tpu_custom_call.1} parent=0
    _
  %s6 = ssub.s32 1, %s4
  %s7 = scalar_select 0, %s6, %s4
  $region1: #{tpu_custom_call.1} parent=0
    #allocation3 [shape = 'u8[512]{0}', space=smem, size = 0x200, scoped, tag = 'input window, operand 0, single buffered']
    #allocation4 [shape = 's32[1]{0}', space=sflag, size = 0x4, scoped, tag = 'scoped memory for tpu_custom_call.1']
    #allocation5 [shape = 's32[1]{0}', space=sflag, size = 0x4, scoped, tag = 'scoped memory for tpu_custom_call.1']
    #allocation6 [shape = 's32[1]{0}', space=sflag, size = 0x4, scoped, tag = 'scoped memory for tpu_custom_call.1']
    #allocation7 [shape = 'u8[1024]{0}', space=vmem, size = 0x400, scoped, tag = 'input window, operand 1, single buffered']
    #allocation8 [shape = 'u8[352256]{0}', space=vmem, size = 0x56000, scoped, tag = 'input window, operand 2, single buffered']
    #allocation9 [shape = 's32[1]{0}', space=sflag, size = 0x4, scoped, tag = 'scoped memory for tpu_custom_call.1']
    #allocation10 [shape = 'u8[1024]{0}', space=vmem, size = 0x400, scoped, tag = 'output window, operand 0, single buffered']
    %8 = vsyncpa [#allocation6], 0
    %9 = vsyncpa [#allocation4], 0
    %10 = vsyncpa [#allocation9], 0
    %11 = vsyncpa [#allocation5], 0
    // Predicated region
    $region2: #{tpu_custom_call.1} parent=1 // pred_check
      _
    $region3: #{tpu_custom_call.1} parent=1 // pred_check_branch
      %13 = sbr.rel (0) target = $region5
    $region4: #{tpu_custom_call.1} parent=1 // pred_region
      %s15 = ssub.s32 16, 16
      %16 = vsyncadd [#allocation6], %s15
      %19 = dma.hbm_to_smem %s0, 16, [#allocation3], [#allocation6]
    $region5: #{tpu_custom_call.1} parent=1 // pred_fallthru
      _
    // Predicated region
    $region6: #{tpu_custom_call.1} parent=1 // pred_check
      _
    $region7: #{tpu_custom_call.1} parent=1 // pred_check_branch
      %21 = sbr.rel (0) target = $region9
    $region8: #{tpu_custom_call.1} parent=1 // pred_region
      %s23 = ssub.s32 32, 32
      %24 = vsyncadd [#allocation4], %s23
      %s26 = sshll.u32 [#allocation7], 4
      %s27 = int_to_ptr.vmem [resolvable:$true] %s26
      %29 = dma.hbm_to_vmem [thread:$0]  %s1, 32, %s27, [#allocation4]
    $region9: #{tpu_custom_call.1} parent=1 // pred_fallthru
      _
    // Predicated region
    $region10: #{tpu_custom_call.1} parent=1 // pred_check
      _
    $region11: #{tpu_custom_call.1} parent=1 // pred_check_branch
      %31 = sbr.rel (0) target = $region13
    $region12: #{tpu_custom_call.1} parent=1 // pred_region
      %s33 = ssub.s32 11008, 11008
      %34 = vsyncadd [#allocation9], %s33
      %s35 = sshll.u32 [#allocation8], 4
      %s36 = int_to_ptr.vmem [resolvable:$true] %s35
      %41 = dma.hbm_to_vmem [thread:$0]  %s2, 11008, %s36, [#allocation9], 128, 128, 8
    $region13: #{tpu_custom_call.1} parent=1 // pred_fallthru
      _
    // Predicated region
    $region14: #{tpu_custom_call.1} parent=1 // pred_check
      _
    $region15: #{tpu_custom_call.1} parent=1 // pred_check_branch
      %43 = sbr.rel (0) target = $region17
    $region16: #{tpu_custom_call.1} parent=1 // pred_region
      %44 = dma.done [#allocation6], 16
    $region17: #{tpu_custom_call.1} parent=1 // pred_fallthru
      _
    // Predicated region
    $region18: #{tpu_custom_call.1} parent=1 // pred_check
      _
    $region19: #{tpu_custom_call.1} parent=1 // pred_check_branch
      %46 = sbr.rel (0) target = $region21
    $region20: #{tpu_custom_call.1} parent=1 // pred_region
      %47 = dma.done [#allocation4], 32
    $region21: #{tpu_custom_call.1} parent=1 // pred_fallthru
      _
    // Predicated region
    $region22: #{tpu_custom_call.1} parent=1 // pred_check
      _
    $region23: #{tpu_custom_call.1} parent=1 // pred_check_branch
      %49 = sbr.rel (0) target = $region25
    $region24: #{tpu_custom_call.1} parent=1 // pred_region
      %50 = dma.done [#allocation9], 11008
    $region25: #{tpu_custom_call.1} parent=1 // pred_fallthru
      _
    %51 = sfence
    %s53 = sld [smem:[#allocation3]]
    %s54 = scalar_lea.vmem [#allocation8], %s53
    %v55 = vld [vmem:[%s54] sm:$0x1]
    %vm56 = vcmask 253952
    %57 = vst.msk [vmem:[#allocation2] sm:$0x1] %vm56, %v55
    %s58 = sld [smem:[#allocation3 + $0x1]]
    %s59 = scalar_lea.vmem [#allocation8], %s58
    %v60 = vld [vmem:[%s59] sm:$0x1]
    %61 = vst.msk [vmem:[#allocation2 + $0x1] sm:$0x1] %vm56, %v60
    %s62 = sld [smem:[#allocation3 + $0x2]]
    %s63 = scalar_lea.vmem [#allocation8], %s62
    %v64 = vld [vmem:[%s63] sm:$0x1]
    %65 = vst.msk [vmem:[#allocation2 + $0x2] sm:$0x1] %vm56, %v64
    %s66 = sld [smem:[#allocation3 + $0x3]]
    %s67 = scalar_lea.vmem [#allocation8], %s66
    %v68 = vld [vmem:[%s67] sm:$0x1]
    %69 = vst.msk [vmem:[#allocation2 + $0x3] sm:$0x1] %vm56, %v68
    %s70 = sld [smem:[#allocation3 + $0x4]]
    %s71 = scalar_lea.vmem [#allocation8], %s70
    %v72 = vld [vmem:[%s71] sm:$0x1]
    %73 = vst.msk [vmem:[#allocation2 + $0x4] sm:$0x1] %vm56, %v72
    %s74 = sld [smem:[#allocation3 + $0x5]]
    %s75 = scalar_lea.vmem [#allocation8], %s74
    %v76 = vld [vmem:[%s75] sm:$0x1]
    %77 = vst.msk [vmem:[#allocation2 + $0x5] sm:$0x1] %vm56, %v76
    %s78 = sld [smem:[#allocation3 + $0x6]]
    %s79 = scalar_lea.vmem [#allocation8], %s78
    %v80 = vld [vmem:[%s79] sm:$0x1]
    %81 = vst.msk [vmem:[#allocation2 + $0x6] sm:$0x1] %vm56, %v80
    %s82 = sld [smem:[#allocation3 + $0x7]]
    %s83 = scalar_lea.vmem [#allocation8], %s82
    %v84 = vld [vmem:[%s83] sm:$0x1]
    %85 = vst.msk [vmem:[#allocation2 + $0x7] sm:$0x1] %vm56, %v84
    %s86 = sld [smem:[#allocation3 + $0x8]]
    %s87 = scalar_lea.vmem [#allocation8], %s86
    %v88 = vld [vmem:[%s87] sm:$0x1]
    %89 = vst.msk [vmem:[#allocation2 + $0x8] sm:$0x1] %vm56, %v88
    %s90 = sld [smem:[#allocation3 + $0x9]]
    %s91 = scalar_lea.vmem [#allocation8], %s90
    %v92 = vld [vmem:[%s91] sm:$0x1]
    %93 = vst.msk [vmem:[#allocation2 + $0x9] sm:$0x1] %vm56, %v92
    %s94 = sld [smem:[#allocation3 + $0xa]]
    %s95 = scalar_lea.vmem [#allocation8], %s94
    %v96 = vld [vmem:[%s95] sm:$0x1]
    %97 = vst.msk [vmem:[#allocation2 + $0xa] sm:$0x1] %vm56, %v96
    %s98 = sld [smem:[#allocation3 + $0xb]]
    %s99 = scalar_lea.vmem [#allocation8], %s98
    %v100 = vld [vmem:[%s99] sm:$0x1]
    %101 = vst.msk [vmem:[#allocation2 + $0xb] sm:$0x1] %vm56, %v100
    %s102 = sld [smem:[#allocation3 + $0xc]]
    %s103 = scalar_lea.vmem [#allocation8], %s102
    %v104 = vld [vmem:[%s103] sm:$0x1]
    %105 = vst.msk [vmem:[#allocation2 + $0xc] sm:$0x1] %vm56, %v104
    %s106 = sld [smem:[#allocation3 + $0xd]]
    %s107 = scalar_lea.vmem [#allocation8], %s106
    %v108 = vld [vmem:[%s107] sm:$0x1]
    %109 = vst.msk [vmem:[#allocation2 + $0xd] sm:$0x1] %vm56, %v108
    %s110 = sld [smem:[#allocation3 + $0xe]]
    %s111 = scalar_lea.vmem [#allocation8], %s110
    %v112 = vld [vmem:[%s111] sm:$0x1]
    %113 = vst.msk [vmem:[#allocation2 + $0xe] sm:$0x1] %vm56, %v112
    %s114 = sld [smem:[#allocation3 + $0xf]]
    %s115 = scalar_lea.vmem [#allocation8], %s114
    %v116 = vld [vmem:[%s115] sm:$0x1]
    %117 = vst.msk [vmem:[#allocation2 + $0xf] sm:$0x1] %vm56, %v116
    %v118 = vld [vmem:[#allocation8 + $0x80] sm:$0xff]
    %v119 = vld [vmem:[#allocation8 + $0x88] sm:$0x1]
    %v120 = vlaneseq
    %v121 = vshrl.u32 %v120, 7
    %v122 = vsub.s32 0, %v121
    %v123 = vrot.slane %v119, %v122
    %v124 = vadd.f32 %v118, %v123
    %v125 = vld [vmem:[#allocation2] sm:$0xff]
    %v126 = vld [vmem:[#allocation2 + $0x8] sm:$0xff]
    %v127 = vadd.f32 %v125, %v124
    %v128 = vadd.f32 %v126, %v124
    %v129 = vld [vmem:[#allocation8 + $0x90] sm:$0x1]
    %v130 = vld [vmem:[#allocation8 + $0x98] sm:$0x1]
    %vm131 = vcmask 261120
    %v132 = vsel %vm131, %v127, 0.0
    %133 = vadd.xlane.f32.xlu0 %v132
    %v134 = vpop.xlane.xlu0 %133
    %v135 = vsel %vm131, %v128, 0.0
    %136 = vadd.xlane.f32.xlu0 %v135
    %v137 = vpop.xlane.xlu0 %136
    %v138 = vrcp.pop 32.0
    %v139 = vmul.f32 %v134, %v138
    %v140 = vmul.f32 %v137, %v138
    %v141 = vsub.f32 %v127, %v139
    %v142 = vsub.f32 %v128, %v140
    %v143 = vmul.f32 %v141, %v141
    %v144 = vmul.f32 %v142, %v142
    %v145 = vsel %vm131, %v143, 0.0
    %146 = vadd.xlane.f32.xlu0 %v145
    %v147 = vpop.xlane.xlu0 %146
    %v148 = vsel %vm131, %v144, 0.0
    %149 = vadd.xlane.f32.xlu0 %v148
    %v150 = vpop.xlane.xlu0 %149
    %v151 = vmul.f32 %v147, %v138
    %v152 = vmul.f32 %v150, %v138
    %v153 = vadd.f32 %v151, 1e-12
    %v154 = vadd.f32 %v152, 1e-12
    %v155 = vrsqrt.pop %v153
    %v156 = vrsqrt.pop %v154
    %v157 = vmul.f32 %v141, %v155
    %v158 = vmul.f32 %v142, %v156
    %v159 = vlaneseq
    %v160 = vshrl.u32 %v159, 7
    %v161 = vsub.s32 0, %v160
    %v162 = vrot.slane %v129, %v161
    %v163 = vmul.f32 %v157, %v162
    %v164 = vmul.f32 %v158, %v162
    %v165 = vlaneseq
    %v166 = vshrl.u32 %v165, 7
    %v167 = vsub.s32 0, %v166
    %v168 = vrot.slane %v130, %v167
    %v169 = vadd.f32 %v163, %v168
    %v170 = vadd.f32 %v164, %v168
    %v171 = vld [vmem:[#allocation7] sm:$0x3]
    %v172 = vsub.f32 1.0, %v171
    %v173 = vmul.f32 %v172, -10000.0
    %v174 = vlaneseq
    %v175 = vshrl.u32 %v174, 7
    %v176 = vsub.s32 0, %v175
    %v177 = vrot.slane %v173, %v176
    %v178 = vlaneseq
    %v179 = vshrl.u32 %v178, 7
    %v180 = vsub.s32 1, %v179
    %v181 = vrot.slane %v173, %v180
    %v182 = vpack.c.bf16 %v170, %v169
    %v183 = vld [vmem:[#allocation8 + $0xa0] sm:$0xff]
    %v184 = vld [vmem:[#allocation8 + $0xa8] sm:$0xff]
    %v185 = vld [vmem:[#allocation8 + $0xb0] sm:$0xff]
    %v186 = vld [vmem:[#allocation8 + $0xb8] sm:$0xff]
    %v187 = vpack.c.bf16 %v184, %v183
    %v188 = vpack.c.bf16 %v186, %v185
    %v189 = vld [vmem:[#allocation8 + $0xc0] sm:$0x1]
    %v190 = vlaneseq
    %v191 = vshrl.u32 %v190, 7
    %v192 = vsub.s32 0, %v191
    %v193 = vrot.slane %v189, %v192
    %v195 = vsel %vm131, %v182, 0
    %197 = vmatprep.subr.bf16.mxu0 0
    %198 = vmatpush1.bf16.msra.mxu0 0
    %199 = vmatprep.subr.bf16.mxu0 0
    %200 = vmatpush1.bf16.msra.mxu0 0
    %201 = vmatprep.subr.bf16.mxu0 0
    %202 = vmatpush1.bf16.msra.mxu0 0
    %203 = vmatprep.subr.bf16.mxu0 0
    %204 = vmatpush1.bf16.msra.mxu0 0
    %205 = vmatprep.subr.bf16.mxu0 0
    %206 = vmatpush1.bf16.msra.mxu0 0
    %207 = vmatprep.subr.bf16.mxu0 0
    %208 = vmatpush1.bf16.msra.mxu0 0
    %209 = vmatprep.subr.bf16.mxu0 0
    %210 = vmatpush1.bf16.msra.mxu0 %v188
    %211 = vmatprep.subr.bf16.mxu0 0
    %212 = vmatpush1.bf16.msra.mxu0 %v187
    %213 = vmatprep.subr.bf16.mxu0 0
    %214 = vmatpush2.bf16.msra.mxu0 0
    %215 = vmatprep.subr.bf16.mxu0 0
    %216 = vmatpush2.bf16.msra.mxu0 0
    %217 = vmatprep.subr.bf16.mxu0 0
    %218 = vmatpush2.bf16.msra.mxu0 0
    %219 = vmatprep.subr.bf16.mxu0 0
    %220 = vmatpush2.bf16.msra.mxu0 0
    %221 = vmatprep.subr.bf16.mxu0 0
    %222 = vmatpush2.bf16.msra.mxu0 0
    %223 = vmatprep.subr.bf16.mxu0 0
    %224 = vmatpush2.bf16.msra.mxu0 0
    %225 = vmatprep.subr.bf16.mxu0 0
    %226 = vmatpush2.bf16.msra.mxu0 0
    %227 = vmatprep.subr.bf16.mxu0 0
    %228 = vmatpush2.bf16.msra.mxu0 0
    %229 = vmatprep.mubr.bf16.mxu0 0
    %230 = vmatmul.mubr.bf16.gmra.mxu0 %v195
    %v231 = vpop.f32.mrf.mxu0
    %v232 = vadd.f32 %v193, %v231
    %v233 = vpop.f32.mrf.mxu0
    %v234 = vpop.f32.mrf.mxu0
    %v235 = vadd.f32 %v193, %v234
    %v236 = vpop.f32.mrf.mxu0
    %237 = vdwg.mxu0
    %v238 = vld [vmem:[#allocation8 + $0xc8] sm:$0xff]
    %v239 = vld [vmem:[#allocation8 + $0xd0] sm:$0xff]
    %v240 = vld [vmem:[#allocation8 + $0xd8] sm:$0xff]
    %v241 = vld [vmem:[#allocation8 + $0xe0] sm:$0xff]
    %v242 = vpack.c.bf16 %v239, %v238
    %v243 = vpack.c.bf16 %v241, %v240
    %v244 = vpack.c.bf16 %v232, %v232
    %246 = vrot.lane.b32.xlu0 %v244, 112
    %v247 = vpop.permute.xlu0 %246
    %vm248 = vcmask 130048
    %v250 = vsel %vm248, %v244, 0
    %v253 = vsel %vm248, %v247, 0
    %255 = vmatprep.subr.bf16.mxu0 0
    %256 = vmatpush1.bf16.xpose.msra.mxu0 0
    %257 = vmatprep.subr.bf16.mxu0 0
    %258 = vmatpush1.bf16.xpose.msra.mxu0 0
    %259 = vmatprep.subr.bf16.mxu0 0
    %260 = vmatpush1.bf16.xpose.msra.mxu0 0
    %261 = vmatprep.subr.bf16.mxu0 0
    %262 = vmatpush1.bf16.xpose.msra.mxu0 0
    %263 = vmatprep.subr.bf16.mxu0 0
    %264 = vmatpush1.bf16.xpose.msra.mxu0 0
    %265 = vmatprep.subr.bf16.mxu0 0
    %266 = vmatpush1.bf16.xpose.msra.mxu0 0
    %267 = vmatprep.subr.bf16.mxu0 0
    %268 = vmatpush1.bf16.xpose.msra.mxu0 0
    %269 = vmatprep.subr.bf16.mxu0 0
    %270 = vmatpush1.bf16.xpose.msra.mxu0 %v253
    %271 = vmatprep.subr.bf16.mxu0 0
    %272 = vmatpush2.bf16.xpose.msra.mxu0 0
    %273 = vmatprep.subr.bf16.mxu0 0
    %274 = vmatpush2.bf16.xpose.msra.mxu0 0
    %275 = vmatprep.subr.bf16.mxu0 0
    %276 = vmatpush2.bf16.xpose.msra.mxu0 0
    %277 = vmatprep.subr.bf16.mxu0 0
    %278 = vmatpush2.bf16.xpose.msra.mxu0 0
    %279 = vmatprep.subr.bf16.mxu0 0
    %280 = vmatpush2.bf16.xpose.msra.mxu0 0
    %281 = vmatprep.subr.bf16.mxu0 0
    %282 = vmatpush2.bf16.xpose.msra.mxu0 0
    %283 = vmatprep.subr.bf16.mxu0 0
    %284 = vmatpush2.bf16.xpose.msra.mxu0 0
    %285 = vmatprep.subr.bf16.mxu0 0
    %286 = vmatpush2.bf16.xpose.msra.mxu0 0
    %287 = vmatprep.mubr.bf16.mxu0 0
    %288 = vmatmul.mubr.bf16.gmra.mxu0 %v250
    %v289 = vpop.f32.mrf.mxu0
    %v290 = vadd.f32 0.0, %v289
    %v291 = vpop.f32.mrf.mxu0
    %v292 = vpop.f32.mrf.mxu0
    %v293 = vpop.f32.mrf.mxu0
    %294 = vdwg.mxu0
    %v295 = vmul.f32 %v290, 0.25
    %v296 = vadd.f32 %v295, %v177
    %vm297 = vcmask 64512
    %v298 = vsel %vm297, %v296, -inf
    %299 = vmax.xlane.f32.xlu0 %v298
    %v300 = vpop.xlane.xlu0 %299
    %v301 = vsub.f32 %v296, %v300
    %v302 = vmul.f32 %v301, 1.442695
    %v303 = vpow.pop %v302
    %v304 = vsel %vm297, %v303, 0.0
    %305 = vadd.xlane.f32.xlu0 %v304
    %v306 = vpop.xlane.xlu0 %305
    %v307 = vrcp.pop %v306
    %v308 = vmul.f32 %v303, %v307
    %v309 = vpack.c.bf16 %v308, %v308
    %310 = vrot.lane.b32.xlu0 %v244, 96
    %v311 = vpop.permute.xlu0 %310
    %v313 = vsel %vm297, %v309, 0
    %vm315 = vcmask 1043456
    %v317 = vsel %vm315, %v311, 0
    %319 = vmatprep.subr.bf16.mxu0 0
    %320 = vmatpush1.bf16.msra.mxu0 0
    %321 = vmatprep.subr.bf16.mxu0 0
    %322 = vmatpush1.bf16.msra.mxu0 0
    %323 = vmatprep.subr.bf16.mxu0 0
    %324 = vmatpush1.bf16.msra.mxu0 0
    %325 = vmatprep.subr.bf16.mxu0 0
    %326 = vmatpush1.bf16.msra.mxu0 0
    %327 = vmatprep.subr.bf16.mxu0 0
    %328 = vmatpush1.bf16.msra.mxu0 0
    %329 = vmatprep.subr.bf16.mxu0 0
    %330 = vmatpush1.bf16.msra.mxu0 0
    %331 = vmatprep.subr.bf16.mxu0 0
    %332 = vmatpush1.bf16.msra.mxu0 0
    %333 = vmatprep.subr.bf16.mxu0 0
    %334 = vmatpush1.bf16.msra.mxu0 %v317
    %335 = vmatprep.subr.bf16.mxu0 0
    %336 = vmatpush2.bf16.msra.mxu0 0
    %337 = vmatprep.subr.bf16.mxu0 0
    %338 = vmatpush2.bf16.msra.mxu0 0
    %339 = vmatprep.subr.bf16.mxu0 0
    %340 = vmatpush2.bf16.msra.mxu0 0
    %341 = vmatprep.subr.bf16.mxu0 0
    %342 = vmatpush2.bf16.msra.mxu0 0
    %343 = vmatprep.subr.bf16.mxu0 0
    %344 = vmatpush2.bf16.msra.mxu0 0
    %345 = vmatprep.subr.bf16.mxu0 0
    %346 = vmatpush2.bf16.msra.mxu0 0
    %347 = vmatprep.subr.bf16.mxu0 0
    %348 = vmatpush2.bf16.msra.mxu0 0
    %349 = vmatprep.subr.bf16.mxu0 0
    %350 = vmatpush2.bf16.msra.mxu0 0
    %351 = vmatprep.mubr.bf16.mxu0 0
    %352 = vmatmul.mubr.bf16.gmra.mxu0 %v313
    %v353 = vpop.f32.mrf.mxu0
    %v354 = vadd.f32 0.0, %v353
    %v355 = vpop.f32.mrf.mxu0
    %v356 = vpop.f32.mrf.mxu0
    %v357 = vpop.f32.mrf.mxu0
    %358 = vdwg.mxu0
    %v359 = vpack.c.bf16 %v354, %v354
    %360 = vrot.lane.b32.xlu0 %v244, 80
    %v361 = vpop.permute.xlu0 %360
    %362 = vrot.lane.b32.xlu0 %v244, 64
    %v363 = vpop.permute.xlu0 %362
    %v365 = vsel %vm248, %v361, 0
    %v368 = vsel %vm248, %v363, 0
    %370 = vmatprep.subr.bf16.mxu0 0
    %371 = vmatpush1.bf16.xpose.msra.mxu0 0
    %372 = vmatprep.subr.bf16.mxu0 0
    %373 = vmatpush1.bf16.xpose.msra.mxu0 0
    %374 = vmatprep.subr.bf16.mxu0 0
    %375 = vmatpush1.bf16.xpose.msra.mxu0 0
    %376 = vmatprep.subr.bf16.mxu0 0
    %377 = vmatpush1.bf16.xpose.msra.mxu0 0
    %378 = vmatprep.subr.bf16.mxu0 0
    %379 = vmatpush1.bf16.xpose.msra.mxu0 0
    %380 = vmatprep.subr.bf16.mxu0 0
    %381 = vmatpush1.bf16.xpose.msra.mxu0 0
    %382 = vmatprep.subr.bf16.mxu0 0
    %383 = vmatpush1.bf16.xpose.msra.mxu0 0
    %384 = vmatprep.subr.bf16.mxu0 0
    %385 = vmatpush1.bf16.xpose.msra.mxu0 %v368
    %386 = vmatprep.subr.bf16.mxu0 0
    %387 = vmatpush2.bf16.xpose.msra.mxu0 0
    %388 = vmatprep.subr.bf16.mxu0 0
    %389 = vmatpush2.bf16.xpose.msra.mxu0 0
    %390 = vmatprep.subr.bf16.mxu0 0
    %391 = vmatpush2.bf16.xpose.msra.mxu0 0
    %392 = vmatprep.subr.bf16.mxu0 0
    %393 = vmatpush2.bf16.xpose.msra.mxu0 0
    %394 = vmatprep.subr.bf16.mxu0 0
    %395 = vmatpush2.bf16.xpose.msra.mxu0 0
    %396 = vmatprep.subr.bf16.mxu0 0
    %397 = vmatpush2.bf16.xpose.msra.mxu0 0
    %398 = vmatprep.subr.bf16.mxu0 0
    %399 = vmatpush2.bf16.xpose.msra.mxu0 0
    %400 = vmatprep.subr.bf16.mxu0 0
    %401 = vmatpush2.bf16.xpose.msra.mxu0 0
    %402 = vmatprep.mubr.bf16.mxu0 0
    %403 = vmatmul.mubr.bf16.gmra.mxu0 %v365
    %v404 = vpop.f32.mrf.mxu0
    %v405 = vadd.f32 0.0, %v404
    %v406 = vpop.f32.mrf.mxu0
    %v407 = vpop.f32.mrf.mxu0
    %v408 = vpop.f32.mrf.mxu0
    %409 = vdwg.mxu0
    %v410 = vmul.f32 %v405, 0.25
    %v411 = vadd.f32 %v410, %v177
    %v412 = vsel %vm297, %v411, -inf
    %413 = vmax.xlane.f32.xlu0 %v412
    %v414 = vpop.xlane.xlu0 %413
    %v415 = vsub.f32 %v411, %v414
    %v416 = vmul.f32 %v415, 1.442695
    %v417 = vpow.pop %v416
    %v418 = vsel %vm297, %v417, 0.0
    %419 = vadd.xlane.f32.xlu0 %v418
    %v420 = vpop.xlane.xlu0 %419
    %v421 = vrcp.pop %v420
    %v422 = vmul.f32 %v417, %v421
    %v423 = vpack.c.bf16 %v422, %v422
    %424 = vrot.lane.b32.xlu0 %v244, 48
    %v425 = vpop.permute.xlu0 %424
    %v427 = vsel %vm297, %v423, 0
    %v430 = vsel %vm315, %v425, 0
    %432 = vmatprep.subr.bf16.mxu0 0
    %433 = vmatpush1.bf16.msra.mxu0 0
    %434 = vmatprep.subr.bf16.mxu0 0
    %435 = vmatpush1.bf16.msra.mxu0 0
    %436 = vmatprep.subr.bf16.mxu0 0
    %437 = vmatpush1.bf16.msra.mxu0 0
    %438 = vmatprep.subr.bf16.mxu0 0
    %439 = vmatpush1.bf16.msra.mxu0 0
    %440 = vmatprep.subr.bf16.mxu0 0
    %441 = vmatpush1.bf16.msra.mxu0 0
    %442 = vmatprep.subr.bf16.mxu0 0
    %443 = vmatpush1.bf16.msra.mxu0 0
    %444 = vmatprep.subr.bf16.mxu0 0
    %445 = vmatpush1.bf16.msra.mxu0 0
    %446 = vmatprep.subr.bf16.mxu0 0
    %447 = vmatpush1.bf16.msra.mxu0 %v430
    %448 = vmatprep.subr.bf16.mxu0 0
    %449 = vmatpush2.bf16.msra.mxu0 0
    %450 = vmatprep.subr.bf16.mxu0 0
    %451 = vmatpush2.bf16.msra.mxu0 0
    %452 = vmatprep.subr.bf16.mxu0 0
    %453 = vmatpush2.bf16.msra.mxu0 0
    %454 = vmatprep.subr.bf16.mxu0 0
    %455 = vmatpush2.bf16.msra.mxu0 0
    %456 = vmatprep.subr.bf16.mxu0 0
    %457 = vmatpush2.bf16.msra.mxu0 0
    %458 = vmatprep.subr.bf16.mxu0 0
    %459 = vmatpush2.bf16.msra.mxu0 0
    %460 = vmatprep.subr.bf16.mxu0 0
    %461 = vmatpush2.bf16.msra.mxu0 0
    %462 = vmatprep.subr.bf16.mxu0 0
    %463 = vmatpush2.bf16.msra.mxu0 0
    %464 = vmatprep.mubr.bf16.mxu0 0
    %465 = vmatmul.mubr.bf16.gmra.mxu0 %v427
    %v466 = vpop.f32.mrf.mxu0
    %v467 = vadd.f32 0.0, %v466
    %v468 = vpop.f32.mrf.mxu0
    %v469 = vpop.f32.mrf.mxu0
    %v470 = vpop.f32.mrf.mxu0
    %471 = vdwg.mxu0
    %v472 = vpack.c.bf16 %v467, %v467
    %v474 = vsel %vm248, %v472, 0
    %476 = vmatprep.subr.bf16.mxu0 0
    %477 = vmatpush1.bf16.msra.mxu0 0
    %478 = vmatprep.subr.bf16.mxu0 0
    %479 = vmatpush1.bf16.msra.mxu0 0
    %480 = vmatprep.subr.bf16.mxu0 0
    %481 = vmatpush1.bf16.msra.mxu0 0
    %482 = vmatprep.subr.bf16.mxu0 0
    %483 = vmatpush1.bf16.msra.mxu0 0
    %484 = vmatprep.subr.bf16.mxu0 0
    %485 = vmatpush1.bf16.msra.mxu0 0
    %486 = vmatprep.subr.bf16.mxu0 0
    %487 = vmatpush1.bf16.msra.mxu0 0
    %488 = vmatprep.subr.bf16.mxu0 0
    %489 = vmatpush1.bf16.msra.mxu0 0
    %490 = vmatprep.subr.bf16.mxu0 0
    %491 = vmatpush1.bf16.msra.mxu0 %v243
    %492 = vmatprep.subr.bf16.mxu0 0
    %493 = vmatpush2.bf16.msra.mxu0 0
    %494 = vmatprep.subr.bf16.mxu0 0
    %495 = vmatpush2.bf16.msra.mxu0 0
    %496 = vmatprep.subr.bf16.mxu0 0
    %497 = vmatpush2.bf16.msra.mxu0 0
    %498 = vmatprep.subr.bf16.mxu0 0
    %499 = vmatpush2.bf16.msra.mxu0 0
    %500 = vmatprep.subr.bf16.mxu0 0
    %501 = vmatpush2.bf16.msra.mxu0 0
    %502 = vmatprep.subr.bf16.mxu0 0
    %503 = vmatpush2.bf16.msra.mxu0 0
    %504 = vmatprep.subr.bf16.mxu0 0
    %505 = vmatpush2.bf16.msra.mxu0 0
    %506 = vmatprep.subr.bf16.mxu0 0
    %507 = vmatpush2.bf16.msra.mxu0 0
    %508 = vmatprep.mubr.bf16.mxu0 0
    %509 = vmatmul.mubr.bf16.gmra.mxu0 %v474
    %v510 = vpop.f32.mrf.mxu0
    %v511 = vadd.f32 0.0, %v510
    %v512 = vpop.f32.mrf.mxu0
    %v513 = vpop.f32.mrf.mxu0
    %v514 = vpop.f32.mrf.mxu0
    %515 = vdwg.mxu0
    %v517 = vsel %vm248, %v359, 0
    %519 = vmatprep.subr.bf16.mxu0 0
    %520 = vmatpush1.bf16.msra.mxu0 0
    %521 = vmatprep.subr.bf16.mxu0 0
    %522 = vmatpush1.bf16.msra.mxu0 0
    %523 = vmatprep.subr.bf16.mxu0 0
    %524 = vmatpush1.bf16.msra.mxu0 0
    %525 = vmatprep.subr.bf16.mxu0 0
    %526 = vmatpush1.bf16.msra.mxu0 0
    %527 = vmatprep.subr.bf16.mxu0 0
    %528 = vmatpush1.bf16.msra.mxu0 0
    %529 = vmatprep.subr.bf16.mxu0 0
    %530 = vmatpush1.bf16.msra.mxu0 0
    %531 = vmatprep.subr.bf16.mxu0 0
    %532 = vmatpush1.bf16.msra.mxu0 0
    %533 = vmatprep.subr.bf16.mxu0 0
    %534 = vmatpush1.bf16.msra.mxu0 %v242
    %535 = vmatprep.subr.bf16.mxu0 0
    %536 = vmatpush2.bf16.msra.mxu0 0
    %537 = vmatprep.subr.bf16.mxu0 0
    %538 = vmatpush2.bf16.msra.mxu0 0
    %539 = vmatprep.subr.bf16.mxu0 0
    %540 = vmatpush2.bf16.msra.mxu0 0
    %541 = vmatprep.subr.bf16.mxu0 0
    %542 = vmatpush2.bf16.msra.mxu0 0
    %543 = vmatprep.subr.bf16.mxu0 0
    %544 = vmatpush2.bf16.msra.mxu0 0
    %545 = vmatprep.subr.bf16.mxu0 0
    %546 = vmatpush2.bf16.msra.mxu0 0
    %547 = vmatprep.subr.bf16.mxu0 0
    %548 = vmatpush2.bf16.msra.mxu0 0
    %549 = vmatprep.subr.bf16.mxu0 0
    %550 = vmatpush2.bf16.msra.mxu0 0
    %551 = vmatprep.mubr.bf16.mxu0 0
    %552 = vmatmul.mubr.bf16.gmra.mxu0 %v517
    %v553 = vpop.f32.mrf.mxu0
    %v554 = vadd.f32 %v511, %v553
    %v555 = vpop.f32.mrf.mxu0
    %v556 = vpop.f32.mrf.mxu0
    %v557 = vpop.f32.mrf.mxu0
    %558 = vdwg.mxu0
    %v559 = vpack.c.bf16 %v235, %v235
    %561 = vrot.lane.b32.xlu0 %v559, 112
    %v562 = vpop.permute.xlu0 %561
    %v564 = vsel %vm248, %v559, 0
    %v567 = vsel %vm248, %v562, 0
    %569 = vmatprep.subr.bf16.mxu0 0
    %570 = vmatpush1.bf16.xpose.msra.mxu0 0
    %571 = vmatprep.subr.bf16.mxu0 0
    %572 = vmatpush1.bf16.xpose.msra.mxu0 0
    %573 = vmatprep.subr.bf16.mxu0 0
    %574 = vmatpush1.bf16.xpose.msra.mxu0 0
    %575 = vmatprep.subr.bf16.mxu0 0
    %576 = vmatpush1.bf16.xpose.msra.mxu0 0
    %577 = vmatprep.subr.bf16.mxu0 0
    %578 = vmatpush1.bf16.xpose.msra.mxu0 0
    %579 = vmatprep.subr.bf16.mxu0 0
    %580 = vmatpush1.bf16.xpose.msra.mxu0 0
    %581 = vmatprep.subr.bf16.mxu0 0
    %582 = vmatpush1.bf16.xpose.msra.mxu0 0
    %583 = vmatprep.subr.bf16.mxu0 0
    %584 = vmatpush1.bf16.xpose.msra.mxu0 %v567
    %585 = vmatprep.subr.bf16.mxu0 0
    %586 = vmatpush2.bf16.xpose.msra.mxu0 0
    %587 = vmatprep.subr.bf16.mxu0 0
    %588 = vmatpush2.bf16.xpose.msra.mxu0 0
    %589 = vmatprep.subr.bf16.mxu0 0
    %590 = vmatpush2.bf16.xpose.msra.mxu0 0
    %591 = vmatprep.subr.bf16.mxu0 0
    %592 = vmatpush2.bf16.xpose.msra.mxu0 0
    %593 = vmatprep.subr.bf16.mxu0 0
    %594 = vmatpush2.bf16.xpose.msra.mxu0 0
    %595 = vmatprep.subr.bf16.mxu0 0
    %596 = vmatpush2.bf16.xpose.msra.mxu0 0
    %597 = vmatprep.subr.bf16.mxu0 0
    %598 = vmatpush2.bf16.xpose.msra.mxu0 0
    %599 = vmatprep.subr.bf16.mxu0 0
    %600 = vmatpush2.bf16.xpose.msra.mxu0 0
    %601 = vmatprep.mubr.bf16.mxu0 0
    %602 = vmatmul.mubr.bf16.gmra.mxu0 %v564
    %v603 = vpop.f32.mrf.mxu0
    %v604 = vadd.f32 0.0, %v603
    %v605 = vpop.f32.mrf.mxu0
    %v606 = vpop.f32.mrf.mxu0
    %v607 = vpop.f32.mrf.mxu0
    %608 = vdwg.mxu0
    %v609 = vmul.f32 %v604, 0.25
    %v610 = vadd.f32 %v609, %v181
    %v611 = vsel %vm297, %v610, -inf
    %612 = vmax.xlane.f32.xlu0 %v611
    %v613 = vpop.xlane.xlu0 %612
    %v614 = vsub.f32 %v610, %v613
    %v615 = vmul.f32 %v614, 1.442695
    %v616 = vpow.pop %v615
    %v617 = vsel %vm297, %v616, 0.0
    %618 = vadd.xlane.f32.xlu0 %v617
    %v619 = vpop.xlane.xlu0 %618
    %v620 = vrcp.pop %v619
    %v621 = vmul.f32 %v616, %v620
    %v622 = vpack.c.bf16 %v621, %v621
    %623 = vrot.lane.b32.xlu0 %v559, 96
    %v624 = vpop.permute.xlu0 %623
    %v626 = vsel %vm297, %v622, 0
    %v629 = vsel %vm315, %v624, 0
    %631 = vmatprep.subr.bf16.mxu0 0
    %632 = vmatpush1.bf16.msra.mxu0 0
    %633 = vmatprep.subr.bf16.mxu0 0
    %634 = vmatpush1.bf16.msra.mxu0 0
    %635 = vmatprep.subr.bf16.mxu0 0
    %636 = vmatpush1.bf16.msra.mxu0 0
    %637 = vmatprep.subr.bf16.mxu0 0
    %638 = vmatpush1.bf16.msra.mxu0 0
    %639 = vmatprep.subr.bf16.mxu0 0
    %640 = vmatpush1.bf16.msra.mxu0 0
    %641 = vmatprep.subr.bf16.mxu0 0
    %642 = vmatpush1.bf16.msra.mxu0 0
    %643 = vmatprep.subr.bf16.mxu0 0
    %644 = vmatpush1.bf16.msra.mxu0 0
    %645 = vmatprep.subr.bf16.mxu0 0
    %646 = vmatpush1.bf16.msra.mxu0 %v629
    %647 = vmatprep.subr.bf16.mxu0 0
    %648 = vmatpush2.bf16.msra.mxu0 0
    %649 = vmatprep.subr.bf16.mxu0 0
    %650 = vmatpush2.bf16.msra.mxu0 0
    %651 = vmatprep.subr.bf16.mxu0 0
    %652 = vmatpush2.bf16.msra.mxu0 0
    %653 = vmatprep.subr.bf16.mxu0 0
    %654 = vmatpush2.bf16.msra.mxu0 0
    %655 = vmatprep.subr.bf16.mxu0 0
    %656 = vmatpush2.bf16.msra.mxu0 0
    %657 = vmatprep.subr.bf16.mxu0 0
    %658 = vmatpush2.bf16.msra.mxu0 0
    %659 = vmatprep.subr.bf16.mxu0 0
    %660 = vmatpush2.bf16.msra.mxu0 0
    %661 = vmatprep.subr.bf16.mxu0 0
    %662 = vmatpush2.bf16.msra.mxu0 0
    %663 = vmatprep.mubr.bf16.mxu0 0
    %664 = vmatmul.mubr.bf16.gmra.mxu0 %v626
    %v665 = vpop.f32.mrf.mxu0
    %v666 = vadd.f32 0.0, %v665
    %v667 = vpop.f32.mrf.mxu0
    %v668 = vpop.f32.mrf.mxu0
    %v669 = vpop.f32.mrf.mxu0
    %670 = vdwg.mxu0
    %v671 = vpack.c.bf16 %v666, %v666
    %672 = vrot.lane.b32.xlu0 %v559, 80
    %v673 = vpop.permute.xlu0 %672
    %674 = vrot.lane.b32.xlu0 %v559, 64
    %v675 = vpop.permute.xlu0 %674
    %v677 = vsel %vm248, %v673, 0
    %v680 = vsel %vm248, %v675, 0
    %682 = vmatprep.subr.bf16.mxu0 0
    %683 = vmatpush1.bf16.xpose.msra.mxu0 0
    %684 = vmatprep.subr.bf16.mxu0 0
    %685 = vmatpush1.bf16.xpose.msra.mxu0 0
    %686 = vmatprep.subr.bf16.mxu0 0
    %687 = vmatpush1.bf16.xpose.msra.mxu0 0
    %688 = vmatprep.subr.bf16.mxu0 0
    %689 = vmatpush1.bf16.xpose.msra.mxu0 0
    %690 = vmatprep.subr.bf16.mxu0 0
    %691 = vmatpush1.bf16.xpose.msra.mxu0 0
    %692 = vmatprep.subr.bf16.mxu0 0
    %693 = vmatpush1.bf16.xpose.msra.mxu0 0
    %694 = vmatprep.subr.bf16.mxu0 0
    %695 = vmatpush1.bf16.xpose.msra.mxu0 0
    %696 = vmatprep.subr.bf16.mxu0 0
    %697 = vmatpush1.bf16.xpose.msra.mxu0 %v680
    %698 = vmatprep.subr.bf16.mxu0 0
    %699 = vmatpush2.bf16.xpose.msra.mxu0 0
    %700 = vmatprep.subr.bf16.mxu0 0
    %701 = vmatpush2.bf16.xpose.msra.mxu0 0
    %702 = vmatprep.subr.bf16.mxu0 0
    %703 = vmatpush2.bf16.xpose.msra.mxu0 0
    %704 = vmatprep.subr.bf16.mxu0 0
    %705 = vmatpush2.bf16.xpose.msra.mxu0 0
    %706 = vmatprep.subr.bf16.mxu0 0
    %707 = vmatpush2.bf16.xpose.msra.mxu0 0
    %708 = vmatprep.subr.bf16.mxu0 0
    %709 = vmatpush2.bf16.xpose.msra.mxu0 0
    %710 = vmatprep.subr.bf16.mxu0 0
    %711 = vmatpush2.bf16.xpose.msra.mxu0 0
    %712 = vmatprep.subr.bf16.mxu0 0
    %713 = vmatpush2.bf16.xpose.msra.mxu0 0
    %714 = vmatprep.mubr.bf16.mxu0 0
    %715 = vmatmul.mubr.bf16.gmra.mxu0 %v677
    %v716 = vpop.f32.mrf.mxu0
    %v717 = vadd.f32 0.0, %v716
    %v718 = vpop.f32.mrf.mxu0
    %v719 = vpop.f32.mrf.mxu0
    %v720 = vpop.f32.mrf.mxu0
    %721 = vdwg.mxu0
    %v722 = vmul.f32 %v717, 0.25
    %v723 = vadd.f32 %v722, %v181
    %v724 = vsel %vm297, %v723, -inf
    %725 = vmax.xlane.f32.xlu0 %v724
    %v726 = vpop.xlane.xlu0 %725
    %v727 = vsub.f32 %v723, %v726
    %v728 = vmul.f32 %v727, 1.442695
    %v729 = vpow.pop %v728
    %v730 = vsel %vm297, %v729, 0.0
    %731 = vadd.xlane.f32.xlu0 %v730
    %v732 = vpop.xlane.xlu0 %731
    %v733 = vrcp.pop %v732
    %v734 = vmul.f32 %v729, %v733
    %v735 = vpack.c.bf16 %v734, %v734
    %736 = vrot.lane.b32.xlu0 %v559, 48
    %v737 = vpop.permute.xlu0 %736
    %v739 = vsel %vm297, %v735, 0
    %v742 = vsel %vm315, %v737, 0
    %744 = vmatprep.subr.bf16.mxu0 0
    %745 = vmatpush1.bf16.msra.mxu0 0
    %746 = vmatprep.subr.bf16.mxu0 0
    %747 = vmatpush1.bf16.msra.mxu0 0
    %748 = vmatprep.subr.bf16.mxu0 0
    %749 = vmatpush1.bf16.msra.mxu0 0
    %750 = vmatprep.subr.bf16.mxu0 0
    %751 = vmatpush1.bf16.msra.mxu0 0
    %752 = vmatprep.subr.bf16.mxu0 0
    %753 = vmatpush1.bf16.msra.mxu0 0
    %754 = vmatprep.subr.bf16.mxu0 0
    %755 = vmatpush1.bf16.msra.mxu0 0
    %756 = vmatprep.subr.bf16.mxu0 0
    %757 = vmatpush1.bf16.msra.mxu0 0
    %758 = vmatprep.subr.bf16.mxu0 0
    %759 = vmatpush1.bf16.msra.mxu0 %v742
    %760 = vmatprep.subr.bf16.mxu0 0
    %761 = vmatpush2.bf16.msra.mxu0 0
    %762 = vmatprep.subr.bf16.mxu0 0
    %763 = vmatpush2.bf16.msra.mxu0 0
    %764 = vmatprep.subr.bf16.mxu0 0
    %765 = vmatpush2.bf16.msra.mxu0 0
    %766 = vmatprep.subr.bf16.mxu0 0
    %767 = vmatpush2.bf16.msra.mxu0 0
    %768 = vmatprep.subr.bf16.mxu0 0
    %769 = vmatpush2.bf16.msra.mxu0 0
    %770 = vmatprep.subr.bf16.mxu0 0
    %771 = vmatpush2.bf16.msra.mxu0 0
    %772 = vmatprep.subr.bf16.mxu0 0
    %773 = vmatpush2.bf16.msra.mxu0 0
    %774 = vmatprep.subr.bf16.mxu0 0
    %775 = vmatpush2.bf16.msra.mxu0 0
    %776 = vmatprep.mubr.bf16.mxu0 0
    %777 = vmatmul.mubr.bf16.gmra.mxu0 %v739
    %v778 = vpop.f32.mrf.mxu0
    %v779 = vadd.f32 0.0, %v778
    %v780 = vpop.f32.mrf.mxu0
    %v781 = vpop.f32.mrf.mxu0
    %v782 = vpop.f32.mrf.mxu0
    %783 = vdwg.mxu0
    %v784 = vpack.c.bf16 %v779, %v779
    %v786 = vsel %vm248, %v784, 0
    %788 = vmatprep.subr.bf16.mxu0 0
    %789 = vmatpush1.bf16.msra.mxu0 0
    %790 = vmatprep.subr.bf16.mxu0 0
    %791 = vmatpush1.bf16.msra.mxu0 0
    %792 = vmatprep.subr.bf16.mxu0 0
    %793 = vmatpush1.bf16.msra.mxu0 0
    %794 = vmatprep.subr.bf16.mxu0 0
    %795 = vmatpush1.bf16.msra.mxu0 0
    %796 = vmatprep.subr.bf16.mxu0 0
    %797 = vmatpush1.bf16.msra.mxu0 0
    %798 = vmatprep.subr.bf16.mxu0 0
    %799 = vmatpush1.bf16.msra.mxu0 0
    %800 = vmatprep.subr.bf16.mxu0 0
    %801 = vmatpush1.bf16.msra.mxu0 0
    %802 = vmatprep.subr.bf16.mxu0 0
    %803 = vmatpush1.bf16.msra.mxu0 %v243
    %804 = vmatprep.subr.bf16.mxu0 0
    %805 = vmatpush2.bf16.msra.mxu0 0
    %806 = vmatprep.subr.bf16.mxu0 0
    %807 = vmatpush2.bf16.msra.mxu0 0
    %808 = vmatprep.subr.bf16.mxu0 0
    %809 = vmatpush2.bf16.msra.mxu0 0
    %810 = vmatprep.subr.bf16.mxu0 0
    %811 = vmatpush2.bf16.msra.mxu0 0
    %812 = vmatprep.subr.bf16.mxu0 0
    %813 = vmatpush2.bf16.msra.mxu0 0
    %814 = vmatprep.subr.bf16.mxu0 0
    %815 = vmatpush2.bf16.msra.mxu0 0
    %816 = vmatprep.subr.bf16.mxu0 0
    %817 = vmatpush2.bf16.msra.mxu0 0
    %818 = vmatprep.subr.bf16.mxu0 0
    %819 = vmatpush2.bf16.msra.mxu0 0
    %820 = vmatprep.mubr.bf16.mxu0 0
    %821 = vmatmul.mubr.bf16.gmra.mxu0 %v786
    %v822 = vpop.f32.mrf.mxu0
    %v823 = vadd.f32 0.0, %v822
    %v824 = vpop.f32.mrf.mxu0
    %v825 = vpop.f32.mrf.mxu0
    %v826 = vpop.f32.mrf.mxu0
    %827 = vdwg.mxu0
    %v829 = vsel %vm248, %v671, 0
    %831 = vmatprep.subr.bf16.mxu0 0
    %832 = vmatpush1.bf16.msra.mxu0 0
    %833 = vmatprep.subr.bf16.mxu0 0
    %834 = vmatpush1.bf16.msra.mxu0 0
    %835 = vmatprep.subr.bf16.mxu0 0
    %836 = vmatpush1.bf16.msra.mxu0 0
    %837 = vmatprep.subr.bf16.mxu0 0
    %838 = vmatpush1.bf16.msra.mxu0 0
    %839 = vmatprep.subr.bf16.mxu0 0
    %840 = vmatpush1.bf16.msra.mxu0 0
    %841 = vmatprep.subr.bf16.mxu0 0
    %842 = vmatpush1.bf16.msra.mxu0 0
    %843 = vmatprep.subr.bf16.mxu0 0
    %844 = vmatpush1.bf16.msra.mxu0 0
    %845 = vmatprep.subr.bf16.mxu0 0
    %846 = vmatpush1.bf16.msra.mxu0 %v242
    %847 = vmatprep.subr.bf16.mxu0 0
    %848 = vmatpush2.bf16.msra.mxu0 0
    %849 = vmatprep.subr.bf16.mxu0 0
    %850 = vmatpush2.bf16.msra.mxu0 0
    %851 = vmatprep.subr.bf16.mxu0 0
    %852 = vmatpush2.bf16.msra.mxu0 0
    %853 = vmatprep.subr.bf16.mxu0 0
    %854 = vmatpush2.bf16.msra.mxu0 0
    %855 = vmatprep.subr.bf16.mxu0 0
    %856 = vmatpush2.bf16.msra.mxu0 0
    %857 = vmatprep.subr.bf16.mxu0 0
    %858 = vmatpush2.bf16.msra.mxu0 0
    %859 = vmatprep.subr.bf16.mxu0 0
    %860 = vmatpush2.bf16.msra.mxu0 0
    %861 = vmatprep.subr.bf16.mxu0 0
    %862 = vmatpush2.bf16.msra.mxu0 0
    %863 = vmatprep.mubr.bf16.mxu0 0
    %864 = vmatmul.mubr.bf16.gmra.mxu0 %v829
    %v865 = vpop.f32.mrf.mxu0
    %v866 = vadd.f32 %v823, %v865
    %v867 = vpop.f32.mrf.mxu0
    %v868 = vpop.f32.mrf.mxu0
    %v869 = vpop.f32.mrf.mxu0
    %870 = vdwg.mxu0
    %v871 = vld [vmem:[#allocation8 + $0xe8] sm:$0x1]
    %v872 = vlaneseq
    %v873 = vshrl.u32 %v872, 7
    %v874 = vsub.s32 0, %v873
    %v875 = vrot.slane %v871, %v874
    %v876 = vadd.f32 %v554, %v875
    %v877 = vadd.f32 %v866, %v875
    %v878 = vadd.f32 %v876, %v169
    %v879 = vadd.f32 %v877, %v170
    %v880 = vld [vmem:[#allocation8 + $0xf0] sm:$0x1]
    %v881 = vld [vmem:[#allocation8 + $0xf8] sm:$0x1]
    %v882 = vsel %vm131, %v878, 0.0
    %883 = vadd.xlane.f32.xlu0 %v882
    %v884 = vpop.xlane.xlu0 %883
    %v885 = vsel %vm131, %v879, 0.0
    %886 = vadd.xlane.f32.xlu0 %v885
    %v887 = vpop.xlane.xlu0 %886
    %v888 = vmul.f32 %v884, %v138
    %v889 = vmul.f32 %v887, %v138
    %v890 = vsub.f32 %v878, %v888
    %v891 = vsub.f32 %v879, %v889
    %v892 = vmul.f32 %v890, %v890
    %v893 = vmul.f32 %v891, %v891
    %v894 = vsel %vm131, %v892, 0.0
    %895 = vadd.xlane.f32.xlu0 %v894
    %v896 = vpop.xlane.xlu0 %895
    %v897 = vsel %vm131, %v893, 0.0
    %898 = vadd.xlane.f32.xlu0 %v897
    %v899 = vpop.xlane.xlu0 %898
    %v900 = vmul.f32 %v896, %v138
    %v901 = vmul.f32 %v899, %v138
    %v902 = vadd.f32 %v900, 1e-12
    %v903 = vadd.f32 %v901, 1e-12
    %v904 = vrsqrt.pop %v902
    %v905 = vrsqrt.pop %v903
    %v906 = vmul.f32 %v890, %v904
    %v907 = vmul.f32 %v891, %v905
    %v908 = vlaneseq
    %v909 = vshrl.u32 %v908, 7
    %v910 = vsub.s32 0, %v909
    %v911 = vrot.slane %v880, %v910
    %v912 = vmul.f32 %v906, %v911
    %v913 = vmul.f32 %v907, %v911
    %v914 = vlaneseq
    %v915 = vshrl.u32 %v914, 7
    %v916 = vsub.s32 0, %v915
    %v917 = vrot.slane %v881, %v916
    %v918 = vadd.f32 %v912, %v917
    %v919 = vadd.f32 %v913, %v917
    %v920 = vpack.c.bf16 %v919, %v918
    %v921 = vld [vmem:[#allocation8 + $0x100] sm:$0xff]
    %v922 = vld [vmem:[#allocation8 + $0x108] sm:$0xff]
    %v923 = vld [vmem:[#allocation8 + $0x110] sm:$0xff]
    %v924 = vld [vmem:[#allocation8 + $0x118] sm:$0xff]
    %v925 = vpack.c.bf16 %v922, %v921
    %v926 = vpack.c.bf16 %v924, %v923
    %v927 = vld [vmem:[#allocation8 + $0x120] sm:$0x1]
    %v928 = vlaneseq
    %v929 = vshrl.u32 %v928, 7
    %v930 = vsub.s32 0, %v929
    %v931 = vrot.slane %v927, %v930
    %v933 = vsel %vm131, %v920, 0
    %935 = vmatprep.subr.bf16.mxu0 0
    %936 = vmatpush1.bf16.msra.mxu0 0
    %937 = vmatprep.subr.bf16.mxu0 0
    %938 = vmatpush1.bf16.msra.mxu0 0
    %939 = vmatprep.subr.bf16.mxu0 0
    %940 = vmatpush1.bf16.msra.mxu0 0
    %941 = vmatprep.subr.bf16.mxu0 0
    %942 = vmatpush1.bf16.msra.mxu0 0
    %943 = vmatprep.subr.bf16.mxu0 0
    %944 = vmatpush1.bf16.msra.mxu0 0
    %945 = vmatprep.subr.bf16.mxu0 0
    %946 = vmatpush1.bf16.msra.mxu0 0
    %947 = vmatprep.subr.bf16.mxu0 0
    %948 = vmatpush1.bf16.msra.mxu0 %v926
    %949 = vmatprep.subr.bf16.mxu0 0
    %950 = vmatpush1.bf16.msra.mxu0 %v925
    %951 = vmatprep.subr.bf16.mxu0 0
    %952 = vmatpush2.bf16.msra.mxu0 0
    %953 = vmatprep.subr.bf16.mxu0 0
    %954 = vmatpush2.bf16.msra.mxu0 0
    %955 = vmatprep.subr.bf16.mxu0 0
    %956 = vmatpush2.bf16.msra.mxu0 0
    %957 = vmatprep.subr.bf16.mxu0 0
    %958 = vmatpush2.bf16.msra.mxu0 0
    %959 = vmatprep.subr.bf16.mxu0 0
    %960 = vmatpush2.bf16.msra.mxu0 0
    %961 = vmatprep.subr.bf16.mxu0 0
    %962 = vmatpush2.bf16.msra.mxu0 0
    %963 = vmatprep.subr.bf16.mxu0 0
    %964 = vmatpush2.bf16.msra.mxu0 0
    %965 = vmatprep.subr.bf16.mxu0 0
    %966 = vmatpush2.bf16.msra.mxu0 0
    %967 = vmatprep.mubr.bf16.mxu0 0
    %968 = vmatmul.mubr.bf16.gmra.mxu0 %v933
    %v969 = vpop.f32.mrf.mxu0
    %v970 = vadd.f32 %v931, %v969
    %v971 = vpop.f32.mrf.mxu0
    %v972 = vpop.f32.mrf.mxu0
    %v973 = vadd.f32 %v931, %v972
    %v974 = vpop.f32.mrf.mxu0
    %975 = vdwg.mxu0
    %v976 = vmul.f32 %v970, %v970
    %v977 = vmul.f32 %v973, %v973
    %v978 = vmul.f32 %v970, %v976
    %v979 = vmul.f32 %v973, %v977
    %v980 = vmul.f32 %v978, 0.044715
    %v981 = vmul.f32 %v979, 0.044715
    %v982 = vadd.f32 %v970, %v980
    %v983 = vadd.f32 %v973, %v981
    %v984 = vmul.f32 %v982, 0.7978846
    %v985 = vmul.f32 %v983, 0.7978846
    %v986 = vtanh.pop %v984
    %v987 = vtanh.pop %v985
    %v988 = vadd.f32 %v986, 1.0
    %v989 = vadd.f32 %v987, 1.0
    %v990 = vmul.f32 %v988, 0.5
    %v991 = vmul.f32 %v989, 0.5
    %v992 = vmul.f32 %v970, %v990
    %v993 = vmul.f32 %v973, %v991
    %v994 = vpack.c.bf16 %v993, %v992
    %v995 = vld [vmem:[#allocation8 + $0x128] sm:$0xff]
    %v996 = vld [vmem:[#allocation8 + $0x130] sm:$0xff]
    %v997 = vld [vmem:[#allocation8 + $0x138] sm:$0xff]
    %v998 = vld [vmem:[#allocation8 + $0x140] sm:$0xff]
    %v999 = vld [vmem:[#allocation8 + $0x148] sm:$0xff]
    %v1000 = vld [vmem:[#allocation8 + $0x150] sm:$0xff]
    %v1001 = vld [vmem:[#allocation8 + $0x158] sm:$0xff]
    %v1002 = vld [vmem:[#allocation8 + $0x160] sm:$0xff]
    %v1003 = vpack.c.bf16 %v996, %v995
    %v1004 = vpack.c.bf16 %v998, %v997
    %v1005 = vpack.c.bf16 %v1000, %v999
    %v1006 = vpack.c.bf16 %v1002, %v1001
    %v1007 = vld [vmem:[#allocation8 + $0x168] sm:$0x1]
    %v1008 = vlaneseq
    %v1009 = vshrl.u32 %v1008, 7
    %v1010 = vsub.s32 0, %v1009
    %v1011 = vrot.slane %v1007, %v1010
    %vm1012 = vcmask 523264
    %v1014 = vsel %vm1012, %v994, 0
    %1016 = vmatprep.subr.bf16.mxu0 0
    %1017 = vmatpush1.bf16.msra.mxu0 0
    %1018 = vmatprep.subr.bf16.mxu0 0
    %1019 = vmatpush1.bf16.msra.mxu0 0
    %1020 = vmatprep.subr.bf16.mxu0 0
    %1021 = vmatpush1.bf16.msra.mxu0 0
    %1022 = vmatprep.subr.bf16.mxu0 0
    %1023 = vmatpush1.bf16.msra.mxu0 0
    %1024 = vmatprep.subr.bf16.mxu0 0
    %1025 = vmatpush1.bf16.msra.mxu0 %v1006
    %1026 = vmatprep.subr.bf16.mxu0 0
    %1027 = vmatpush1.bf16.msra.mxu0 %v1005
    %1028 = vmatprep.subr.bf16.mxu0 0
    %1029 = vmatpush1.bf16.msra.mxu0 %v1004
    %1030 = vmatprep.subr.bf16.mxu0 0
    %1031 = vmatpush1.bf16.msra.mxu0 %v1003
    %1032 = vmatprep.subr.bf16.mxu0 0
    %1033 = vmatpush2.bf16.msra.mxu0 0
    %1034 = vmatprep.subr.bf16.mxu0 0
    %1035 = vmatpush2.bf16.msra.mxu0 0
    %1036 = vmatprep.subr.bf16.mxu0 0
    %1037 = vmatpush2.bf16.msra.mxu0 0
    %1038 = vmatprep.subr.bf16.mxu0 0
    %1039 = vmatpush2.bf16.msra.mxu0 0
    %1040 = vmatprep.subr.bf16.mxu0 0
    %1041 = vmatpush2.bf16.msra.mxu0 0
    %1042 = vmatprep.subr.bf16.mxu0 0
    %1043 = vmatpush2.bf16.msra.mxu0 0
    %1044 = vmatprep.subr.bf16.mxu0 0
    %1045 = vmatpush2.bf16.msra.mxu0 0
    %1046 = vmatprep.subr.bf16.mxu0 0
    %1047 = vmatpush2.bf16.msra.mxu0 0
    %1048 = vmatprep.mubr.bf16.mxu0 0
    %1049 = vmatmul.mubr.bf16.gmra.mxu0 %v1014
    %v1050 = vpop.f32.mrf.mxu0
    %v1051 = vadd.f32 %v1011, %v1050
    %v1052 = vpop.f32.mrf.mxu0
    %v1053 = vpop.f32.mrf.mxu0
    %v1054 = vadd.f32 %v1011, %v1053
    %v1055 = vpop.f32.mrf.mxu0
    %1056 = vdwg.mxu0
    %v1057 = vadd.f32 %v1051, %v918
    %v1058 = vadd.f32 %v1054, %v919
    %v1059 = vld [vmem:[#allocation8 + $0x170] sm:$0x1]
    %v1060 = vld [vmem:[#allocation8 + $0x178] sm:$0x1]
    %v1061 = vsel %vm131, %v1057, 0.0
    %1062 = vadd.xlane.f32.xlu0 %v1061
    %v1063 = vpop.xlane.xlu0 %1062
    %v1064 = vsel %vm131, %v1058, 0.0
    %1065 = vadd.xlane.f32.xlu0 %v1064
    %v1066 = vpop.xlane.xlu0 %1065
    %v1067 = vmul.f32 %v1063, %v138
    %v1068 = vmul.f32 %v1066, %v138
    %v1069 = vsub.f32 %v1057, %v1067
    %v1070 = vsub.f32 %v1058, %v1068
    %v1071 = vmul.f32 %v1069, %v1069
    %v1072 = vmul.f32 %v1070, %v1070
    %v1073 = vsel %vm131, %v1071, 0.0
    %1074 = vadd.xlane.f32.xlu0 %v1073
    %v1075 = vpop.xlane.xlu0 %1074
    %v1076 = vsel %vm131, %v1072, 0.0
    %1077 = vadd.xlane.f32.xlu0 %v1076
    %v1078 = vpop.xlane.xlu0 %1077
    %v1079 = vmul.f32 %v1075, %v138
    %v1080 = vmul.f32 %v1078, %v138
    %v1081 = vadd.f32 %v1079, 1e-12
    %v1082 = vadd.f32 %v1080, 1e-12
    %v1083 = vrsqrt.pop %v1081
    %v1084 = vrsqrt.pop %v1082
    %v1085 = vmul.f32 %v1069, %v1083
    %v1086 = vmul.f32 %v1070, %v1084
    %v1087 = vlaneseq
    %v1088 = vshrl.u32 %v1087, 7
    %v1089 = vsub.s32 0, %v1088
    %v1090 = vrot.slane %v1059, %v1089
    %v1091 = vmul.f32 %v1085, %v1090
    %v1092 = vmul.f32 %v1086, %v1090
    %v1093 = vlaneseq
    %v1094 = vshrl.u32 %v1093, 7
    %v1095 = vsub.s32 0, %v1094
    %v1096 = vrot.slane %v1060, %v1095
    %v1097 = vadd.f32 %v1091, %v1096
    %v1098 = vadd.f32 %v1092, %v1096
    %v1099 = vpack.c.bf16 %v1098, %v1097
    %v1100 = vld [vmem:[#allocation8 + $0x180] sm:$0xff]
    %v1101 = vld [vmem:[#allocation8 + $0x188] sm:$0xff]
    %v1102 = vld [vmem:[#allocation8 + $0x190] sm:$0xff]
    %v1103 = vld [vmem:[#allocation8 + $0x198] sm:$0xff]
    %v1104 = vpack.c.bf16 %v1101, %v1100
    %v1105 = vpack.c.bf16 %v1103, %v1102
    %v1106 = vld [vmem:[#allocation8 + $0x1a0] sm:$0x1]
    %v1107 = vlaneseq
    %v1108 = vshrl.u32 %v1107, 7
    %v1109 = vsub.s32 0, %v1108
    %v1110 = vrot.slane %v1106, %v1109
    %v1112 = vsel %vm131, %v1099, 0
    %1114 = vmatprep.subr.bf16.mxu0 0
    %1115 = vmatpush1.bf16.msra.mxu0 0
    %1116 = vmatprep.subr.bf16.mxu0 0
    %1117 = vmatpush1.bf16.msra.mxu0 0
    %1118 = vmatprep.subr.bf16.mxu0 0
    %1119 = vmatpush1.bf16.msra.mxu0 0
    %1120 = vmatprep.subr.bf16.mxu0 0
    %1121 = vmatpush1.bf16.msra.mxu0 0
    %1122 = vmatprep.subr.bf16.mxu0 0
    %1123 = vmatpush1.bf16.msra.mxu0 0
    %1124 = vmatprep.subr.bf16.mxu0 0
    %1125 = vmatpush1.bf16.msra.mxu0 0
    %1126 = vmatprep.subr.bf16.mxu0 0
    %1127 = vmatpush1.bf16.msra.mxu0 %v1105
    %1128 = vmatprep.subr.bf16.mxu0 0
    %1129 = vmatpush1.bf16.msra.mxu0 %v1104
    %1130 = vmatprep.subr.bf16.mxu0 0
    %1131 = vmatpush2.bf16.msra.mxu0 0
    %1132 = vmatprep.subr.bf16.mxu0 0
    %1133 = vmatpush2.bf16.msra.mxu0 0
    %1134 = vmatprep.subr.bf16.mxu0 0
    %1135 = vmatpush2.bf16.msra.mxu0 0
    %1136 = vmatprep.subr.bf16.mxu0 0
    %1137 = vmatpush2.bf16.msra.mxu0 0
    %1138 = vmatprep.subr.bf16.mxu0 0
    %1139 = vmatpush2.bf16.msra.mxu0 0
    %1140 = vmatprep.subr.bf16.mxu0 0
    %1141 = vmatpush2.bf16.msra.mxu0 0
    %1142 = vmatprep.subr.bf16.mxu0 0
    %1143 = vmatpush2.bf16.msra.mxu0 0
    %1144 = vmatprep.subr.bf16.mxu0 0
    %1145 = vmatpush2.bf16.msra.mxu0 0
    %1146 = vmatprep.mubr.bf16.mxu0 0
    %1147 = vmatmul.mubr.bf16.gmra.mxu0 %v1112
    %v1148 = vpop.f32.mrf.mxu0
    %v1149 = vadd.f32 %v1110, %v1148
    %v1150 = vpop.f32.mrf.mxu0
    %v1151 = vpop.f32.mrf.mxu0
    %v1152 = vadd.f32 %v1110, %v1151
    %v1153 = vpop.f32.mrf.mxu0
    %1154 = vdwg.mxu0
    %v1155 = vld [vmem:[#allocation8 + $0x1a8] sm:$0xff]
    %v1156 = vld [vmem:[#allocation8 + $0x1b0] sm:$0xff]
    %v1157 = vld [vmem:[#allocation8 + $0x1b8] sm:$0xff]
    %v1158 = vld [vmem:[#allocation8 + $0x1c0] sm:$0xff]
    %v1159 = vpack.c.bf16 %v1156, %v1155
    %v1160 = vpack.c.bf16 %v1158, %v1157
    %v1161 = vpack.c.bf16 %v1149, %v1149
    %1163 = vrot.lane.b32.xlu0 %v1161, 112
    %v1164 = vpop.permute.xlu0 %1163
    %v1166 = vsel %vm248, %v1161, 0
    %v1169 = vsel %vm248, %v1164, 0
    %1171 = vmatprep.subr.bf16.mxu0 0
    %1172 = vmatpush1.bf16.xpose.msra.mxu0 0
    %1173 = vmatprep.subr.bf16.mxu0 0
    %1174 = vmatpush1.bf16.xpose.msra.mxu0 0
    %1175 = vmatprep.subr.bf16.mxu0 0
    %1176 = vmatpush1.bf16.xpose.msra.mxu0 0
    %1177 = vmatprep.subr.bf16.mxu0 0
    %1178 = vmatpush1.bf16.xpose.msra.mxu0 0
    %1179 = vmatprep.subr.bf16.mxu0 0
    %1180 = vmatpush1.bf16.xpose.msra.mxu0 0
    %1181 = vmatprep.subr.bf16.mxu0 0
    %1182 = vmatpush1.bf16.xpose.msra.mxu0 0
    %1183 = vmatprep.subr.bf16.mxu0 0
    %1184 = vmatpush1.bf16.xpose.msra.mxu0 0
    %1185 = vmatprep.subr.bf16.mxu0 0
    %1186 = vmatpush1.bf16.xpose.msra.mxu0 %v1169
    %1187 = vmatprep.subr.bf16.mxu0 0
    %1188 = vmatpush2.bf16.xpose.msra.mxu0 0
    %1189 = vmatprep.subr.bf16.mxu0 0
    %1190 = vmatpush2.bf16.xpose.msra.mxu0 0
    %1191 = vmatprep.subr.bf16.mxu0 0
    %1192 = vmatpush2.bf16.xpose.msra.mxu0 0
    %1193 = vmatprep.subr.bf16.mxu0 0
    %1194 = vmatpush2.bf16.xpose.msra.mxu0 0
    %1195 = vmatprep.subr.bf16.mxu0 0
    %1196 = vmatpush2.bf16.xpose.msra.mxu0 0
    %1197 = vmatprep.subr.bf16.mxu0 0
    %1198 = vmatpush2.bf16.xpose.msra.mxu0 0
    %1199 = vmatprep.subr.bf16.mxu0 0
    %1200 = vmatpush2.bf16.xpose.msra.mxu0 0
    %1201 = vmatprep.subr.bf16.mxu0 0
    %1202 = vmatpush2.bf16.xpose.msra.mxu0 0
    %1203 = vmatprep.mubr.bf16.mxu0 0
    %1204 = vmatmul.mubr.bf16.gmra.mxu0 %v1166
    %v1205 = vpop.f32.mrf.mxu0
    %v1206 = vadd.f32 0.0, %v1205
    %v1207 = vpop.f32.mrf.mxu0
    %v1208 = vpop.f32.mrf.mxu0
    %v1209 = vpop.f32.mrf.mxu0
    %1210 = vdwg.mxu0
    %v1211 = vmul.f32 %v1206, 0.25
    %v1212 = vadd.f32 %v1211, %v177
    %v1213 = vsel %vm297, %v1212, -inf
    %1214 = vmax.xlane.f32.xlu0 %v1213
    %v1215 = vpop.xlane.xlu0 %1214
    %v1216 = vsub.f32 %v1212, %v1215
    %v1217 = vmul.f32 %v1216, 1.442695
    %v1218 = vpow.pop %v1217
    %v1219 = vsel %vm297, %v1218, 0.0
    %1220 = vadd.xlane.f32.xlu0 %v1219
    %v1221 = vpop.xlane.xlu0 %1220
    %v1222 = vrcp.pop %v1221
    %v1223 = vmul.f32 %v1218, %v1222
    %v1224 = vpack.c.bf16 %v1223, %v1223
    %1225 = vrot.lane.b32.xlu0 %v1161, 96
    %v1226 = vpop.permute.xlu0 %1225
    %v1228 = vsel %vm297, %v1224, 0
    %v1231 = vsel %vm315, %v1226, 0
    %1233 = vmatprep.subr.bf16.mxu0 0
    %1234 = vmatpush1.bf16.msra.mxu0 0
    %1235 = vmatprep.subr.bf16.mxu0 0
    %1236 = vmatpush1.bf16.msra.mxu0 0
    %1237 = vmatprep.subr.bf16.mxu0 0
    %1238 = vmatpush1.bf16.msra.mxu0 0
    %1239 = vmatprep.subr.bf16.mxu0 0
    %1240 = vmatpush1.bf16.msra.mxu0 0
    %1241 = vmatprep.subr.bf16.mxu0 0
    %1242 = vmatpush1.bf16.msra.mxu0 0
    %1243 = vmatprep.subr.bf16.mxu0 0
    %1244 = vmatpush1.bf16.msra.mxu0 0
    %1245 = vmatprep.subr.bf16.mxu0 0
    %1246 = vmatpush1.bf16.msra.mxu0 0
    %1247 = vmatprep.subr.bf16.mxu0 0
    %1248 = vmatpush1.bf16.msra.mxu0 %v1231
    %1249 = vmatprep.subr.bf16.mxu0 0
    %1250 = vmatpush2.bf16.msra.mxu0 0
    %1251 = vmatprep.subr.bf16.mxu0 0
    %1252 = vmatpush2.bf16.msra.mxu0 0
    %1253 = vmatprep.subr.bf16.mxu0 0
    %1254 = vmatpush2.bf16.msra.mxu0 0
    %1255 = vmatprep.subr.bf16.mxu0 0
    %1256 = vmatpush2.bf16.msra.mxu0 0
    %1257 = vmatprep.subr.bf16.mxu0 0
    %1258 = vmatpush2.bf16.msra.mxu0 0
    %1259 = vmatprep.subr.bf16.mxu0 0
    %1260 = vmatpush2.bf16.msra.mxu0 0
    %1261 = vmatprep.subr.bf16.mxu0 0
    %1262 = vmatpush2.bf16.msra.mxu0 0
    %1263 = vmatprep.subr.bf16.mxu0 0
    %1264 = vmatpush2.bf16.msra.mxu0 0
    %1265 = vmatprep.mubr.bf16.mxu0 0
    %1266 = vmatmul.mubr.bf16.gmra.mxu0 %v1228
    %v1267 = vpop.f32.mrf.mxu0
    %v1268 = vadd.f32 0.0, %v1267
    %v1269 = vpop.f32.mrf.mxu0
    %v1270 = vpop.f32.mrf.mxu0
    %v1271 = vpop.f32.mrf.mxu0
    %1272 = vdwg.mxu0
    %v1273 = vpack.c.bf16 %v1268, %v1268
    %1274 = vrot.lane.b32.xlu0 %v1161, 80
    %v1275 = vpop.permute.xlu0 %1274
    %1276 = vrot.lane.b32.xlu0 %v1161, 64
    %v1277 = vpop.permute.xlu0 %1276
    %v1279 = vsel %vm248, %v1275, 0
    %v1282 = vsel %vm248, %v1277, 0
    %1284 = vmatprep.subr.bf16.mxu0 0
    %1285 = vmatpush1.bf16.xpose.msra.mxu0 0
    %1286 = vmatprep.subr.bf16.mxu0 0
    %1287 = vmatpush1.bf16.xpose.msra.mxu0 0
    %1288 = vmatprep.subr.bf16.mxu0 0
    %1289 = vmatpush1.bf16.xpose.msra.mxu0 0
    %1290 = vmatprep.subr.bf16.mxu0 0
    %1291 = vmatpush1.bf16.xpose.msra.mxu0 0
    %1292 = vmatprep.subr.bf16.mxu0 0
    %1293 = vmatpush1.bf16.xpose.msra.mxu0 0
    %1294 = vmatprep.subr.bf16.mxu0 0
    %1295 = vmatpush1.bf16.xpose.msra.mxu0 0
    %1296 = vmatprep.subr.bf16.mxu0 0
    %1297 = vmatpush1.bf16.xpose.msra.mxu0 0
    %1298 = vmatprep.subr.bf16.mxu0 0
    %1299 = vmatpush1.bf16.xpose.msra.mxu0 %v1282
    %1300 = vmatprep.subr.bf16.mxu0 0
    %1301 = vmatpush2.bf16.xpose.msra.mxu0 0
    %1302 = vmatprep.subr.bf16.mxu0 0
    %1303 = vmatpush2.bf16.xpose.msra.mxu0 0
    %1304 = vmatprep.subr.bf16.mxu0 0
    %1305 = vmatpush2.bf16.xpose.msra.mxu0 0
    %1306 = vmatprep.subr.bf16.mxu0 0
    %1307 = vmatpush2.bf16.xpose.msra.mxu0 0
    %1308 = vmatprep.subr.bf16.mxu0 0
    %1309 = vmatpush2.bf16.xpose.msra.mxu0 0
    %1310 = vmatprep.subr.bf16.mxu0 0
    %1311 = vmatpush2.bf16.xpose.msra.mxu0 0
    %1312 = vmatprep.subr.bf16.mxu0 0
    %1313 = vmatpush2.bf16.xpose.msra.mxu0 0
    %1314 = vmatprep.subr.bf16.mxu0 0
    %1315 = vmatpush2.bf16.xpose.msra.mxu0 0
    %1316 = vmatprep.mubr.bf16.mxu0 0
    %1317 = vmatmul.mubr.bf16.gmra.mxu0 %v1279
    %v1318 = vpop.f32.mrf.mxu0
    %v1319 = vadd.f32 0.0, %v1318
    %v1320 = vpop.f32.mrf.mxu0
    %v1321 = vpop.f32.mrf.mxu0
    %v1322 = vpop.f32.mrf.mxu0
    %1323 = vdwg.mxu0
    %v1324 = vmul.f32 %v1319, 0.25
    %v1325 = vadd.f32 %v1324, %v177
    %v1326 = vsel %vm297, %v1325, -inf
    %1327 = vmax.xlane.f32.xlu0 %v1326
    %v1328 = vpop.xlane.xlu0 %1327
    %v1329 = vsub.f32 %v1325, %v1328
    %v1330 = vmul.f32 %v1329, 1.442695
    %v1331 = vpow.pop %v1330
    %v1332 = vsel %vm297, %v1331, 0.0
    %1333 = vadd.xlane.f32.xlu0 %v1332
    %v1334 = vpop.xlane.xlu0 %1333
    %v1335 = vrcp.pop %v1334
    %v1336 = vmul.f32 %v1331, %v1335
    %v1337 = vpack.c.bf16 %v1336, %v1336
    %1338 = vrot.lane.b32.xlu0 %v1161, 48
    %v1339 = vpop.permute.xlu0 %1338
    %v1341 = vsel %vm297, %v1337, 0
    %v1344 = vsel %vm315, %v1339, 0
    %1346 = vmatprep.subr.bf16.mxu0 0
    %1347 = vmatpush1.bf16.msra.mxu0 0
    %1348 = vmatprep.subr.bf16.mxu0 0
    %1349 = vmatpush1.bf16.msra.mxu0 0
    %1350 = vmatprep.subr.bf16.mxu0 0
    %1351 = vmatpush1.bf16.msra.mxu0 0
    %1352 = vmatprep.subr.bf16.mxu0 0
    %1353 = vmatpush1.bf16.msra.mxu0 0
    %1354 = vmatprep.subr.bf16.mxu0 0
    %1355 = vmatpush1.bf16.msra.mxu0 0
    %1356 = vmatprep.subr.bf16.mxu0 0
    %1357 = vmatpush1.bf16.msra.mxu0 0
    %1358 = vmatprep.subr.bf16.mxu0 0
    %1359 = vmatpush1.bf16.msra.mxu0 0
    %1360 = vmatprep.subr.bf16.mxu0 0
    %1361 = vmatpush1.bf16.msra.mxu0 %v1344
    %1362 = vmatprep.subr.bf16.mxu0 0
    %1363 = vmatpush2.bf16.msra.mxu0 0
    %1364 = vmatprep.subr.bf16.mxu0 0
    %1365 = vmatpush2.bf16.msra.mxu0 0
    %1366 = vmatprep.subr.bf16.mxu0 0
    %1367 = vmatpush2.bf16.msra.mxu0 0
    %1368 = vmatprep.subr.bf16.mxu0 0
    %1369 = vmatpush2.bf16.msra.mxu0 0
    %1370 = vmatprep.subr.bf16.mxu0 0
    %1371 = vmatpush2.bf16.msra.mxu0 0
    %1372 = vmatprep.subr.bf16.mxu0 0
    %1373 = vmatpush2.bf16.msra.mxu0 0
    %1374 = vmatprep.subr.bf16.mxu0 0
    %1375 = vmatpush2.bf16.msra.mxu0 0
    %1376 = vmatprep.subr.bf16.mxu0 0
    %1377 = vmatpush2.bf16.msra.mxu0 0
    %1378 = vmatprep.mubr.bf16.mxu0 0
    %1379 = vmatmul.mubr.bf16.gmra.mxu0 %v1341
    %v1380 = vpop.f32.mrf.mxu0
    %v1381 = vadd.f32 0.0, %v1380
    %v1382 = vpop.f32.mrf.mxu0
    %v1383 = vpop.f32.mrf.mxu0
    %v1384 = vpop.f32.mrf.mxu0
    %1385 = vdwg.mxu0
    %v1386 = vpack.c.bf16 %v1381, %v1381
    %v1388 = vsel %vm248, %v1386, 0
    %1390 = vmatprep.subr.bf16.mxu0 0
    %1391 = vmatpush1.bf16.msra.mxu0 0
    %1392 = vmatprep.subr.bf16.mxu0 0
    %1393 = vmatpush1.bf16.msra.mxu0 0
    %1394 = vmatprep.subr.bf16.mxu0 0
    %1395 = vmatpush1.bf16.msra.mxu0 0
    %1396 = vmatprep.subr.bf16.mxu0 0
    %1397 = vmatpush1.bf16.msra.mxu0 0
    %1398 = vmatprep.subr.bf16.mxu0 0
    %1399 = vmatpush1.bf16.msra.mxu0 0
    %1400 = vmatprep.subr.bf16.mxu0 0
    %1401 = vmatpush1.bf16.msra.mxu0 0
    %1402 = vmatprep.subr.bf16.mxu0 0
    %1403 = vmatpush1.bf16.msra.mxu0 0
    %1404 = vmatprep.subr.bf16.mxu0 0
    %1405 = vmatpush1.bf16.msra.mxu0 %v1160
    %1406 = vmatprep.subr.bf16.mxu0 0
    %1407 = vmatpush2.bf16.msra.mxu0 0
    %1408 = vmatprep.subr.bf16.mxu0 0
    %1409 = vmatpush2.bf16.msra.mxu0 0
    %1410 = vmatprep.subr.bf16.mxu0 0
    %1411 = vmatpush2.bf16.msra.mxu0 0
    %1412 = vmatprep.subr.bf16.mxu0 0
    %1413 = vmatpush2.bf16.msra.mxu0 0
    %1414 = vmatprep.subr.bf16.mxu0 0
    %1415 = vmatpush2.bf16.msra.mxu0 0
    %1416 = vmatprep.subr.bf16.mxu0 0
    %1417 = vmatpush2.bf16.msra.mxu0 0
    %1418 = vmatprep.subr.bf16.mxu0 0
    %1419 = vmatpush2.bf16.msra.mxu0 0
    %1420 = vmatprep.subr.bf16.mxu0 0
    %1421 = vmatpush2.bf16.msra.mxu0 0
    %1422 = vmatprep.mubr.bf16.mxu0 0
    %1423 = vmatmul.mubr.bf16.gmra.mxu0 %v1388
    %v1424 = vpop.f32.mrf.mxu0
    %v1425 = vadd.f32 0.0, %v1424
    %v1426 = vpop.f32.mrf.mxu0
    %v1427 = vpop.f32.mrf.mxu0
    %v1428 = vpop.f32.mrf.mxu0
    %1429 = vdwg.mxu0
    %v1431 = vsel %vm248, %v1273, 0
    %1433 = vmatprep.subr.bf16.mxu0 0
    %1434 = vmatpush1.bf16.msra.mxu0 0
    %1435 = vmatprep.subr.bf16.mxu0 0
    %1436 = vmatpush1.bf16.msra.mxu0 0
    %1437 = vmatprep.subr.bf16.mxu0 0
    %1438 = vmatpush1.bf16.msra.mxu0 0
    %1439 = vmatprep.subr.bf16.mxu0 0
    %1440 = vmatpush1.bf16.msra.mxu0 0
    %1441 = vmatprep.subr.bf16.mxu0 0
    %1442 = vmatpush1.bf16.msra.mxu0 0
    %1443 = vmatprep.subr.bf16.mxu0 0
    %1444 = vmatpush1.bf16.msra.mxu0 0
    %1445 = vmatprep.subr.bf16.mxu0 0
    %1446 = vmatpush1.bf16.msra.mxu0 0
    %1447 = vmatprep.subr.bf16.mxu0 0
    %1448 = vmatpush1.bf16.msra.mxu0 %v1159
    %1449 = vmatprep.subr.bf16.mxu0 0
    %1450 = vmatpush2.bf16.msra.mxu0 0
    %1451 = vmatprep.subr.bf16.mxu0 0
    %1452 = vmatpush2.bf16.msra.mxu0 0
    %1453 = vmatprep.subr.bf16.mxu0 0
    %1454 = vmatpush2.bf16.msra.mxu0 0
    %1455 = vmatprep.subr.bf16.mxu0 0
    %1456 = vmatpush2.bf16.msra.mxu0 0
    %1457 = vmatprep.subr.bf16.mxu0 0
    %1458 = vmatpush2.bf16.msra.mxu0 0
    %1459 = vmatprep.subr.bf16.mxu0 0
    %1460 = vmatpush2.bf16.msra.mxu0 0
    %1461 = vmatprep.subr.bf16.mxu0 0
    %1462 = vmatpush2.bf16.msra.mxu0 0
    %1463 = vmatprep.subr.bf16.mxu0 0
    %1464 = vmatpush2.bf16.msra.mxu0 0
    %1465 = vmatprep.mubr.bf16.mxu0 0
    %1466 = vmatmul.mubr.bf16.gmra.mxu0 %v1431
    %v1467 = vpop.f32.mrf.mxu0
    %v1468 = vadd.f32 %v1425, %v1467
    %v1469 = vpop.f32.mrf.mxu0
    %v1470 = vpop.f32.mrf.mxu0
    %v1471 = vpop.f32.mrf.mxu0
    %1472 = vdwg.mxu0
    %v1473 = vpack.c.bf16 %v1152, %v1152
    %1475 = vrot.lane.b32.xlu0 %v1473, 112
    %v1476 = vpop.permute.xlu0 %1475
    %v1478 = vsel %vm248, %v1473, 0
    %v1481 = vsel %vm248, %v1476, 0
    %1483 = vmatprep.subr.bf16.mxu0 0
    %1484 = vmatpush1.bf16.xpose.msra.mxu0 0
    %1485 = vmatprep.subr.bf16.mxu0 0
    %1486 = vmatpush1.bf16.xpose.msra.mxu0 0
    %1487 = vmatprep.subr.bf16.mxu0 0
    %1488 = vmatpush1.bf16.xpose.msra.mxu0 0
    %1489 = vmatprep.subr.bf16.mxu0 0
    %1490 = vmatpush1.bf16.xpose.msra.mxu0 0
    %1491 = vmatprep.subr.bf16.mxu0 0
    %1492 = vmatpush1.bf16.xpose.msra.mxu0 0
    %1493 = vmatprep.subr.bf16.mxu0 0
    %1494 = vmatpush1.bf16.xpose.msra.mxu0 0
    %1495 = vmatprep.subr.bf16.mxu0 0
    %1496 = vmatpush1.bf16.xpose.msra.mxu0 0
    %1497 = vmatprep.subr.bf16.mxu0 0
    %1498 = vmatpush1.bf16.xpose.msra.mxu0 %v1481
    %1499 = vmatprep.subr.bf16.mxu0 0
    %1500 = vmatpush2.bf16.xpose.msra.mxu0 0
    %1501 = vmatprep.subr.bf16.mxu0 0
    %1502 = vmatpush2.bf16.xpose.msra.mxu0 0
    %1503 = vmatprep.subr.bf16.mxu0 0
    %1504 = vmatpush2.bf16.xpose.msra.mxu0 0
    %1505 = vmatprep.subr.bf16.mxu0 0
    %1506 = vmatpush2.bf16.xpose.msra.mxu0 0
    %1507 = vmatprep.subr.bf16.mxu0 0
    %1508 = vmatpush2.bf16.xpose.msra.mxu0 0
    %1509 = vmatprep.subr.bf16.mxu0 0
    %1510 = vmatpush2.bf16.xpose.msra.mxu0 0
    %1511 = vmatprep.subr.bf16.mxu0 0
    %1512 = vmatpush2.bf16.xpose.msra.mxu0 0
    %1513 = vmatprep.subr.bf16.mxu0 0
    %1514 = vmatpush2.bf16.xpose.msra.mxu0 0
    %1515 = vmatprep.mubr.bf16.mxu0 0
    %1516 = vmatmul.mubr.bf16.gmra.mxu0 %v1478
    %v1517 = vpop.f32.mrf.mxu0
    %v1518 = vadd.f32 0.0, %v1517
    %v1519 = vpop.f32.mrf.mxu0
    %v1520 = vpop.f32.mrf.mxu0
    %v1521 = vpop.f32.mrf.mxu0
    %1522 = vdwg.mxu0
    %v1523 = vmul.f32 %v1518, 0.25
    %v1524 = vadd.f32 %v1523, %v181
    %v1525 = vsel %vm297, %v1524, -inf
    %1526 = vmax.xlane.f32.xlu0 %v1525
    %v1527 = vpop.xlane.xlu0 %1526
    %v1528 = vsub.f32 %v1524, %v1527
    %v1529 = vmul.f32 %v1528, 1.442695
    %v1530 = vpow.pop %v1529
    %v1531 = vsel %vm297, %v1530, 0.0
    %1532 = vadd.xlane.f32.xlu0 %v1531
    %v1533 = vpop.xlane.xlu0 %1532
    %v1534 = vrcp.pop %v1533
    %v1535 = vmul.f32 %v1530, %v1534
    %v1536 = vpack.c.bf16 %v1535, %v1535
    %1537 = vrot.lane.b32.xlu0 %v1473, 96
    %v1538 = vpop.permute.xlu0 %1537
    %v1540 = vsel %vm297, %v1536, 0
    %v1543 = vsel %vm315, %v1538, 0
    %1545 = vmatprep.subr.bf16.mxu0 0
    %1546 = vmatpush1.bf16.msra.mxu0 0
    %1547 = vmatprep.subr.bf16.mxu0 0
    %1548 = vmatpush1.bf16.msra.mxu0 0
    %1549 = vmatprep.subr.bf16.mxu0 0
    %1550 = vmatpush1.bf16.msra.mxu0 0
    %1551 = vmatprep.subr.bf16.mxu0 0
    %1552 = vmatpush1.bf16.msra.mxu0 0
    %1553 = vmatprep.subr.bf16.mxu0 0
    %1554 = vmatpush1.bf16.msra.mxu0 0
    %1555 = vmatprep.subr.bf16.mxu0 0
    %1556 = vmatpush1.bf16.msra.mxu0 0
    %1557 = vmatprep.subr.bf16.mxu0 0
    %1558 = vmatpush1.bf16.msra.mxu0 0
    %1559 = vmatprep.subr.bf16.mxu0 0
    %1560 = vmatpush1.bf16.msra.mxu0 %v1543
    %1561 = vmatprep.subr.bf16.mxu0 0
    %1562 = vmatpush2.bf16.msra.mxu0 0
    %1563 = vmatprep.subr.bf16.mxu0 0
    %1564 = vmatpush2.bf16.msra.mxu0 0
    %1565 = vmatprep.subr.bf16.mxu0 0
    %1566 = vmatpush2.bf16.msra.mxu0 0
    %1567 = vmatprep.subr.bf16.mxu0 0
    %1568 = vmatpush2.bf16.msra.mxu0 0
    %1569 = vmatprep.subr.bf16.mxu0 0
    %1570 = vmatpush2.bf16.msra.mxu0 0
    %1571 = vmatprep.subr.bf16.mxu0 0
    %1572 = vmatpush2.bf16.msra.mxu0 0
    %1573 = vmatprep.subr.bf16.mxu0 0
    %1574 = vmatpush2.bf16.msra.mxu0 0
    %1575 = vmatprep.subr.bf16.mxu0 0
    %1576 = vmatpush2.bf16.msra.mxu0 0
    %1577 = vmatprep.mubr.bf16.mxu0 0
    %1578 = vmatmul.mubr.bf16.gmra.mxu0 %v1540
    %v1579 = vpop.f32.mrf.mxu0
    %v1580 = vadd.f32 0.0, %v1579
    %v1581 = vpop.f32.mrf.mxu0
    %v1582 = vpop.f32.mrf.mxu0
    %v1583 = vpop.f32.mrf.mxu0
    %1584 = vdwg.mxu0
    %v1585 = vpack.c.bf16 %v1580, %v1580
    %1586 = vrot.lane.b32.xlu0 %v1473, 80
    %v1587 = vpop.permute.xlu0 %1586
    %1588 = vrot.lane.b32.xlu0 %v1473, 64
    %v1589 = vpop.permute.xlu0 %1588
    %v1591 = vsel %vm248, %v1587, 0
    %v1594 = vsel %vm248, %v1589, 0
    %1596 = vmatprep.subr.bf16.mxu0 0
    %1597 = vmatpush1.bf16.xpose.msra.mxu0 0
    %1598 = vmatprep.subr.bf16.mxu0 0
    %1599 = vmatpush1.bf16.xpose.msra.mxu0 0
    %1600 = vmatprep.subr.bf16.mxu0 0
    %1601 = vmatpush1.bf16.xpose.msra.mxu0 0
    %1602 = vmatprep.subr.bf16.mxu0 0
    %1603 = vmatpush1.bf16.xpose.msra.mxu0 0
    %1604 = vmatprep.subr.bf16.mxu0 0
    %1605 = vmatpush1.bf16.xpose.msra.mxu0 0
    %1606 = vmatprep.subr.bf16.mxu0 0
    %1607 = vmatpush1.bf16.xpose.msra.mxu0 0
    %1608 = vmatprep.subr.bf16.mxu0 0
    %1609 = vmatpush1.bf16.xpose.msra.mxu0 0
    %1610 = vmatprep.subr.bf16.mxu0 0
    %1611 = vmatpush1.bf16.xpose.msra.mxu0 %v1594
    %1612 = vmatprep.subr.bf16.mxu0 0
    %1613 = vmatpush2.bf16.xpose.msra.mxu0 0
    %1614 = vmatprep.subr.bf16.mxu0 0
    %1615 = vmatpush2.bf16.xpose.msra.mxu0 0
    %1616 = vmatprep.subr.bf16.mxu0 0
    %1617 = vmatpush2.bf16.xpose.msra.mxu0 0
    %1618 = vmatprep.subr.bf16.mxu0 0
    %1619 = vmatpush2.bf16.xpose.msra.mxu0 0
    %1620 = vmatprep.subr.bf16.mxu0 0
    %1621 = vmatpush2.bf16.xpose.msra.mxu0 0
    %1622 = vmatprep.subr.bf16.mxu0 0
    %1623 = vmatpush2.bf16.xpose.msra.mxu0 0
    %1624 = vmatprep.subr.bf16.mxu0 0
    %1625 = vmatpush2.bf16.xpose.msra.mxu0 0
    %1626 = vmatprep.subr.bf16.mxu0 0
    %1627 = vmatpush2.bf16.xpose.msra.mxu0 0
    %1628 = vmatprep.mubr.bf16.mxu0 0
    %1629 = vmatmul.mubr.bf16.gmra.mxu0 %v1591
    %v1630 = vpop.f32.mrf.mxu0
    %v1631 = vadd.f32 0.0, %v1630
    %v1632 = vpop.f32.mrf.mxu0
    %v1633 = vpop.f32.mrf.mxu0
    %v1634 = vpop.f32.mrf.mxu0
    %1635 = vdwg.mxu0
    %v1636 = vmul.f32 %v1631, 0.25
    %v1637 = vadd.f32 %v1636, %v181
    %v1638 = vsel %vm297, %v1637, -inf
    %1639 = vmax.xlane.f32.xlu0 %v1638
    %v1640 = vpop.xlane.xlu0 %1639
    %v1641 = vsub.f32 %v1637, %v1640
    %v1642 = vmul.f32 %v1641, 1.442695
    %v1643 = vpow.pop %v1642
    %v1644 = vsel %vm297, %v1643, 0.0
    %1645 = vadd.xlane.f32.xlu0 %v1644
    %v1646 = vpop.xlane.xlu0 %1645
    %v1647 = vrcp.pop %v1646
    %v1648 = vmul.f32 %v1643, %v1647
    %v1649 = vpack.c.bf16 %v1648, %v1648
    %1650 = vrot.lane.b32.xlu0 %v1473, 48
    %v1651 = vpop.permute.xlu0 %1650
    %v1653 = vsel %vm297, %v1649, 0
    %v1656 = vsel %vm315, %v1651, 0
    %1658 = vmatprep.subr.bf16.mxu0 0
    %1659 = vmatpush1.bf16.msra.mxu0 0
    %1660 = vmatprep.subr.bf16.mxu0 0
    %1661 = vmatpush1.bf16.msra.mxu0 0
    %1662 = vmatprep.subr.bf16.mxu0 0
    %1663 = vmatpush1.bf16.msra.mxu0 0
    %1664 = vmatprep.subr.bf16.mxu0 0
    %1665 = vmatpush1.bf16.msra.mxu0 0
    %1666 = vmatprep.subr.bf16.mxu0 0
    %1667 = vmatpush1.bf16.msra.mxu0 0
    %1668 = vmatprep.subr.bf16.mxu0 0
    %1669 = vmatpush1.bf16.msra.mxu0 0
    %1670 = vmatprep.subr.bf16.mxu0 0
    %1671 = vmatpush1.bf16.msra.mxu0 0
    %1672 = vmatprep.subr.bf16.mxu0 0
    %1673 = vmatpush1.bf16.msra.mxu0 %v1656
    %1674 = vmatprep.subr.bf16.mxu0 0
    %1675 = vmatpush2.bf16.msra.mxu0 0
    %1676 = vmatprep.subr.bf16.mxu0 0
    %1677 = vmatpush2.bf16.msra.mxu0 0
    %1678 = vmatprep.subr.bf16.mxu0 0
    %1679 = vmatpush2.bf16.msra.mxu0 0
    %1680 = vmatprep.subr.bf16.mxu0 0
    %1681 = vmatpush2.bf16.msra.mxu0 0
    %1682 = vmatprep.subr.bf16.mxu0 0
    %1683 = vmatpush2.bf16.msra.mxu0 0
    %1684 = vmatprep.subr.bf16.mxu0 0
    %1685 = vmatpush2.bf16.msra.mxu0 0
    %1686 = vmatprep.subr.bf16.mxu0 0
    %1687 = vmatpush2.bf16.msra.mxu0 0
    %1688 = vmatprep.subr.bf16.mxu0 0
    %1689 = vmatpush2.bf16.msra.mxu0 0
    %1690 = vmatprep.mubr.bf16.mxu0 0
    %1691 = vmatmul.mubr.bf16.gmra.mxu0 %v1653
    %v1692 = vpop.f32.mrf.mxu0
    %v1693 = vadd.f32 0.0, %v1692
    %v1694 = vpop.f32.mrf.mxu0
    %v1695 = vpop.f32.mrf.mxu0
    %v1696 = vpop.f32.mrf.mxu0
    %1697 = vdwg.mxu0
    %v1698 = vpack.c.bf16 %v1693, %v1693
    %v1700 = vsel %vm248, %v1698, 0
    %1702 = vmatprep.subr.bf16.mxu0 0
    %1703 = vmatpush1.bf16.msra.mxu0 0
    %1704 = vmatprep.subr.bf16.mxu0 0
    %1705 = vmatpush1.bf16.msra.mxu0 0
    %1706 = vmatprep.subr.bf16.mxu0 0
    %1707 = vmatpush1.bf16.msra.mxu0 0
    %1708 = vmatprep.subr.bf16.mxu0 0
    %1709 = vmatpush1.bf16.msra.mxu0 0
    %1710 = vmatprep.subr.bf16.mxu0 0
    %1711 = vmatpush1.bf16.msra.mxu0 0
    %1712 = vmatprep.subr.bf16.mxu0 0
    %1713 = vmatpush1.bf16.msra.mxu0 0
    %1714 = vmatprep.subr.bf16.mxu0 0
    %1715 = vmatpush1.bf16.msra.mxu0 0
    %1716 = vmatprep.subr.bf16.mxu0 0
    %1717 = vmatpush1.bf16.msra.mxu0 %v1160
    %1718 = vmatprep.subr.bf16.mxu0 0
    %1719 = vmatpush2.bf16.msra.mxu0 0
    %1720 = vmatprep.subr.bf16.mxu0 0
    %1721 = vmatpush2.bf16.msra.mxu0 0
    %1722 = vmatprep.subr.bf16.mxu0 0
    %1723 = vmatpush2.bf16.msra.mxu0 0
    %1724 = vmatprep.subr.bf16.mxu0 0
    %1725 = vmatpush2.bf16.msra.mxu0 0
    %1726 = vmatprep.subr.bf16.mxu0 0
    %1727 = vmatpush2.bf16.msra.mxu0 0
    %1728 = vmatprep.subr.bf16.mxu0 0
    %1729 = vmatpush2.bf16.msra.mxu0 0
    %1730 = vmatprep.subr.bf16.mxu0 0
    %1731 = vmatpush2.bf16.msra.mxu0 0
    %1732 = vmatprep.subr.bf16.mxu0 0
    %1733 = vmatpush2.bf16.msra.mxu0 0
    %1734 = vmatprep.mubr.bf16.mxu0 0
    %1735 = vmatmul.mubr.bf16.gmra.mxu0 %v1700
    %v1736 = vpop.f32.mrf.mxu0
    %v1737 = vadd.f32 0.0, %v1736
    %v1738 = vpop.f32.mrf.mxu0
    %v1739 = vpop.f32.mrf.mxu0
    %v1740 = vpop.f32.mrf.mxu0
    %1741 = vdwg.mxu0
    %v1743 = vsel %vm248, %v1585, 0
    %1745 = vmatprep.subr.bf16.mxu0 0
    %1746 = vmatpush1.bf16.msra.mxu0 0
    %1747 = vmatprep.subr.bf16.mxu0 0
    %1748 = vmatpush1.bf16.msra.mxu0 0
    %1749 = vmatprep.subr.bf16.mxu0 0
    %1750 = vmatpush1.bf16.msra.mxu0 0
    %1751 = vmatprep.subr.bf16.mxu0 0
    %1752 = vmatpush1.bf16.msra.mxu0 0
    %1753 = vmatprep.subr.bf16.mxu0 0
    %1754 = vmatpush1.bf16.msra.mxu0 0
    %1755 = vmatprep.subr.bf16.mxu0 0
    %1756 = vmatpush1.bf16.msra.mxu0 0
    %1757 = vmatprep.subr.bf16.mxu0 0
    %1758 = vmatpush1.bf16.msra.mxu0 0
    %1759 = vmatprep.subr.bf16.mxu0 0
    %1760 = vmatpush1.bf16.msra.mxu0 %v1159
    %1761 = vmatprep.subr.bf16.mxu0 0
    %1762 = vmatpush2.bf16.msra.mxu0 0
    %1763 = vmatprep.subr.bf16.mxu0 0
    %1764 = vmatpush2.bf16.msra.mxu0 0
    %1765 = vmatprep.subr.bf16.mxu0 0
    %1766 = vmatpush2.bf16.msra.mxu0 0
    %1767 = vmatprep.subr.bf16.mxu0 0
    %1768 = vmatpush2.bf16.msra.mxu0 0
    %1769 = vmatprep.subr.bf16.mxu0 0
    %1770 = vmatpush2.bf16.msra.mxu0 0
    %1771 = vmatprep.subr.bf16.mxu0 0
    %1772 = vmatpush2.bf16.msra.mxu0 0
    %1773 = vmatprep.subr.bf16.mxu0 0
    %1774 = vmatpush2.bf16.msra.mxu0 0
    %1775 = vmatprep.subr.bf16.mxu0 0
    %1776 = vmatpush2.bf16.msra.mxu0 0
    %1777 = vmatprep.mubr.bf16.mxu0 0
    %1778 = vmatmul.mubr.bf16.gmra.mxu0 %v1743
    %v1779 = vpop.f32.mrf.mxu0
    %v1780 = vadd.f32 %v1737, %v1779
    %v1781 = vpop.f32.mrf.mxu0
    %v1782 = vpop.f32.mrf.mxu0
    %v1783 = vpop.f32.mrf.mxu0
    %1784 = vdwg.mxu0
    %v1785 = vld [vmem:[#allocation8 + $0x1c8] sm:$0x1]
    %v1786 = vlaneseq
    %v1787 = vshrl.u32 %v1786, 7
    %v1788 = vsub.s32 0, %v1787
    %v1789 = vrot.slane %v1785, %v1788
    %v1790 = vadd.f32 %v1468, %v1789
    %v1791 = vadd.f32 %v1780, %v1789
    %v1792 = vadd.f32 %v1790, %v1097
    %v1793 = vadd.f32 %v1791, %v1098
    %v1794 = vld [vmem:[#allocation8 + $0x1d0] sm:$0x1]
    %v1795 = vld [vmem:[#allocation8 + $0x1d8] sm:$0x1]
    %v1796 = vsel %vm131, %v1792, 0.0
    %1797 = vadd.xlane.f32.xlu0 %v1796
    %v1798 = vpop.xlane.xlu0 %1797
    %v1799 = vsel %vm131, %v1793, 0.0
    %1800 = vadd.xlane.f32.xlu0 %v1799
    %v1801 = vpop.xlane.xlu0 %1800
    %v1802 = vmul.f32 %v1798, %v138
    %v1803 = vmul.f32 %v1801, %v138
    %v1804 = vsub.f32 %v1792, %v1802
    %v1805 = vsub.f32 %v1793, %v1803
    %v1806 = vmul.f32 %v1804, %v1804
    %v1807 = vmul.f32 %v1805, %v1805
    %v1808 = vsel %vm131, %v1806, 0.0
    %1809 = vadd.xlane.f32.xlu0 %v1808
    %v1810 = vpop.xlane.xlu0 %1809
    %v1811 = vsel %vm131, %v1807, 0.0
    %1812 = vadd.xlane.f32.xlu0 %v1811
    %v1813 = vpop.xlane.xlu0 %1812
    %v1814 = vmul.f32 %v1810, %v138
    %v1815 = vmul.f32 %v1813, %v138
    %v1816 = vadd.f32 %v1814, 1e-12
    %v1817 = vadd.f32 %v1815, 1e-12
    %v1818 = vrsqrt.pop %v1816
    %v1819 = vrsqrt.pop %v1817
    %v1820 = vmul.f32 %v1804, %v1818
    %v1821 = vmul.f32 %v1805, %v1819
    %v1822 = vlaneseq
    %v1823 = vshrl.u32 %v1822, 7
    %v1824 = vsub.s32 0, %v1823
    %v1825 = vrot.slane %v1794, %v1824
    %v1826 = vmul.f32 %v1820, %v1825
    %v1827 = vmul.f32 %v1821, %v1825
    %v1828 = vlaneseq
    %v1829 = vshrl.u32 %v1828, 7
    %v1830 = vsub.s32 0, %v1829
    %v1831 = vrot.slane %v1795, %v1830
    %v1832 = vadd.f32 %v1826, %v1831
    %v1833 = vadd.f32 %v1827, %v1831
    %v1834 = vpack.c.bf16 %v1833, %v1832
    %v1835 = vld [vmem:[#allocation8 + $0x1e0] sm:$0xff]
    %v1836 = vld [vmem:[#allocation8 + $0x1e8] sm:$0xff]
    %v1837 = vld [vmem:[#allocation8 + $0x1f0] sm:$0xff]
    %v1838 = vld [vmem:[#allocation8 + $0x1f8] sm:$0xff]
    %v1839 = vpack.c.bf16 %v1836, %v1835
    %v1840 = vpack.c.bf16 %v1838, %v1837
    %v1841 = vld [vmem:[#allocation8 + $0x200] sm:$0x1]
    %v1842 = vlaneseq
    %v1843 = vshrl.u32 %v1842, 7
    %v1844 = vsub.s32 0, %v1843
    %v1845 = vrot.slane %v1841, %v1844
    %v1847 = vsel %vm131, %v1834, 0
    %1849 = vmatprep.subr.bf16.mxu0 0
    %1850 = vmatpush1.bf16.msra.mxu0 0
    %1851 = vmatprep.subr.bf16.mxu0 0
    %1852 = vmatpush1.bf16.msra.mxu0 0
    %1853 = vmatprep.subr.bf16.mxu0 0
    %1854 = vmatpush1.bf16.msra.mxu0 0
    %1855 = vmatprep.subr.bf16.mxu0 0
    %1856 = vmatpush1.bf16.msra.mxu0 0
    %1857 = vmatprep.subr.bf16.mxu0 0
    %1858 = vmatpush1.bf16.msra.mxu0 0
    %1859 = vmatprep.subr.bf16.mxu0 0
    %1860 = vmatpush1.bf16.msra.mxu0 0
    %1861 = vmatprep.subr.bf16.mxu0 0
    %1862 = vmatpush1.bf16.msra.mxu0 %v1840
    %1863 = vmatprep.subr.bf16.mxu0 0
    %1864 = vmatpush1.bf16.msra.mxu0 %v1839
    %1865 = vmatprep.subr.bf16.mxu0 0
    %1866 = vmatpush2.bf16.msra.mxu0 0
    %1867 = vmatprep.subr.bf16.mxu0 0
    %1868 = vmatpush2.bf16.msra.mxu0 0
    %1869 = vmatprep.subr.bf16.mxu0 0
    %1870 = vmatpush2.bf16.msra.mxu0 0
    %1871 = vmatprep.subr.bf16.mxu0 0
    %1872 = vmatpush2.bf16.msra.mxu0 0
    %1873 = vmatprep.subr.bf16.mxu0 0
    %1874 = vmatpush2.bf16.msra.mxu0 0
    %1875 = vmatprep.subr.bf16.mxu0 0
    %1876 = vmatpush2.bf16.msra.mxu0 0
    %1877 = vmatprep.subr.bf16.mxu0 0
    %1878 = vmatpush2.bf16.msra.mxu0 0
    %1879 = vmatprep.subr.bf16.mxu0 0
    %1880 = vmatpush2.bf16.msra.mxu0 0
    %1881 = vmatprep.mubr.bf16.mxu0 0
    %1882 = vmatmul.mubr.bf16.gmra.mxu0 %v1847
    %v1883 = vpop.f32.mrf.mxu0
    %v1884 = vadd.f32 %v1845, %v1883
    %v1885 = vpop.f32.mrf.mxu0
    %v1886 = vpop.f32.mrf.mxu0
    %v1887 = vadd.f32 %v1845, %v1886
    %v1888 = vpop.f32.mrf.mxu0
    %1889 = vdwg.mxu0
    %v1890 = vmul.f32 %v1884, %v1884
    %v1891 = vmul.f32 %v1887, %v1887
    %v1892 = vmul.f32 %v1884, %v1890
    %v1893 = vmul.f32 %v1887, %v1891
    %v1894 = vmul.f32 %v1892, 0.044715
    %v1895 = vmul.f32 %v1893, 0.044715
    %v1896 = vadd.f32 %v1884, %v1894
    %v1897 = vadd.f32 %v1887, %v1895
    %v1898 = vmul.f32 %v1896, 0.7978846
    %v1899 = vmul.f32 %v1897, 0.7978846
    %v1900 = vtanh.pop %v1898
    %v1901 = vtanh.pop %v1899
    %v1902 = vadd.f32 %v1900, 1.0
    %v1903 = vadd.f32 %v1901, 1.0
    %v1904 = vmul.f32 %v1902, 0.5
    %v1905 = vmul.f32 %v1903, 0.5
    %v1906 = vmul.f32 %v1884, %v1904
    %v1907 = vmul.f32 %v1887, %v1905
    %v1908 = vpack.c.bf16 %v1907, %v1906
    %v1909 = vld [vmem:[#allocation8 + $0x208] sm:$0xff]
    %v1910 = vld [vmem:[#allocation8 + $0x210] sm:$0xff]
    %v1911 = vld [vmem:[#allocation8 + $0x218] sm:$0xff]
    %v1912 = vld [vmem:[#allocation8 + $0x220] sm:$0xff]
    %v1913 = vld [vmem:[#allocation8 + $0x228] sm:$0xff]
    %v1914 = vld [vmem:[#allocation8 + $0x230] sm:$0xff]
    %v1915 = vld [vmem:[#allocation8 + $0x238] sm:$0xff]
    %v1916 = vld [vmem:[#allocation8 + $0x240] sm:$0xff]
    %v1917 = vpack.c.bf16 %v1910, %v1909
    %v1918 = vpack.c.bf16 %v1912, %v1911
    %v1919 = vpack.c.bf16 %v1914, %v1913
    %v1920 = vpack.c.bf16 %v1916, %v1915
    %v1921 = vld [vmem:[#allocation8 + $0x248] sm:$0x1]
    %v1922 = vlaneseq
    %v1923 = vshrl.u32 %v1922, 7
    %v1924 = vsub.s32 0, %v1923
    %v1925 = vrot.slane %v1921, %v1924
    %v1927 = vsel %vm1012, %v1908, 0
    %1929 = vmatprep.subr.bf16.mxu0 0
    %1930 = vmatpush1.bf16.msra.mxu0 0
    %1931 = vmatprep.subr.bf16.mxu0 0
    %1932 = vmatpush1.bf16.msra.mxu0 0
    %1933 = vmatprep.subr.bf16.mxu0 0
    %1934 = vmatpush1.bf16.msra.mxu0 0
    %1935 = vmatprep.subr.bf16.mxu0 0
    %1936 = vmatpush1.bf16.msra.mxu0 0
    %1937 = vmatprep.subr.bf16.mxu0 0
    %1938 = vmatpush1.bf16.msra.mxu0 %v1920
    %1939 = vmatprep.subr.bf16.mxu0 0
    %1940 = vmatpush1.bf16.msra.mxu0 %v1919
    %1941 = vmatprep.subr.bf16.mxu0 0
    %1942 = vmatpush1.bf16.msra.mxu0 %v1918
    %1943 = vmatprep.subr.bf16.mxu0 0
    %1944 = vmatpush1.bf16.msra.mxu0 %v1917
    %1945 = vmatprep.subr.bf16.mxu0 0
    %1946 = vmatpush2.bf16.msra.mxu0 0
    %1947 = vmatprep.subr.bf16.mxu0 0
    %1948 = vmatpush2.bf16.msra.mxu0 0
    %1949 = vmatprep.subr.bf16.mxu0 0
    %1950 = vmatpush2.bf16.msra.mxu0 0
    %1951 = vmatprep.subr.bf16.mxu0 0
    %1952 = vmatpush2.bf16.msra.mxu0 0
    %1953 = vmatprep.subr.bf16.mxu0 0
    %1954 = vmatpush2.bf16.msra.mxu0 0
    %1955 = vmatprep.subr.bf16.mxu0 0
    %1956 = vmatpush2.bf16.msra.mxu0 0
    %1957 = vmatprep.subr.bf16.mxu0 0
    %1958 = vmatpush2.bf16.msra.mxu0 0
    %1959 = vmatprep.subr.bf16.mxu0 0
    %1960 = vmatpush2.bf16.msra.mxu0 0
    %1961 = vmatprep.mubr.bf16.mxu0 0
    %1962 = vmatmul.mubr.bf16.gmra.mxu0 %v1927
    %v1963 = vpop.f32.mrf.mxu0
    %v1964 = vadd.f32 %v1925, %v1963
    %v1965 = vpop.f32.mrf.mxu0
    %v1966 = vpop.f32.mrf.mxu0
    %v1967 = vadd.f32 %v1925, %v1966
    %v1968 = vpop.f32.mrf.mxu0
    %1969 = vdwg.mxu0
    %v1970 = vadd.f32 %v1964, %v1832
    %v1971 = vadd.f32 %v1967, %v1833
    %v1972 = vld [vmem:[#allocation8 + $0x250] sm:$0x1]
    %v1973 = vld [vmem:[#allocation8 + $0x258] sm:$0x1]
    %v1974 = vsel %vm131, %v1970, 0.0
    %1975 = vadd.xlane.f32.xlu0 %v1974
    %v1976 = vpop.xlane.xlu0 %1975
    %v1977 = vsel %vm131, %v1971, 0.0
    %1978 = vadd.xlane.f32.xlu0 %v1977
    %v1979 = vpop.xlane.xlu0 %1978
    %v1980 = vmul.f32 %v1976, %v138
    %v1981 = vmul.f32 %v1979, %v138
    %v1982 = vsub.f32 %v1970, %v1980
    %v1983 = vsub.f32 %v1971, %v1981
    %v1984 = vmul.f32 %v1982, %v1982
    %v1985 = vmul.f32 %v1983, %v1983
    %v1986 = vsel %vm131, %v1984, 0.0
    %1987 = vadd.xlane.f32.xlu0 %v1986
    %v1988 = vpop.xlane.xlu0 %1987
    %v1989 = vsel %vm131, %v1985, 0.0
    %1990 = vadd.xlane.f32.xlu0 %v1989
    %v1991 = vpop.xlane.xlu0 %1990
    %v1992 = vmul.f32 %v1988, %v138
    %v1993 = vmul.f32 %v1991, %v138
    %v1994 = vadd.f32 %v1992, 1e-12
    %v1995 = vadd.f32 %v1993, 1e-12
    %v1996 = vrsqrt.pop %v1994
    %v1997 = vrsqrt.pop %v1995
    %v1998 = vmul.f32 %v1982, %v1996
    %v1999 = vmul.f32 %v1983, %v1997
    %v2000 = vlaneseq
    %v2001 = vshrl.u32 %v2000, 7
    %v2002 = vsub.s32 0, %v2001
    %v2003 = vrot.slane %v1972, %v2002
    %v2004 = vmul.f32 %v1998, %v2003
    %v2005 = vmul.f32 %v1999, %v2003
    %v2006 = vlaneseq
    %v2007 = vshrl.u32 %v2006, 7
    %v2008 = vsub.s32 0, %v2007
    %v2009 = vrot.slane %v1973, %v2008
    %v2010 = vadd.f32 %v2004, %v2009
    %v2011 = vadd.f32 %v2005, %v2009
    %2012 = vst.msk [vmem:[#allocation2] sm:$0xff] %vm131, %v2010
    %2013 = vst.msk [vmem:[#allocation2 + $0x8] sm:$0xff] %vm131, %v2011
    %v2014 = vld [vmem:[#allocation2] ss:$8 sm:$0x3]
    %v2015 = vpack.c.bf16 %v2014, %v2014
    %v2016 = vld [vmem:[#allocation8 + $0x260] sm:$0xff]
    %v2017 = vld [vmem:[#allocation8 + $0x268] sm:$0xff]
    %v2018 = vld [vmem:[#allocation8 + $0x270] sm:$0xff]
    %v2019 = vld [vmem:[#allocation8 + $0x278] sm:$0xff]
    %v2020 = vpack.c.bf16 %v2017, %v2016
    %v2021 = vpack.c.bf16 %v2019, %v2018
    %v2022 = vld [vmem:[#allocation8 + $0x280] sm:$0x1]
    %v2023 = vlaneseq
    %v2024 = vshrl.u32 %v2023, 7
    %v2025 = vsub.s32 0, %v2024
    %v2026 = vrot.slane %v2022, %v2025
    %v2028 = vsel %vm131, %v2015, 0
    %2030 = vmatprep.subr.bf16.mxu0 0
    %2031 = vmatpush1.bf16.msra.mxu0 0
    %2032 = vmatprep.subr.bf16.mxu0 0
    %2033 = vmatpush1.bf16.msra.mxu0 0
    %2034 = vmatprep.subr.bf16.mxu0 0
    %2035 = vmatpush1.bf16.msra.mxu0 0
    %2036 = vmatprep.subr.bf16.mxu0 0
    %2037 = vmatpush1.bf16.msra.mxu0 0
    %2038 = vmatprep.subr.bf16.mxu0 0
    %2039 = vmatpush1.bf16.msra.mxu0 0
    %2040 = vmatprep.subr.bf16.mxu0 0
    %2041 = vmatpush1.bf16.msra.mxu0 0
    %2042 = vmatprep.subr.bf16.mxu0 0
    %2043 = vmatpush1.bf16.msra.mxu0 %v2021
    %2044 = vmatprep.subr.bf16.mxu0 0
    %2045 = vmatpush1.bf16.msra.mxu0 %v2020
    %2046 = vmatprep.subr.bf16.mxu0 0
    %2047 = vmatpush2.bf16.msra.mxu0 0
    %2048 = vmatprep.subr.bf16.mxu0 0
    %2049 = vmatpush2.bf16.msra.mxu0 0
    %2050 = vmatprep.subr.bf16.mxu0 0
    %2051 = vmatpush2.bf16.msra.mxu0 0
    %2052 = vmatprep.subr.bf16.mxu0 0
    %2053 = vmatpush2.bf16.msra.mxu0 0
    %2054 = vmatprep.subr.bf16.mxu0 0
    %2055 = vmatpush2.bf16.msra.mxu0 0
    %2056 = vmatprep.subr.bf16.mxu0 0
    %2057 = vmatpush2.bf16.msra.mxu0 0
    %2058 = vmatprep.subr.bf16.mxu0 0
    %2059 = vmatpush2.bf16.msra.mxu0 0
    %2060 = vmatprep.subr.bf16.mxu0 0
    %2061 = vmatpush2.bf16.msra.mxu0 0
    %2062 = vmatprep.mubr.bf16.mxu0 0
    %2063 = vmatmul.mubr.bf16.gmra.mxu0 %v2028
    %v2064 = vpop.f32.mrf.mxu0
    %v2065 = vadd.f32 %v2026, %v2064
    %v2066 = vpop.f32.mrf.mxu0
    %v2067 = vpop.f32.mrf.mxu0
    %v2068 = vpop.f32.mrf.mxu0
    %2069 = vdwg.mxu0
    %v2070 = vtanh.pop %v2065
    %v2071 = vpack.c.bf16 %v2070, %v2070
    %v2072 = vld [vmem:[#allocation8 + $0x288] sm:$0xff]
    %v2073 = vld [vmem:[#allocation8 + $0x290] sm:$0xff]
    %v2074 = vld [vmem:[#allocation8 + $0x298] sm:$0xff]
    %v2075 = vld [vmem:[#allocation8 + $0x2a0] sm:$0xff]
    %v2076 = vpack.c.bf16 %v2073, %v2072
    %v2077 = vpack.c.bf16 %v2075, %v2074
    %v2078 = vld [vmem:[#allocation8 + $0x2a8] sm:$0x1]
    %v2079 = vlaneseq
    %v2080 = vshrl.u32 %v2079, 7
    %v2081 = vsub.s32 0, %v2080
    %v2082 = vrot.slane %v2078, %v2081
    %v2084 = vsel %vm131, %v2071, 0
    %2086 = vmatprep.subr.bf16.mxu0 0
    %2087 = vmatpush1.bf16.msra.mxu0 0
    %2088 = vmatprep.subr.bf16.mxu0 0
    %2089 = vmatpush1.bf16.msra.mxu0 0
    %2090 = vmatprep.subr.bf16.mxu0 0
    %2091 = vmatpush1.bf16.msra.mxu0 0
    %2092 = vmatprep.subr.bf16.mxu0 0
    %2093 = vmatpush1.bf16.msra.mxu0 0
    %2094 = vmatprep.subr.bf16.mxu0 0
    %2095 = vmatpush1.bf16.msra.mxu0 0
    %2096 = vmatprep.subr.bf16.mxu0 0
    %2097 = vmatpush1.bf16.msra.mxu0 0
    %2098 = vmatprep.subr.bf16.mxu0 0
    %2099 = vmatpush1.bf16.msra.mxu0 %v2077
    %2100 = vmatprep.subr.bf16.mxu0 0
    %2101 = vmatpush1.bf16.msra.mxu0 %v2076
    %2102 = vmatprep.subr.bf16.mxu0 0
    %2103 = vmatpush2.bf16.msra.mxu0 0
    %2104 = vmatprep.subr.bf16.mxu0 0
    %2105 = vmatpush2.bf16.msra.mxu0 0
    %2106 = vmatprep.subr.bf16.mxu0 0
    %2107 = vmatpush2.bf16.msra.mxu0 0
    %2108 = vmatprep.subr.bf16.mxu0 0
    %2109 = vmatpush2.bf16.msra.mxu0 0
    %2110 = vmatprep.subr.bf16.mxu0 0
    %2111 = vmatpush2.bf16.msra.mxu0 0
    %2112 = vmatprep.subr.bf16.mxu0 0
    %2113 = vmatpush2.bf16.msra.mxu0 0
    %2114 = vmatprep.subr.bf16.mxu0 0
    %2115 = vmatpush2.bf16.msra.mxu0 0
    %2116 = vmatprep.subr.bf16.mxu0 0
    %2117 = vmatpush2.bf16.msra.mxu0 0
    %2118 = vmatprep.mubr.bf16.mxu0 0
    %2119 = vmatmul.mubr.bf16.gmra.mxu0 %v2084
    %v2120 = vpop.f32.mrf.mxu0
    %v2121 = vadd.f32 %v2082, %v2120
    %v2122 = vpop.f32.mrf.mxu0
    %v2123 = vpop.f32.mrf.mxu0
    %v2124 = vpop.f32.mrf.mxu0
    %2125 = vdwg.mxu0
    %2126 = vst [vmem:[#allocation10] sm:$0x3] %v2121
    // Predicated region
    $region26: #{tpu_custom_call.1} parent=1 // pred_check
      _
    $region27: #{tpu_custom_call.1} parent=1 // pred_check_branch
      %2128 = sbr.rel (0) target = $region29
    $region28: #{tpu_custom_call.1} parent=1 // pred_region
      %s2130 = ssub.s32 32, 32
      %2131 = vsyncadd [#allocation5], %s2130
      %s2133 = sshll.u32 [#allocation10], 4
      %s2134 = int_to_ptr.vmem [resolvable:$true] %s2133
      %2136 = dma.vmem_to_hbm [thread:$0]  %s2134, 32, %s3, [#allocation5]
    $region29: #{tpu_custom_call.1} parent=1 // pred_fallthru
      _
    // Predicated region
    $region30: #{tpu_custom_call.1} parent=1 // pred_check
      _
    $region31: #{tpu_custom_call.1} parent=1 // pred_check_branch
      %2138 = sbr.rel (0) target = $region33
    $region32: #{tpu_custom_call.1} parent=1 // pred_region
      %2139 = dma.done [#allocation5], 32
    $region33: #{tpu_custom_call.1} parent=1 // pred_fallthru
      _
    %2140 = vsyncpa [#allocation4], 1
    %2141 = vsyncpa [#allocation9], 1
    %2142 = vsyncpa [#allocation5], 1
    %2143 = vsyncpa [#allocation6], 1

</llo_original>
